<compile_context>
chip_gen: v6e
topology: v6e:2x2x1
jax: 0.10.0
libtpu: 0.0.40
codegen_flags: <defaults>
</compile_context>

<pallas_src>
import functools
import math

import jax
import jax.numpy as jnp
from jax.experimental import pallas as pl
from jax.experimental.pallas import tpu as pltpu

GN_EPS = 1e-5        # nn.GroupNorm default
LN_EPS = 1e-5        # nn.TransformerEncoderLayer layer_norm_eps default
CNN_LAYERS = 3       # CNNBlock(layer_num=3)
GROUPS = 8           # GroupNorm(num_groups=8)
NEG_INF = -1e30      # finite "-inf": keeps softmax NaN-free even for fully padded rows


# --------------------------------------------------------------------------- kernel helpers

def _layernorm(x, g, b):
    m = jnp.mean(x, axis=-1, keepdims=True)
    d = x - m
    v = jnp.mean(d * d, axis=-1, keepdims=True)
    return d * jax.lax.rsqrt(v + LN_EPS) * g + b


# --------------------------------------------------------------------------- kernel

def _ctblock_kernel(gavg_ref, x0_ref, mask_ref,
                    cw_ref, cb_ref, cgm_ref, cbt_ref,
                    wq_ref, wk_ref, wv_ref, wo_ref,
                    bq_ref, bk_ref, bv_ref, bo_ref,
                    g1_ref, b1_ref, w1_ref, bf1_ref,
                    w2_ref, bf2_ref, g2_ref, b2_ref,
                    o_ref, attn_ref,
                    x_sc, acc_sc,
                    *, layer_num, nhead):
    """One CTBlock (one grid step) for one batch element; x / acc carried in VMEM scratch."""
    li = pl.program_id(1)
    L, D = x_sc.shape
    hd = D // nhead

    @pl.when(li == 0)
    def _():
        x_sc[...] = x0_ref[0]
        acc_sc[...] = jnp.zeros_like(acc_sc)

    x = x_sc[...]                             # (L, D) f32
    m_add = mask_ref[...]                     # (1, 1, L) additive key-padding mask
    gavg = gavg_ref[...]                      # (D, D) block-diag group-averaging matrix

    # ---------------- CNNBlock: 3 x (Conv1d k3 p1 -> GroupNorm -> GELU) residual, then /3
    h = x
    zrow = jnp.zeros((1, D), dtype=jnp.float32)
    for ci in range(CNN_LAYERS):
        hprev = jnp.concatenate([zrow, h[:L - 1, :]], axis=0)     # x[l-1], zero-padded
        hnext = jnp.concatenate([h[1:, :], zrow], axis=0)         # x[l+1], zero-padded
        xcat = jnp.concatenate([hprev, h, hnext], axis=-1).astype(jnp.bfloat16)  # (L, 3D)
        y = jnp.dot(xcat, cw_ref[0, ci],
                    preferred_element_type=jnp.float32) + cb_ref[0, ci]           # (L, D)
        # GroupNorm over (L, D/GROUPS) per group, biased variance; one fused stat matmul.
        s1 = jnp.sum(y, axis=0, keepdims=True)                    # (1, D)
        s2 = jnp.sum(y * y, axis=0, keepdims=True)                # (1, D)
        stats = jnp.dot(jnp.concatenate([s1, s2], axis=0), gavg,
                        preferred_element_type=jnp.float32)       # (2, D)
        mean_c = stats[0:1]
        var_c = stats[1:2] - mean_c * mean_c
        yn = (y - mean_c) * jax.lax.rsqrt(var_c + GN_EPS)
        yn = yn * cgm_ref[0, ci] + cbt_ref[0, ci]
        # exact (erf) GELU, matching nn.GELU(); Dropout is identity at inference
        h = h + 0.5 * yn * (1.0 + jax.lax.erf(yn * (1.0 / math.sqrt(2.0))))
    h = h * (1.0 / CNN_LAYERS)

    # ---------------- Multi-head self-attention (full-width projections, split only for scores)
    hb = h.astype(jnp.bfloat16)
    q = jnp.dot(hb, wq_ref[0], preferred_element_type=jnp.float32) + bq_ref[0]   # scale folded in
    k = jnp.dot(hb, wk_ref[0], preferred_element_type=jnp.float32) + bk_ref[0]
    v = jnp.dot(hb, wv_ref[0], preferred_element_type=jnp.float32) + bv_ref[0]

    def split_heads(t):                          # (L, D) -> (H, L, hd)
        return jnp.transpose(t.reshape(L, nhead, hd), (1, 0, 2))

    qh = split_heads(q.astype(jnp.bfloat16))
    kh = split_heads(k.astype(jnp.bfloat16))
    vh = split_heads(v.astype(jnp.bfloat16))

    s = jnp.einsum('hle,hme->hlm', qh, kh,
                   preferred_element_type=jnp.float32) + m_add                   # (H, L, L)
    mx = jnp.max(s, axis=-1, keepdims=True)
    p = jnp.exp(s - mx)
    p = p / jnp.sum(p, axis=-1, keepdims=True)
    attn_ref[0, 0] = p                                                           # per-layer block

    ctx = jnp.einsum('hlm,hme->hle', p.astype(jnp.bfloat16), vh,
                     preferred_element_type=jnp.float32)                         # (H, L, hd)
    ctx_flat = jnp.transpose(ctx, (1, 0, 2)).reshape(L, D).astype(jnp.bfloat16)  # (L, D)
    attn_out = jnp.dot(ctx_flat, wo_ref[0],
                       preferred_element_type=jnp.float32) + bo_ref[0]

    # ---------------- post-norm transformer tail: LN1(x+attn); LN2(y + FFN(y))
    y1 = _layernorm(h + attn_out, g1_ref[0], b1_ref[0])
    ff = jnp.dot(y1.astype(jnp.bfloat16), w1_ref[0],
                 preferred_element_type=jnp.float32) + bf1_ref[0]
    ff = jnp.maximum(ff, 0.0)                                                    # default: ReLU
    ff = jnp.dot(ff.astype(jnp.bfloat16), w2_ref[0],
                 preferred_element_type=jnp.float32) + bf2_ref[0]
    x_new = _layernorm(y1 + ff, g2_ref[0], b2_ref[0])

    x_sc[...] = x_new
    acc_sc[...] = acc_sc[...] + x_new

    @pl.when(li == layer_num - 1)
    def _():
        o_ref[0] = acc_sc[...] * (1.0 / layer_num)


# --------------------------------------------------------------------------- params

_WEIGHT_NAMES = ("cw", "cb", "cgm", "cbt",
                 "wq", "wk", "wv", "wo", "bq", "bk", "bv", "bo",
                 "g1", "b1", "w1", "bf1", "w2", "bf2", "g2", "b2")
_BF16_WEIGHTS = frozenset({"cw", "wq", "wk", "wv", "wo", "w1", "w2"})


def init_params(key, layer_num, d_model, nhead, dff):
    assert d_model % GROUPS == 0 and d_model % nhead == 0
    D = d_model
    keys = iter(jax.random.split(key, 4096))

    def nrm(shape, scale=0.05):
        return scale * jax.random.normal(next(keys), shape, dtype=jnp.float32)

    p = {k: [] for k in _WEIGHT_NAMES}
    for _ in range(layer_num):
        lcw, lcb, lcg, lcbe = [], [], [], []
        for _ in range(CNN_LAYERS):
            w_torch = nrm((D, D, 3))                           # Conv1d weight (C_out, C_in, K)
            # (K, C_in, C_out) -> (3D, D): row k*D + c_in holds the tap-k weight column c_out
            lcw.append(jnp.transpose(w_torch, (2, 1, 0)).reshape(3 * D, D))
            lcb.append(nrm((1, D)))
            lcg.append(1.0 + nrm((1, D)))
            lcbe.append(nrm((1, D)))
        p["cw"].append(jnp.stack(lcw)); p["cb"].append(jnp.stack(lcb))
        p["cgm"].append(jnp.stack(lcg)); p["cbt"].append(jnp.stack(lcbe))

        p["wq"].append(nrm((D, D)))                            # (D_in, D_out)
        p["wk"].append(nrm((D, D)))
        p["wv"].append(nrm((D, D)))
        p["wo"].append(nrm((D, D)))
        p["bq"].append(nrm((1, D)))
        p["bk"].append(nrm((1, D)))
        p["bv"].append(nrm((1, D)))
        p["bo"].append(nrm((1, D)))

        p["g1"].append(1.0 + nrm((1, D))); p["b1"].append(nrm((1, D)))
        p["w1"].append(nrm((D, dff)));     p["bf1"].append(nrm((1, dff)))
        p["w2"].append(nrm((dff, D)));     p["bf2"].append(nrm((1, D)))
        p["g2"].append(1.0 + nrm((1, D))); p["b2"].append(nrm((1, D)))

    return {k: jnp.stack(v) for k, v in p.items()}             # leading axis = layer


# --------------------------------------------------------------------------- wrapper

def _vmem_limit_bytes():
    # v5e/v6e: 128 MiB VMEM per core, v7x: 64 MiB. Leave headroom for the pipeline.
    try:
        cap = pltpu.get_tpu_info().vmem_capacity_bytes
    except Exception:
        cap = 128 * 1024 * 1024
    return int(min(cap - cap // 8, 110 * 1024 * 1024))


def encoder_forward(params, node_embedding, position_embedding, pad_mask, *, nhead):
    """pad_mask: bool (B, L), True = padded key position (ignored by attention)."""
    B, L, D = node_embedding.shape
    layer_num = params["g1"].shape[0]
    hd = D // nhead
    scale = 1.0 / math.sqrt(hd)
    cpg = D // GROUPS

    x0 = (node_embedding + position_embedding).astype(jnp.float32)
    add_mask = jnp.where(pad_mask, NEG_INF, 0.0).astype(jnp.float32)[:, None, :]  # (B, 1, L)

    # Block-diagonal group-averaging matrix, built once on the host.
    same_group = (jnp.arange(D)[:, None] // cpg) == (jnp.arange(D)[None, :] // cpg)
    gavg = jnp.where(same_group, 1.0 / float(L * cpg), 0.0).astype(jnp.float32)    # (D, D)

    # Device-layout weights: fold the softmax scale into Wq/bq, matmul weights in bf16.
    w = dict(params)
    w["wq"] = w["wq"] * scale
    w["bq"] = w["bq"] * scale
    weights = []
    for name in _WEIGHT_NAMES:
        a = w[name]
        if name in _BF16_WEIGHTS:
            a = a.astype(jnp.bfloat16)
        weights.append(a)

    def const_spec(a):                      # resident across the whole grid
        zeros = (0,) * a.ndim
        return pl.BlockSpec(tuple(a.shape), lambda b, li: zeros)

    def layer_spec(a):                      # one layer's slice resident per grid step
        pad = (0,) * (a.ndim - 1)
        return pl.BlockSpec((1,) + tuple(a.shape[1:]), lambda b, li: (li,) + pad)

    kernel = functools.partial(_ctblock_kernel, layer_num=layer_num, nhead=nhead)
    out, attn = pl.pallas_call(
        kernel,
        out_shape=(jax.ShapeDtypeStruct((B, L, D), jnp.float32),
                   jax.ShapeDtypeStruct((B, layer_num, nhead, L, L), jnp.float32)),
        grid=(B, layer_num),
        in_specs=[const_spec(gavg),
                  pl.BlockSpec((1, L, D), lambda b, li: (b, 0, 0)),
                  pl.BlockSpec((1, 1, L), lambda b, li: (b, 0, 0))]
                 + [layer_spec(a) for a in weights],
        out_specs=(pl.BlockSpec((1, L, D), lambda b, li: (b, 0, 0)),
                   pl.BlockSpec((1, 1, nhead, L, L),
                                lambda b, li: (b, li, 0, 0, 0))),
        scratch_shapes=[pltpu.VMEM((L, D), jnp.float32),    # running x
                        pltpu.VMEM((L, D), jnp.float32)],   # residual accumulator
        compiler_params=pltpu.CompilerParams(
            dimension_semantics=("parallel", "arbitrary"),  # batch across TCs, layers carried
            vmem_limit_bytes=_vmem_limit_bytes()),
    )(gavg, x0, add_mask, *weights)

    attn_maps = [attn[:, i] for i in range(layer_num)]       # mirror PyTorch's per-layer list
    return out, attn_maps


# --------------------------------------------------------------------------- main

if __name__ == "__main__":
    B, L = 2, 8
    d_model, nhead, dff, layer_num = 32, 4, 64, 2

    key = jax.random.PRNGKey(0)
    k1, k2, k3 = jax.random.split(key, 3)
    node_embedding = jax.random.normal(k1, (B, L, d_model), dtype=jnp.float32)
    position_embedding = jax.random.normal(k2, (B, L, d_model), dtype=jnp.float32)
    pad_mask = jnp.zeros((B, L), dtype=bool).at[1, 6:].set(True)   # last 2 keys of batch 1 padded

    params = init_params(k3, layer_num, d_model, nhead, dff)
    out, attn_maps = encoder_forward(params, node_embedding, position_embedding,
                                     pad_mask, nhead=nhead)
    jax.block_until_ready(out)
    for a in attn_maps:
        jax.block_until_ready(a)

    assert out.shape == (B, L, d_model)
    assert all(a.shape == (B, nhead, L, L) for a in attn_maps)
    assert bool(jnp.all(jnp.isfinite(out)))
    assert all(bool(jnp.all(jnp.isfinite(a))) for a in attn_maps)
    print("KERNEL_OK")
</pallas_src>

<mosaic_0001>
module attributes {stable_mosaic.version = 11 : i64} {
  func.func @_ctblock_kernel(%arg0: i32, %arg1: i32, %arg2: memref<32x32xf32, #tpu.memory_space<vmem>>, %arg3: memref<1x8x32xf32, #tpu.memory_space<vmem>>, %arg4: memref<1x1x8xf32, #tpu.memory_space<vmem>>, %arg5: memref<1x3x96x32xbf16, #tpu.memory_space<vmem>>, %arg6: memref<1x3x1x32xf32, #tpu.memory_space<vmem>>, %arg7: memref<1x3x1x32xf32, #tpu.memory_space<vmem>>, %arg8: memref<1x3x1x32xf32, #tpu.memory_space<vmem>>, %arg9: memref<1x32x32xbf16, #tpu.memory_space<vmem>>, %arg10: memref<1x32x32xbf16, #tpu.memory_space<vmem>>, %arg11: memref<1x32x32xbf16, #tpu.memory_space<vmem>>, %arg12: memref<1x32x32xbf16, #tpu.memory_space<vmem>>, %arg13: memref<1x1x32xf32, #tpu.memory_space<vmem>>, %arg14: memref<1x1x32xf32, #tpu.memory_space<vmem>>, %arg15: memref<1x1x32xf32, #tpu.memory_space<vmem>>, %arg16: memref<1x1x32xf32, #tpu.memory_space<vmem>>, %arg17: memref<1x1x32xf32, #tpu.memory_space<vmem>>, %arg18: memref<1x1x32xf32, #tpu.memory_space<vmem>>, %arg19: memref<1x32x64xbf16, #tpu.memory_space<vmem>>, %arg20: memref<1x1x64xf32, #tpu.memory_space<vmem>>, %arg21: memref<1x64x32xbf16, #tpu.memory_space<vmem>>, %arg22: memref<1x1x32xf32, #tpu.memory_space<vmem>>, %arg23: memref<1x1x32xf32, #tpu.memory_space<vmem>>, %arg24: memref<1x1x32xf32, #tpu.memory_space<vmem>>, %arg25: memref<1x8x32xf32, #tpu.memory_space<vmem>>, %arg26: memref<1x1x4x8x8xf32, #tpu.memory_space<vmem>>, %arg27: memref<8x32xf32, #tpu.memory_space<vmem>>, %arg28: memref<8x32xf32, #tpu.memory_space<vmem>>) attributes {dimension_semantics = [#tpu.dimension_semantics<parallel>, #tpu.dimension_semantics<arbitrary>], iteration_bounds = array<i64: 2, 2>, scalar_prefetch = 0 : i64, scratch_operands = 2 : i64, tpu.core_type = #tpu.core_type<tc>, window_params = [{pipeline_mode = #tpu.pipeline_mode<synchronous>, transform_indices = @transform_0, window_bounds = array<i64: 32, 32>}, {transform_indices = @transform_1, window_bounds = array<i64: 1, 8, 32>}, {transform_indices = @transform_2, window_bounds = array<i64: 1, 1, 8>}, {transform_indices = @transform_3, window_bounds = array<i64: 1, 3, 96, 32>}, {transform_indices = @transform_4, window_bounds = array<i64: 1, 3, 1, 32>}, {transform_indices = @transform_5, window_bounds = array<i64: 1, 3, 1, 32>}, {transform_indices = @transform_6, window_bounds = array<i64: 1, 3, 1, 32>}, {transform_indices = @transform_7, window_bounds = array<i64: 1, 32, 32>}, {transform_indices = @transform_8, window_bounds = array<i64: 1, 32, 32>}, {transform_indices = @transform_9, window_bounds = array<i64: 1, 32, 32>}, {transform_indices = @transform_10, window_bounds = array<i64: 1, 32, 32>}, {transform_indices = @transform_11, window_bounds = array<i64: 1, 1, 32>}, {transform_indices = @transform_12, window_bounds = array<i64: 1, 1, 32>}, {transform_indices = @transform_13, window_bounds = array<i64: 1, 1, 32>}, {transform_indices = @transform_14, window_bounds = array<i64: 1, 1, 32>}, {transform_indices = @transform_15, window_bounds = array<i64: 1, 1, 32>}, {transform_indices = @transform_16, window_bounds = array<i64: 1, 1, 32>}, {transform_indices = @transform_17, window_bounds = array<i64: 1, 32, 64>}, {transform_indices = @transform_18, window_bounds = array<i64: 1, 1, 64>}, {transform_indices = @transform_19, window_bounds = array<i64: 1, 64, 32>}, {transform_indices = @transform_20, window_bounds = array<i64: 1, 1, 32>}, {transform_indices = @transform_21, window_bounds = array<i64: 1, 1, 32>}, {transform_indices = @transform_22, window_bounds = array<i64: 1, 1, 32>}, {transform_indices = @transform_23, window_bounds = array<i64: 1, 8, 32>}, {transform_indices = @transform_24, window_bounds = array<i64: 1, 1, 4, 8, 8>}]} {
    %c0_i32 = arith.constant 0 : i32
    %0 = arith.cmpi eq, %arg1, %c0_i32 : i32
    %1 = arith.extui %0 : i1 to i32
    %c0_i32_0 = arith.constant 0 : i32
    %2 = arith.cmpi ne, %1, %c0_i32_0 : i32
    scf.if %2 {
      %c0_159 = arith.constant 0 : index
      %c0_160 = arith.constant 0 : index
      %c0_161 = arith.constant 0 : index
      %286 = vector.load %arg3[%c0_159, %c0_160, %c0_161] : memref<1x8x32xf32, #tpu.memory_space<vmem>>, vector<1x8x32xf32>
      %287 = vector.shape_cast %286 : vector<1x8x32xf32> to vector<8x32xf32>
      %c0_162 = arith.constant 0 : index
      %c0_163 = arith.constant 0 : index
      %288 = vector.load %arg27[%c0_162, %c0_163] : memref<8x32xf32, #tpu.memory_space<vmem>>, vector<8x32xf32>
      tpu.vector_store %arg27[%c0_162, %c0_163], %287 {strides = array<i32>} : memref<8x32xf32, #tpu.memory_space<vmem>>, vector<8x32xf32>,
      %cst_164 = arith.constant 0.000000e+00 : f32
      %289 = vector.broadcast %cst_164 : f32 to vector<8x32xf32>
      %c0_165 = arith.constant 0 : index
      %c0_166 = arith.constant 0 : index
      %290 = vector.load %arg28[%c0_165, %c0_166] : memref<8x32xf32, #tpu.memory_space<vmem>>, vector<8x32xf32>
      tpu.vector_store %arg28[%c0_165, %c0_166], %289 {strides = array<i32>} : memref<8x32xf32, #tpu.memory_space<vmem>>, vector<8x32xf32>,
    } else {
    }
    %c0 = arith.constant 0 : index
    %c0_1 = arith.constant 0 : index
    %3 = vector.load %arg27[%c0, %c0_1] : memref<8x32xf32, #tpu.memory_space<vmem>>, vector<8x32xf32>
    %c0_2 = arith.constant 0 : index
    %c0_3 = arith.constant 0 : index
    %c0_4 = arith.constant 0 : index
    %4 = vector.load %arg4[%c0_2, %c0_3, %c0_4] : memref<1x1x8xf32, #tpu.memory_space<vmem>>, vector<1x1x8xf32>
    %c0_5 = arith.constant 0 : index
    %c0_6 = arith.constant 0 : index
    %5 = vector.load %arg2[%c0_5, %c0_6] : memref<32x32xf32, #tpu.memory_space<vmem>>, vector<32x32xf32>
    %cst = arith.constant 0.000000e+00 : f32
    %6 = vector.broadcast %cst : f32 to vector<1x32xf32>
    %7 = vector.extract_strided_slice %3 {offsets = [0, 0], sizes = [7, 32], strides = [1, 1]} : vector<8x32xf32> to vector<7x32xf32>
    %8 = tpu.concatenate %6, %7 in 0 : vector<1x32xf32>, vector<7x32xf32> -> vector<8x32xf32>
    %9 = vector.extract_strided_slice %3 {offsets = [1, 0], sizes = [7, 32], strides = [1, 1]} : vector<8x32xf32> to vector<7x32xf32>
    %10 = tpu.concatenate %9, %6 in 0 : vector<7x32xf32>, vector<1x32xf32> -> vector<8x32xf32>
    %11 = tpu.concatenate %8, %3, %10 in 1 : vector<8x32xf32>, vector<8x32xf32>, vector<8x32xf32> -> vector<8x96xf32>
    %12 = arith.truncf %11 : vector<8x96xf32> to vector<8x96xbf16>
    %c0_7 = arith.constant 0 : index
    %c0_8 = arith.constant 0 : index
    %c0_9 = arith.constant 0 : index
    %c0_10 = arith.constant 0 : index
    %13 = vector.load %arg5[%c0_7, %c0_8, %c0_9, %c0_10] : memref<1x3x96x32xbf16, #tpu.memory_space<vmem>>, vector<1x1x96x32xbf16>
    %14 = vector.shape_cast %13 : vector<1x1x96x32xbf16> to vector<96x32xbf16>
    %cst_11 = arith.constant dense<0.000000e+00> : vector<8x32xf32>
    %15 = tpu.matmul %12, %14, %cst_11 {dimension_numbers = #tpu.dot_dimension_numbers<[1], [0], [0], [1], [0, 0, 1, 1], [], []>} : vector<8x96xbf16>, vector<96x32xbf16>, vector<8x32xf32> -> vector<8x32xf32>
    %c0_12 = arith.constant 0 : index
    %c0_13 = arith.constant 0 : index
    %c0_14 = arith.constant 0 : index
    %c0_15 = arith.constant 0 : index
    %16 = vector.load %arg6[%c0_12, %c0_13, %c0_14, %c0_15] : memref<1x3x1x32xf32, #tpu.memory_space<vmem>>, vector<1x1x1x32xf32>
    %17 = vector.shape_cast %16 : vector<1x1x1x32xf32> to vector<1x32xf32>
    %18 = vector.broadcast %17 : vector<1x32xf32> to vector<8x32xf32>
    %19 = arith.addf %15, %18 : vector<8x32xf32>
    %cst_16 = arith.constant dense<0.000000e+00> : vector<32xf32>
    %20 = vector.multi_reduction <add>, %19, %cst_16 [0] : vector<8x32xf32> to vector<32xf32>
    %21 = vector.shape_cast %20 : vector<32xf32> to vector<1x32xf32>
    %22 = arith.mulf %19, %19 : vector<8x32xf32>
    %cst_17 = arith.constant dense<0.000000e+00> : vector<32xf32>
    %23 = vector.multi_reduction <add>, %22, %cst_17 [0] : vector<8x32xf32> to vector<32xf32>
    %24 = vector.shape_cast %23 : vector<32xf32> to vector<1x32xf32>
    %25 = tpu.concatenate %21, %24 in 0 : vector<1x32xf32>, vector<1x32xf32> -> vector<2x32xf32>
    %cst_18 = arith.constant dense<0.000000e+00> : vector<2x32xf32>
    %26 = tpu.matmul %25, %5, %cst_18 {dimension_numbers = #tpu.dot_dimension_numbers<[1], [0], [0], [1], [0, 0, 1, 1], [], []>} : vector<2x32xf32>, vector<32x32xf32>, vector<2x32xf32> -> vector<2x32xf32>
    %27 = vector.extract_strided_slice %26 {offsets = [0, 0], sizes = [1, 32], strides = [1, 1]} : vector<2x32xf32> to vector<1x32xf32>
    %28 = vector.extract_strided_slice %26 {offsets = [1, 0], sizes = [1, 32], strides = [1, 1]} : vector<2x32xf32> to vector<1x32xf32>
    %29 = arith.mulf %27, %27 : vector<1x32xf32>
    %30 = arith.subf %28, %29 : vector<1x32xf32>
    %31 = vector.broadcast %27 : vector<1x32xf32> to vector<8x32xf32>
    %32 = arith.subf %19, %31 : vector<8x32xf32>
    %cst_19 = arith.constant 9.99999974E-6 : f32
    %33 = vector.broadcast %cst_19 : f32 to vector<1x32xf32>
    %34 = arith.addf %30, %33 : vector<1x32xf32>
    %35 = math.rsqrt %34 : vector<1x32xf32>
    %36 = vector.broadcast %35 : vector<1x32xf32> to vector<8x32xf32>
    %37 = arith.mulf %32, %36 : vector<8x32xf32>
    %c0_20 = arith.constant 0 : index
    %c0_21 = arith.constant 0 : index
    %c0_22 = arith.constant 0 : index
    %c0_23 = arith.constant 0 : index
    %38 = vector.load %arg7[%c0_20, %c0_21, %c0_22, %c0_23] : memref<1x3x1x32xf32, #tpu.memory_space<vmem>>, vector<1x1x1x32xf32>
    %39 = vector.shape_cast %38 : vector<1x1x1x32xf32> to vector<1x32xf32>
    %40 = vector.broadcast %39 : vector<1x32xf32> to vector<8x32xf32>
    %41 = arith.mulf %37, %40 : vector<8x32xf32>
    %c0_24 = arith.constant 0 : index
    %c0_25 = arith.constant 0 : index
    %c0_26 = arith.constant 0 : index
    %c0_27 = arith.constant 0 : index
    %42 = vector.load %arg8[%c0_24, %c0_25, %c0_26, %c0_27] : memref<1x3x1x32xf32, #tpu.memory_space<vmem>>, vector<1x1x1x32xf32>
    %43 = vector.shape_cast %42 : vector<1x1x1x32xf32> to vector<1x32xf32>
    %44 = vector.broadcast %43 : vector<1x32xf32> to vector<8x32xf32>
    %45 = arith.addf %41, %44 : vector<8x32xf32>
    %cst_28 = arith.constant 5.000000e-01 : f32
    %46 = vector.broadcast %cst_28 : f32 to vector<8x32xf32>
    %47 = arith.mulf %46, %45 : vector<8x32xf32>
    %cst_29 = arith.constant 0.707106769 : f32
    %48 = vector.broadcast %cst_29 : f32 to vector<8x32xf32>
    %49 = arith.mulf %45, %48 : vector<8x32xf32>
    %50 = math.erf %49 : vector<8x32xf32>
    %cst_30 = arith.constant 1.000000e+00 : f32
    %51 = vector.broadcast %cst_30 : f32 to vector<8x32xf32>
    %52 = arith.addf %51, %50 : vector<8x32xf32>
    %53 = arith.mulf %47, %52 : vector<8x32xf32>
    %54 = arith.addf %3, %53 : vector<8x32xf32>
    %55 = vector.extract_strided_slice %54 {offsets = [0, 0], sizes = [7, 32], strides = [1, 1]} : vector<8x32xf32> to vector<7x32xf32>
    %56 = tpu.concatenate %6, %55 in 0 : vector<1x32xf32>, vector<7x32xf32> -> vector<8x32xf32>
    %57 = vector.extract_strided_slice %54 {offsets = [1, 0], sizes = [7, 32], strides = [1, 1]} : vector<8x32xf32> to vector<7x32xf32>
    %58 = tpu.concatenate %57, %6 in 0 : vector<7x32xf32>, vector<1x32xf32> -> vector<8x32xf32>
    %59 = tpu.concatenate %56, %54, %58 in 1 : vector<8x32xf32>, vector<8x32xf32>, vector<8x32xf32> -> vector<8x96xf32>
    %60 = arith.truncf %59 : vector<8x96xf32> to vector<8x96xbf16>
    %c0_31 = arith.constant 0 : index
    %c1 = arith.constant 1 : index
    %c0_32 = arith.constant 0 : index
    %c0_33 = arith.constant 0 : index
    %61 = vector.load %arg5[%c0_31, %c1, %c0_32, %c0_33] : memref<1x3x96x32xbf16, #tpu.memory_space<vmem>>, vector<1x1x96x32xbf16>
    %62 = vector.shape_cast %61 : vector<1x1x96x32xbf16> to vector<96x32xbf16>
    %cst_34 = arith.constant dense<0.000000e+00> : vector<8x32xf32>
    %63 = tpu.matmul %60, %62, %cst_34 {dimension_numbers = #tpu.dot_dimension_numbers<[1], [0], [0], [1], [0, 0, 1, 1], [], []>} : vector<8x96xbf16>, vector<96x32xbf16>, vector<8x32xf32> -> vector<8x32xf32>
    %c0_35 = arith.constant 0 : index
    %c1_36 = arith.constant 1 : index
    %c0_37 = arith.constant 0 : index
    %c0_38 = arith.constant 0 : index
    %64 = vector.load %arg6[%c0_35, %c1_36, %c0_37, %c0_38] : memref<1x3x1x32xf32, #tpu.memory_space<vmem>>, vector<1x1x1x32xf32>
    %65 = vector.shape_cast %64 : vector<1x1x1x32xf32> to vector<1x32xf32>
    %66 = vector.broadcast %65 : vector<1x32xf32> to vector<8x32xf32>
    %67 = arith.addf %63, %66 : vector<8x32xf32>
    %cst_39 = arith.constant dense<0.000000e+00> : vector<32xf32>
    %68 = vector.multi_reduction <add>, %67, %cst_39 [0] : vector<8x32xf32> to vector<32xf32>
    %69 = vector.shape_cast %68 : vector<32xf32> to vector<1x32xf32>
    %70 = arith.mulf %67, %67 : vector<8x32xf32>
    %cst_40 = arith.constant dense<0.000000e+00> : vector<32xf32>
    %71 = vector.multi_reduction <add>, %70, %cst_40 [0] : vector<8x32xf32> to vector<32xf32>
    %72 = vector.shape_cast %71 : vector<32xf32> to vector<1x32xf32>
    %73 = tpu.concatenate %69, %72 in 0 : vector<1x32xf32>, vector<1x32xf32> -> vector<2x32xf32>
    %cst_41 = arith.constant dense<0.000000e+00> : vector<2x32xf32>
    %74 = tpu.matmul %73, %5, %cst_41 {dimension_numbers = #tpu.dot_dimension_numbers<[1], [0], [0], [1], [0, 0, 1, 1], [], []>} : vector<2x32xf32>, vector<32x32xf32>, vector<2x32xf32> -> vector<2x32xf32>
    %75 = vector.extract_strided_slice %74 {offsets = [0, 0], sizes = [1, 32], strides = [1, 1]} : vector<2x32xf32> to vector<1x32xf32>
    %76 = vector.extract_strided_slice %74 {offsets = [1, 0], sizes = [1, 32], strides = [1, 1]} : vector<2x32xf32> to vector<1x32xf32>
    %77 = arith.mulf %75, %75 : vector<1x32xf32>
    %78 = arith.subf %76, %77 : vector<1x32xf32>
    %79 = vector.broadcast %75 : vector<1x32xf32> to vector<8x32xf32>
    %80 = arith.subf %67, %79 : vector<8x32xf32>
    %cst_42 = arith.constant 9.99999974E-6 : f32
    %81 = vector.broadcast %cst_42 : f32 to vector<1x32xf32>
    %82 = arith.addf %78, %81 : vector<1x32xf32>
    %83 = math.rsqrt %82 : vector<1x32xf32>
    %84 = vector.broadcast %83 : vector<1x32xf32> to vector<8x32xf32>
    %85 = arith.mulf %80, %84 : vector<8x32xf32>
    %c0_43 = arith.constant 0 : index
    %c1_44 = arith.constant 1 : index
    %c0_45 = arith.constant 0 : index
    %c0_46 = arith.constant 0 : index
    %86 = vector.load %arg7[%c0_43, %c1_44, %c0_45, %c0_46] : memref<1x3x1x32xf32, #tpu.memory_space<vmem>>, vector<1x1x1x32xf32>
    %87 = vector.shape_cast %86 : vector<1x1x1x32xf32> to vector<1x32xf32>
    %88 = vector.broadcast %87 : vector<1x32xf32> to vector<8x32xf32>
    %89 = arith.mulf %85, %88 : vector<8x32xf32>
    %c0_47 = arith.constant 0 : index
    %c1_48 = arith.constant 1 : index
    %c0_49 = arith.constant 0 : index
    %c0_50 = arith.constant 0 : index
    %90 = vector.load %arg8[%c0_47, %c1_48, %c0_49, %c0_50] : memref<1x3x1x32xf32, #tpu.memory_space<vmem>>, vector<1x1x1x32xf32>
    %91 = vector.shape_cast %90 : vector<1x1x1x32xf32> to vector<1x32xf32>
    %92 = vector.broadcast %91 : vector<1x32xf32> to vector<8x32xf32>
    %93 = arith.addf %89, %92 : vector<8x32xf32>
    %cst_51 = arith.constant 5.000000e-01 : f32
    %94 = vector.broadcast %cst_51 : f32 to vector<8x32xf32>
    %95 = arith.mulf %94, %93 : vector<8x32xf32>
    %cst_52 = arith.constant 0.707106769 : f32
    %96 = vector.broadcast %cst_52 : f32 to vector<8x32xf32>
    %97 = arith.mulf %93, %96 : vector<8x32xf32>
    %98 = math.erf %97 : vector<8x32xf32>
    %cst_53 = arith.constant 1.000000e+00 : f32
    %99 = vector.broadcast %cst_53 : f32 to vector<8x32xf32>
    %100 = arith.addf %99, %98 : vector<8x32xf32>
    %101 = arith.mulf %95, %100 : vector<8x32xf32>
    %102 = arith.addf %54, %101 : vector<8x32xf32>
    %103 = vector.extract_strided_slice %102 {offsets = [0, 0], sizes = [7, 32], strides = [1, 1]} : vector<8x32xf32> to vector<7x32xf32>
    %104 = tpu.concatenate %6, %103 in 0 : vector<1x32xf32>, vector<7x32xf32> -> vector<8x32xf32>
    %105 = vector.extract_strided_slice %102 {offsets = [1, 0], sizes = [7, 32], strides = [1, 1]} : vector<8x32xf32> to vector<7x32xf32>
    %106 = tpu.concatenate %105, %6 in 0 : vector<7x32xf32>, vector<1x32xf32> -> vector<8x32xf32>
    %107 = tpu.concatenate %104, %102, %106 in 1 : vector<8x32xf32>, vector<8x32xf32>, vector<8x32xf32> -> vector<8x96xf32>
    %108 = arith.truncf %107 : vector<8x96xf32> to vector<8x96xbf16>
    %c0_54 = arith.constant 0 : index
    %c2 = arith.constant 2 : index
    %c0_55 = arith.constant 0 : index
    %c0_56 = arith.constant 0 : index
    %109 = vector.load %arg5[%c0_54, %c2, %c0_55, %c0_56] : memref<1x3x96x32xbf16, #tpu.memory_space<vmem>>, vector<1x1x96x32xbf16>
    %110 = vector.shape_cast %109 : vector<1x1x96x32xbf16> to vector<96x32xbf16>
    %cst_57 = arith.constant dense<0.000000e+00> : vector<8x32xf32>
    %111 = tpu.matmul %108, %110, %cst_57 {dimension_numbers = #tpu.dot_dimension_numbers<[1], [0], [0], [1], [0, 0, 1, 1], [], []>} : vector<8x96xbf16>, vector<96x32xbf16>, vector<8x32xf32> -> vector<8x32xf32>
    %c0_58 = arith.constant 0 : index
    %c2_59 = arith.constant 2 : index
    %c0_60 = arith.constant 0 : index
    %c0_61 = arith.constant 0 : index
    %112 = vector.load %arg6[%c0_58, %c2_59, %c0_60, %c0_61] : memref<1x3x1x32xf32, #tpu.memory_space<vmem>>, vector<1x1x1x32xf32>
    %113 = vector.shape_cast %112 : vector<1x1x1x32xf32> to vector<1x32xf32>
    %114 = vector.broadcast %113 : vector<1x32xf32> to vector<8x32xf32>
    %115 = arith.addf %111, %114 : vector<8x32xf32>
    %cst_62 = arith.constant dense<0.000000e+00> : vector<32xf32>
    %116 = vector.multi_reduction <add>, %115, %cst_62 [0] : vector<8x32xf32> to vector<32xf32>
    %117 = vector.shape_cast %116 : vector<32xf32> to vector<1x32xf32>
    %118 = arith.mulf %115, %115 : vector<8x32xf32>
    %cst_63 = arith.constant dense<0.000000e+00> : vector<32xf32>
    %119 = vector.multi_reduction <add>, %118, %cst_63 [0] : vector<8x32xf32> to vector<32xf32>
    %120 = vector.shape_cast %119 : vector<32xf32> to vector<1x32xf32>
    %121 = tpu.concatenate %117, %120 in 0 : vector<1x32xf32>, vector<1x32xf32> -> vector<2x32xf32>
    %cst_64 = arith.constant dense<0.000000e+00> : vector<2x32xf32>
    %122 = tpu.matmul %121, %5, %cst_64 {dimension_numbers = #tpu.dot_dimension_numbers<[1], [0], [0], [1], [0, 0, 1, 1], [], []>} : vector<2x32xf32>, vector<32x32xf32>, vector<2x32xf32> -> vector<2x32xf32>
    %123 = vector.extract_strided_slice %122 {offsets = [0, 0], sizes = [1, 32], strides = [1, 1]} : vector<2x32xf32> to vector<1x32xf32>
    %124 = vector.extract_strided_slice %122 {offsets = [1, 0], sizes = [1, 32], strides = [1, 1]} : vector<2x32xf32> to vector<1x32xf32>
    %125 = arith.mulf %123, %123 : vector<1x32xf32>
    %126 = arith.subf %124, %125 : vector<1x32xf32>
    %127 = vector.broadcast %123 : vector<1x32xf32> to vector<8x32xf32>
    %128 = arith.subf %115, %127 : vector<8x32xf32>
    %cst_65 = arith.constant 9.99999974E-6 : f32
    %129 = vector.broadcast %cst_65 : f32 to vector<1x32xf32>
    %130 = arith.addf %126, %129 : vector<1x32xf32>
    %131 = math.rsqrt %130 : vector<1x32xf32>
    %132 = vector.broadcast %131 : vector<1x32xf32> to vector<8x32xf32>
    %133 = arith.mulf %128, %132 : vector<8x32xf32>
    %c0_66 = arith.constant 0 : index
    %c2_67 = arith.constant 2 : index
    %c0_68 = arith.constant 0 : index
    %c0_69 = arith.constant 0 : index
    %134 = vector.load %arg7[%c0_66, %c2_67, %c0_68, %c0_69] : memref<1x3x1x32xf32, #tpu.memory_space<vmem>>, vector<1x1x1x32xf32>
    %135 = vector.shape_cast %134 : vector<1x1x1x32xf32> to vector<1x32xf32>
    %136 = vector.broadcast %135 : vector<1x32xf32> to vector<8x32xf32>
    %137 = arith.mulf %133, %136 : vector<8x32xf32>
    %c0_70 = arith.constant 0 : index
    %c2_71 = arith.constant 2 : index
    %c0_72 = arith.constant 0 : index
    %c0_73 = arith.constant 0 : index
    %138 = vector.load %arg8[%c0_70, %c2_71, %c0_72, %c0_73] : memref<1x3x1x32xf32, #tpu.memory_space<vmem>>, vector<1x1x1x32xf32>
    %139 = vector.shape_cast %138 : vector<1x1x1x32xf32> to vector<1x32xf32>
    %140 = vector.broadcast %139 : vector<1x32xf32> to vector<8x32xf32>
    %141 = arith.addf %137, %140 : vector<8x32xf32>
    %cst_74 = arith.constant 5.000000e-01 : f32
    %142 = vector.broadcast %cst_74 : f32 to vector<8x32xf32>
    %143 = arith.mulf %142, %141 : vector<8x32xf32>
    %cst_75 = arith.constant 0.707106769 : f32
    %144 = vector.broadcast %cst_75 : f32 to vector<8x32xf32>
    %145 = arith.mulf %141, %144 : vector<8x32xf32>
    %146 = math.erf %145 : vector<8x32xf32>
    %cst_76 = arith.constant 1.000000e+00 : f32
    %147 = vector.broadcast %cst_76 : f32 to vector<8x32xf32>
    %148 = arith.addf %147, %146 : vector<8x32xf32>
    %149 = arith.mulf %143, %148 : vector<8x32xf32>
    %150 = arith.addf %102, %149 : vector<8x32xf32>
    %cst_77 = arith.constant 0.333333343 : f32
    %151 = vector.broadcast %cst_77 : f32 to vector<8x32xf32>
    %152 = arith.mulf %150, %151 : vector<8x32xf32>
    %153 = arith.truncf %152 : vector<8x32xf32> to vector<8x32xbf16>
    %c0_78 = arith.constant 0 : index
    %c0_79 = arith.constant 0 : index
    %c0_80 = arith.constant 0 : index
    %154 = vector.load %arg9[%c0_78, %c0_79, %c0_80] : memref<1x32x32xbf16, #tpu.memory_space<vmem>>, vector<1x32x32xbf16>
    %155 = vector.shape_cast %154 : vector<1x32x32xbf16> to vector<32x32xbf16>
    %cst_81 = arith.constant dense<0.000000e+00> : vector<8x32xf32>
    %156 = tpu.matmul %153, %155, %cst_81 {dimension_numbers = #tpu.dot_dimension_numbers<[1], [0], [0], [1], [0, 0, 1, 1], [], []>} : vector<8x32xbf16>, vector<32x32xbf16>, vector<8x32xf32> -> vector<8x32xf32>
    %c0_82 = arith.constant 0 : index
    %c0_83 = arith.constant 0 : index
    %c0_84 = arith.constant 0 : index
    %157 = vector.load %arg13[%c0_82, %c0_83, %c0_84] : memref<1x1x32xf32, #tpu.memory_space<vmem>>, vector<1x1x32xf32>
    %158 = vector.shape_cast %157 : vector<1x1x32xf32> to vector<1x32xf32>
    %159 = vector.broadcast %158 : vector<1x32xf32> to vector<8x32xf32>
    %160 = arith.addf %156, %159 : vector<8x32xf32>
    %c0_85 = arith.constant 0 : index
    %c0_86 = arith.constant 0 : index
    %c0_87 = arith.constant 0 : index
    %161 = vector.load %arg10[%c0_85, %c0_86, %c0_87] : memref<1x32x32xbf16, #tpu.memory_space<vmem>>, vector<1x32x32xbf16>
    %162 = vector.shape_cast %161 : vector<1x32x32xbf16> to vector<32x32xbf16>
    %cst_88 = arith.constant dense<0.000000e+00> : vector<8x32xf32>
    %163 = tpu.matmul %153, %162, %cst_88 {dimension_numbers = #tpu.dot_dimension_numbers<[1], [0], [0], [1], [0, 0, 1, 1], [], []>} : vector<8x32xbf16>, vector<32x32xbf16>, vector<8x32xf32> -> vector<8x32xf32>
    %c0_89 = arith.constant 0 : index
    %c0_90 = arith.constant 0 : index
    %c0_91 = arith.constant 0 : index
    %164 = vector.load %arg14[%c0_89, %c0_90, %c0_91] : memref<1x1x32xf32, #tpu.memory_space<vmem>>, vector<1x1x32xf32>
    %165 = vector.shape_cast %164 : vector<1x1x32xf32> to vector<1x32xf32>
    %166 = vector.broadcast %165 : vector<1x32xf32> to vector<8x32xf32>
    %167 = arith.addf %163, %166 : vector<8x32xf32>
    %c0_92 = arith.constant 0 : index
    %c0_93 = arith.constant 0 : index
    %c0_94 = arith.constant 0 : index
    %168 = vector.load %arg11[%c0_92, %c0_93, %c0_94] : memref<1x32x32xbf16, #tpu.memory_space<vmem>>, vector<1x32x32xbf16>
    %169 = vector.shape_cast %168 : vector<1x32x32xbf16> to vector<32x32xbf16>
    %cst_95 = arith.constant dense<0.000000e+00> : vector<8x32xf32>
    %170 = tpu.matmul %153, %169, %cst_95 {dimension_numbers = #tpu.dot_dimension_numbers<[1], [0], [0], [1], [0, 0, 1, 1], [], []>} : vector<8x32xbf16>, vector<32x32xbf16>, vector<8x32xf32> -> vector<8x32xf32>
    %c0_96 = arith.constant 0 : index
    %c0_97 = arith.constant 0 : index
    %c0_98 = arith.constant 0 : index
    %171 = vector.load %arg15[%c0_96, %c0_97, %c0_98] : memref<1x1x32xf32, #tpu.memory_space<vmem>>, vector<1x1x32xf32>
    %172 = vector.shape_cast %171 : vector<1x1x32xf32> to vector<1x32xf32>
    %173 = vector.broadcast %172 : vector<1x32xf32> to vector<8x32xf32>
    %174 = arith.addf %170, %173 : vector<8x32xf32>
    %175 = arith.truncf %160 : vector<8x32xf32> to vector<8x32xbf16>
    %176 = vector.shape_cast %175 : vector<8x32xbf16> to vector<8x4x8xbf16>
    %177 = tpu.transpose %176, [1, 0, 2] : vector<8x4x8xbf16> -> vector<4x8x8xbf16>
    %178 = arith.truncf %167 : vector<8x32xf32> to vector<8x32xbf16>
    %179 = vector.shape_cast %178 : vector<8x32xbf16> to vector<8x4x8xbf16>
    %180 = tpu.transpose %179, [1, 0, 2] : vector<8x4x8xbf16> -> vector<4x8x8xbf16>
    %181 = arith.truncf %174 : vector<8x32xf32> to vector<8x32xbf16>
    %182 = vector.shape_cast %181 : vector<8x32xbf16> to vector<8x4x8xbf16>
    %183 = tpu.transpose %182, [1, 0, 2] : vector<8x4x8xbf16> -> vector<4x8x8xbf16>
    "tpu.trace_start"() <{level = 10 : i32, message = "hle,hme->hlm"}> : () -> ()
    %cst_99 = arith.constant dense<0.000000e+00> : vector<4x8x8xf32>
    %184 = tpu.matmul %177, %180, %cst_99 {dimension_numbers = #tpu.dot_dimension_numbers<[2], [2], [1], [1], [0, 0, 0, 1, 1, 1], [0], [0]>} : vector<4x8x8xbf16>, vector<4x8x8xbf16>, vector<4x8x8xf32> -> vector<4x8x8xf32>
    "tpu.trace_stop"() : () -> ()
    %185 = vector.broadcast %4 : vector<1x1x8xf32> to vector<4x8x8xf32>
    %186 = arith.addf %184, %185 : vector<4x8x8xf32>
    %cst_100 = arith.constant dense<0xFF800000> : vector<4x8xf32>
    %187 = vector.multi_reduction <maximumf>, %186, %cst_100 [2] : vector<4x8x8xf32> to vector<4x8xf32>
    %188 = vector.shape_cast %187 : vector<4x8xf32> to vector<4x8x1xf32>
    %189 = vector.broadcast %188 : vector<4x8x1xf32> to vector<4x8x8xf32>
    %190 = arith.subf %186, %189 : vector<4x8x8xf32>
    %191 = math.exp %190 : vector<4x8x8xf32>
    %cst_101 = arith.constant dense<0.000000e+00> : vector<4x8xf32>
    %192 = vector.multi_reduction <add>, %191, %cst_101 [2] : vector<4x8x8xf32> to vector<4x8xf32>
    %193 = vector.shape_cast %192 : vector<4x8xf32> to vector<4x8x1xf32>
    %194 = vector.broadcast %193 : vector<4x8x1xf32> to vector<4x8x8xf32>
    %195 = arith.divf %191, %194 : vector<4x8x8xf32>
    %c0_102 = arith.constant 0 : index
    %c0_103 = arith.constant 0 : index
    %c0_104 = arith.constant 0 : index
    %c0_105 = arith.constant 0 : index
    %c0_106 = arith.constant 0 : index
    %196 = vector.load %arg26[%c0_102, %c0_103, %c0_104, %c0_105, %c0_106] : memref<1x1x4x8x8xf32, #tpu.memory_space<vmem>>, vector<1x1x4x8x8xf32>
    %197 = vector.shape_cast %196 : vector<1x1x4x8x8xf32> to vector<4x8x8xf32>
    %198 = vector.shape_cast %195 : vector<4x8x8xf32> to vector<1x1x4x8x8xf32>
    tpu.vector_store %arg26[%c0_102, %c0_103, %c0_104, %c0_105, %c0_106], %198 {strides = array<i32>} : memref<1x1x4x8x8xf32, #tpu.memory_space<vmem>>, vector<1x1x4x8x8xf32>,
    %199 = arith.truncf %195 : vector<4x8x8xf32> to vector<4x8x8xbf16>
    "tpu.trace_start"() <{level = 10 : i32, message = "hlm,hme->hle"}> : () -> ()
    %cst_107 = arith.constant dense<0.000000e+00> : vector<4x8x8xf32>
    %200 = tpu.matmul %199, %183, %cst_107 {dimension_numbers = #tpu.dot_dimension_numbers<[2], [1], [1], [2], [0, 0, 0, 1, 1, 2], [0], [0]>} : vector<4x8x8xbf16>, vector<4x8x8xbf16>, vector<4x8x8xf32> -> vector<4x8x8xf32>
    "tpu.trace_stop"() : () -> ()
    %201 = tpu.transpose %200, [1, 0, 2] : vector<4x8x8xf32> -> vector<8x4x8xf32>
    %202 = vector.shape_cast %201 : vector<8x4x8xf32> to vector<8x32xf32>
    %203 = arith.truncf %202 : vector<8x32xf32> to vector<8x32xbf16>
    %c0_108 = arith.constant 0 : index
    %c0_109 = arith.constant 0 : index
    %c0_110 = arith.constant 0 : index
    %204 = vector.load %arg12[%c0_108, %c0_109, %c0_110] : memref<1x32x32xbf16, #tpu.memory_space<vmem>>, vector<1x32x32xbf16>
    %205 = vector.shape_cast %204 : vector<1x32x32xbf16> to vector<32x32xbf16>
    %cst_111 = arith.constant dense<0.000000e+00> : vector<8x32xf32>
    %206 = tpu.matmul %203, %205, %cst_111 {dimension_numbers = #tpu.dot_dimension_numbers<[1], [0], [0], [1], [0, 0, 1, 1], [], []>} : vector<8x32xbf16>, vector<32x32xbf16>, vector<8x32xf32> -> vector<8x32xf32>
    %c0_112 = arith.constant 0 : index
    %c0_113 = arith.constant 0 : index
    %c0_114 = arith.constant 0 : index
    %207 = vector.load %arg16[%c0_112, %c0_113, %c0_114] : memref<1x1x32xf32, #tpu.memory_space<vmem>>, vector<1x1x32xf32>
    %208 = vector.shape_cast %207 : vector<1x1x32xf32> to vector<1x32xf32>
    %209 = vector.broadcast %208 : vector<1x32xf32> to vector<8x32xf32>
    %210 = arith.addf %206, %209 : vector<8x32xf32>
    %211 = arith.addf %152, %210 : vector<8x32xf32>
    %c0_115 = arith.constant 0 : index
    %c0_116 = arith.constant 0 : index
    %c0_117 = arith.constant 0 : index
    %212 = vector.load %arg17[%c0_115, %c0_116, %c0_117] : memref<1x1x32xf32, #tpu.memory_space<vmem>>, vector<1x1x32xf32>
    %213 = vector.shape_cast %212 : vector<1x1x32xf32> to vector<1x32xf32>
    %c0_118 = arith.constant 0 : index
    %c0_119 = arith.constant 0 : index
    %c0_120 = arith.constant 0 : index
    %214 = vector.load %arg18[%c0_118, %c0_119, %c0_120] : memref<1x1x32xf32, #tpu.memory_space<vmem>>, vector<1x1x32xf32>
    %215 = vector.shape_cast %214 : vector<1x1x32xf32> to vector<1x32xf32>
    %cst_121 = arith.constant dense<0.000000e+00> : vector<8xf32>
    %216 = vector.multi_reduction <add>, %211, %cst_121 [1] : vector<8x32xf32> to vector<8xf32>
    %217 = vector.shape_cast %216 : vector<8xf32> to vector<8x1xf32>
    %cst_122 = arith.constant 3.200000e+01 : f32
    %218 = vector.broadcast %cst_122 : f32 to vector<8x1xf32>
    %219 = arith.divf %217, %218 : vector<8x1xf32>
    %220 = vector.broadcast %219 : vector<8x1xf32> to vector<8x32xf32>
    %221 = arith.subf %211, %220 : vector<8x32xf32>
    %222 = arith.mulf %221, %221 : vector<8x32xf32>
    %cst_123 = arith.constant dense<0.000000e+00> : vector<8xf32>
    %223 = vector.multi_reduction <add>, %222, %cst_123 [1] : vector<8x32xf32> to vector<8xf32>
    %224 = vector.shape_cast %223 : vector<8xf32> to vector<8x1xf32>
    %cst_124 = arith.constant 3.200000e+01 : f32
    %225 = vector.broadcast %cst_124 : f32 to vector<8x1xf32>
    %226 = arith.divf %224, %225 : vector<8x1xf32>
    %cst_125 = arith.constant 9.99999974E-6 : f32
    %227 = vector.broadcast %cst_125 : f32 to vector<8x1xf32>
    %228 = arith.addf %226, %227 : vector<8x1xf32>
    %229 = math.rsqrt %228 : vector<8x1xf32>
    %230 = vector.broadcast %229 : vector<8x1xf32> to vector<8x32xf32>
    %231 = arith.mulf %221, %230 : vector<8x32xf32>
    %232 = vector.broadcast %213 : vector<1x32xf32> to vector<8x32xf32>
    %233 = arith.mulf %231, %232 : vector<8x32xf32>
    %234 = vector.broadcast %215 : vector<1x32xf32> to vector<8x32xf32>
    %235 = arith.addf %233, %234 : vector<8x32xf32>
    %236 = arith.truncf %235 : vector<8x32xf32> to vector<8x32xbf16>
    %c0_126 = arith.constant 0 : index
    %c0_127 = arith.constant 0 : index
    %c0_128 = arith.constant 0 : index
    %237 = vector.load %arg19[%c0_126, %c0_127, %c0_128] : memref<1x32x64xbf16, #tpu.memory_space<vmem>>, vector<1x32x64xbf16>
    %238 = vector.shape_cast %237 : vector<1x32x64xbf16> to vector<32x64xbf16>
    %cst_129 = arith.constant dense<0.000000e+00> : vector<8x64xf32>
    %239 = tpu.matmul %236, %238, %cst_129 {dimension_numbers = #tpu.dot_dimension_numbers<[1], [0], [0], [1], [0, 0, 1, 1], [], []>} : vector<8x32xbf16>, vector<32x64xbf16>, vector<8x64xf32> -> vector<8x64xf32>
    %c0_130 = arith.constant 0 : index
    %c0_131 = arith.constant 0 : index
    %c0_132 = arith.constant 0 : index
    %240 = vector.load %arg20[%c0_130, %c0_131, %c0_132] : memref<1x1x64xf32, #tpu.memory_space<vmem>>, vector<1x1x64xf32>
    %241 = vector.shape_cast %240 : vector<1x1x64xf32> to vector<1x64xf32>
    %242 = vector.broadcast %241 : vector<1x64xf32> to vector<8x64xf32>
    %243 = arith.addf %239, %242 : vector<8x64xf32>
    %cst_133 = arith.constant 0.000000e+00 : f32
    %244 = vector.broadcast %cst_133 : f32 to vector<8x64xf32>
    %245 = arith.maximumf %243, %244 : vector<8x64xf32>
    %246 = arith.truncf %245 : vector<8x64xf32> to vector<8x64xbf16>
    %c0_134 = arith.constant 0 : index
    %c0_135 = arith.constant 0 : index
    %c0_136 = arith.constant 0 : index
    %247 = vector.load %arg21[%c0_134, %c0_135, %c0_136] : memref<1x64x32xbf16, #tpu.memory_space<vmem>>, vector<1x64x32xbf16>
    %248 = vector.shape_cast %247 : vector<1x64x32xbf16> to vector<64x32xbf16>
    %cst_137 = arith.constant dense<0.000000e+00> : vector<8x32xf32>
    %249 = tpu.matmul %246, %248, %cst_137 {dimension_numbers = #tpu.dot_dimension_numbers<[1], [0], [0], [1], [0, 0, 1, 1], [], []>} : vector<8x64xbf16>, vector<64x32xbf16>, vector<8x32xf32> -> vector<8x32xf32>
    %c0_138 = arith.constant 0 : index
    %c0_139 = arith.constant 0 : index
    %c0_140 = arith.constant 0 : index
    %250 = vector.load %arg22[%c0_138, %c0_139, %c0_140] : memref<1x1x32xf32, #tpu.memory_space<vmem>>, vector<1x1x32xf32>
    %251 = vector.shape_cast %250 : vector<1x1x32xf32> to vector<1x32xf32>
    %252 = vector.broadcast %251 : vector<1x32xf32> to vector<8x32xf32>
    %253 = arith.addf %249, %252 : vector<8x32xf32>
    %254 = arith.addf %235, %253 : vector<8x32xf32>
    %c0_141 = arith.constant 0 : index
    %c0_142 = arith.constant 0 : index
    %c0_143 = arith.constant 0 : index
    %255 = vector.load %arg23[%c0_141, %c0_142, %c0_143] : memref<1x1x32xf32, #tpu.memory_space<vmem>>, vector<1x1x32xf32>
    %256 = vector.shape_cast %255 : vector<1x1x32xf32> to vector<1x32xf32>
    %c0_144 = arith.constant 0 : index
    %c0_145 = arith.constant 0 : index
    %c0_146 = arith.constant 0 : index
    %257 = vector.load %arg24[%c0_144, %c0_145, %c0_146] : memref<1x1x32xf32, #tpu.memory_space<vmem>>, vector<1x1x32xf32>
    %258 = vector.shape_cast %257 : vector<1x1x32xf32> to vector<1x32xf32>
    %cst_147 = arith.constant dense<0.000000e+00> : vector<8xf32>
    %259 = vector.multi_reduction <add>, %254, %cst_147 [1] : vector<8x32xf32> to vector<8xf32>
    %260 = vector.shape_cast %259 : vector<8xf32> to vector<8x1xf32>
    %cst_148 = arith.constant 3.200000e+01 : f32
    %261 = vector.broadcast %cst_148 : f32 to vector<8x1xf32>
    %262 = arith.divf %260, %261 : vector<8x1xf32>
    %263 = vector.broadcast %262 : vector<8x1xf32> to vector<8x32xf32>
    %264 = arith.subf %254, %263 : vector<8x32xf32>
    %265 = arith.mulf %264, %264 : vector<8x32xf32>
    %cst_149 = arith.constant dense<0.000000e+00> : vector<8xf32>
    %266 = vector.multi_reduction <add>, %265, %cst_149 [1] : vector<8x32xf32> to vector<8xf32>
    %267 = vector.shape_cast %266 : vector<8xf32> to vector<8x1xf32>
    %cst_150 = arith.constant 3.200000e+01 : f32
    %268 = vector.broadcast %cst_150 : f32 to vector<8x1xf32>
    %269 = arith.divf %267, %268 : vector<8x1xf32>
    %cst_151 = arith.constant 9.99999974E-6 : f32
    %270 = vector.broadcast %cst_151 : f32 to vector<8x1xf32>
    %271 = arith.addf %269, %270 : vector<8x1xf32>
    %272 = math.rsqrt %271 : vector<8x1xf32>
    %273 = vector.broadcast %272 : vector<8x1xf32> to vector<8x32xf32>
    %274 = arith.mulf %264, %273 : vector<8x32xf32>
    %275 = vector.broadcast %256 : vector<1x32xf32> to vector<8x32xf32>
    %276 = arith.mulf %274, %275 : vector<8x32xf32>
    %277 = vector.broadcast %258 : vector<1x32xf32> to vector<8x32xf32>
    %278 = arith.addf %276, %277 : vector<8x32xf32>
    %c0_152 = arith.constant 0 : index
    %c0_153 = arith.constant 0 : index
    %279 = vector.load %arg27[%c0_152, %c0_153] : memref<8x32xf32, #tpu.memory_space<vmem>>, vector<8x32xf32>
    tpu.vector_store %arg27[%c0_152, %c0_153], %278 {strides = array<i32>} : memref<8x32xf32, #tpu.memory_space<vmem>>, vector<8x32xf32>,
    %c0_154 = arith.constant 0 : index
    %c0_155 = arith.constant 0 : index
    %280 = vector.load %arg28[%c0_154, %c0_155] : memref<8x32xf32, #tpu.memory_space<vmem>>, vector<8x32xf32>
    %281 = arith.addf %280, %278 : vector<8x32xf32>
    %c0_156 = arith.constant 0 : index
    %c0_157 = arith.constant 0 : index
    %282 = vector.load %arg28[%c0_156, %c0_157] : memref<8x32xf32, #tpu.memory_space<vmem>>, vector<8x32xf32>
    tpu.vector_store %arg28[%c0_156, %c0_157], %281 {strides = array<i32>} : memref<8x32xf32, #tpu.memory_space<vmem>>, vector<8x32xf32>,
    %c1_i32 = arith.constant 1 : i32
    %283 = arith.cmpi eq, %arg1, %c1_i32 : i32
    %284 = arith.extui %283 : i1 to i32
    %c0_i32_158 = arith.constant 0 : i32
    %285 = arith.cmpi ne, %284, %c0_i32_158 : i32
    scf.if %285 {
      %c0_159 = arith.constant 0 : index
      %c0_160 = arith.constant 0 : index
      %286 = vector.load %arg28[%c0_159, %c0_160] : memref<8x32xf32, #tpu.memory_space<vmem>>, vector<8x32xf32>
      %cst_161 = arith.constant 5.000000e-01 : f32
      %287 = vector.broadcast %cst_161 : f32 to vector<8x32xf32>
      %288 = arith.mulf %286, %287 : vector<8x32xf32>
      %c0_162 = arith.constant 0 : index
      %c0_163 = arith.constant 0 : index
      %c0_164 = arith.constant 0 : index
      %289 = vector.load %arg25[%c0_162, %c0_163, %c0_164] : memref<1x8x32xf32, #tpu.memory_space<vmem>>, vector<1x8x32xf32>
      %290 = vector.shape_cast %289 : vector<1x8x32xf32> to vector<8x32xf32>
      %291 = vector.shape_cast %288 : vector<8x32xf32> to vector<1x8x32xf32>
      tpu.vector_store %arg25[%c0_162, %c0_163, %c0_164], %291 {strides = array<i32>} : memref<1x8x32xf32, #tpu.memory_space<vmem>>, vector<1x8x32xf32>,
    } else {
    }
    return
  }
  func.func @transform_0(%arg0: i32, %arg1: i32) -> (i32, i32) {
    %c0_i32 = arith.constant 0 : i32
    %c0_i32_0 = arith.constant 0 : i32
    %c0_i32_1 = arith.constant 0 : i32
    return %c0_i32, %c0_i32_0 : i32, i32
  }
  func.func @transform_1(%arg0: i32, %arg1: i32) -> (i32, i32, i32) {
    %c0_i32 = arith.constant 0 : i32
    %c0_i32_0 = arith.constant 0 : i32
    %c0_i32_1 = arith.constant 0 : i32
    return %arg0, %c0_i32, %c0_i32_0 : i32, i32, i32
  }
  func.func @transform_2(%arg0: i32, %arg1: i32) -> (i32, i32, i32) {
    %c0_i32 = arith.constant 0 : i32
    %c0_i32_0 = arith.constant 0 : i32
    %c0_i32_1 = arith.constant 0 : i32
    return %arg0, %c0_i32, %c0_i32_0 : i32, i32, i32
  }
  func.func @transform_3(%arg0: i32, %arg1: i32) -> (i32, i32, i32, i32) {
    %c0_i32 = arith.constant 0 : i32
    %c0_i32_0 = arith.constant 0 : i32
    %c0_i32_1 = arith.constant 0 : i32
    %c0_i32_2 = arith.constant 0 : i32
    return %arg1, %c0_i32, %c0_i32_0, %c0_i32_1 : i32, i32, i32, i32
  }
  func.func @transform_4(%arg0: i32, %arg1: i32) -> (i32, i32, i32, i32) {
    %c0_i32 = arith.constant 0 : i32
    %c0_i32_0 = arith.constant 0 : i32
    %c0_i32_1 = arith.constant 0 : i32
    %c0_i32_2 = arith.constant 0 : i32
    return %arg1, %c0_i32, %c0_i32_0, %c0_i32_1 : i32, i32, i32, i32
  }
  func.func @transform_5(%arg0: i32, %arg1: i32) -> (i32, i32, i32, i32) {
    %c0_i32 = arith.constant 0 : i32
    %c0_i32_0 = arith.constant 0 : i32
    %c0_i32_1 = arith.constant 0 : i32
    %c0_i32_2 = arith.constant 0 : i32
    return %arg1, %c0_i32, %c0_i32_0, %c0_i32_1 : i32, i32, i32, i32
  }
  func.func @transform_6(%arg0: i32, %arg1: i32) -> (i32, i32, i32, i32) {
    %c0_i32 = arith.constant 0 : i32
    %c0_i32_0 = arith.constant 0 : i32
    %c0_i32_1 = arith.constant 0 : i32
    %c0_i32_2 = arith.constant 0 : i32
    return %arg1, %c0_i32, %c0_i32_0, %c0_i32_1 : i32, i32, i32, i32
  }
  func.func @transform_7(%arg0: i32, %arg1: i32) -> (i32, i32, i32) {
    %c0_i32 = arith.constant 0 : i32
    %c0_i32_0 = arith.constant 0 : i32
    %c0_i32_1 = arith.constant 0 : i32
    return %arg1, %c0_i32, %c0_i32_0 : i32, i32, i32
  }
  func.func @transform_8(%arg0: i32, %arg1: i32) -> (i32, i32, i32) {
    %c0_i32 = arith.constant 0 : i32
    %c0_i32_0 = arith.constant 0 : i32
    %c0_i32_1 = arith.constant 0 : i32
    return %arg1, %c0_i32, %c0_i32_0 : i32, i32, i32
  }
  func.func @transform_9(%arg0: i32, %arg1: i32) -> (i32, i32, i32) {
    %c0_i32 = arith.constant 0 : i32
    %c0_i32_0 = arith.constant 0 : i32
    %c0_i32_1 = arith.constant 0 : i32
    return %arg1, %c0_i32, %c0_i32_0 : i32, i32, i32
  }
  func.func @transform_10(%arg0: i32, %arg1: i32) -> (i32, i32, i32) {
    %c0_i32 = arith.constant 0 : i32
    %c0_i32_0 = arith.constant 0 : i32
    %c0_i32_1 = arith.constant 0 : i32
    return %arg1, %c0_i32, %c0_i32_0 : i32, i32, i32
  }
  func.func @transform_11(%arg0: i32, %arg1: i32) -> (i32, i32, i32) {
    %c0_i32 = arith.constant 0 : i32
    %c0_i32_0 = arith.constant 0 : i32
    %c0_i32_1 = arith.constant 0 : i32
    return %arg1, %c0_i32, %c0_i32_0 : i32, i32, i32
  }
  func.func @transform_12(%arg0: i32, %arg1: i32) -> (i32, i32, i32) {
    %c0_i32 = arith.constant 0 : i32
    %c0_i32_0 = arith.constant 0 : i32
    %c0_i32_1 = arith.constant 0 : i32
    return %arg1, %c0_i32, %c0_i32_0 : i32, i32, i32
  }
  func.func @transform_13(%arg0: i32, %arg1: i32) -> (i32, i32, i32) {
    %c0_i32 = arith.constant 0 : i32
    %c0_i32_0 = arith.constant 0 : i32
    %c0_i32_1 = arith.constant 0 : i32
    return %arg1, %c0_i32, %c0_i32_0 : i32, i32, i32
  }
  func.func @transform_14(%arg0: i32, %arg1: i32) -> (i32, i32, i32) {
    %c0_i32 = arith.constant 0 : i32
    %c0_i32_0 = arith.constant 0 : i32
    %c0_i32_1 = arith.constant 0 : i32
    return %arg1, %c0_i32, %c0_i32_0 : i32, i32, i32
  }
  func.func @transform_15(%arg0: i32, %arg1: i32) -> (i32, i32, i32) {
    %c0_i32 = arith.constant 0 : i32
    %c0_i32_0 = arith.constant 0 : i32
    %c0_i32_1 = arith.constant 0 : i32
    return %arg1, %c0_i32, %c0_i32_0 : i32, i32, i32
  }
  func.func @transform_16(%arg0: i32, %arg1: i32) -> (i32, i32, i32) {
    %c0_i32 = arith.constant 0 : i32
    %c0_i32_0 = arith.constant 0 : i32
    %c0_i32_1 = arith.constant 0 : i32
    return %arg1, %c0_i32, %c0_i32_0 : i32, i32, i32
  }
  func.func @transform_17(%arg0: i32, %arg1: i32) -> (i32, i32, i32) {
    %c0_i32 = arith.constant 0 : i32
    %c0_i32_0 = arith.constant 0 : i32
    %c0_i32_1 = arith.constant 0 : i32
    return %arg1, %c0_i32, %c0_i32_0 : i32, i32, i32
  }
  func.func @transform_18(%arg0: i32, %arg1: i32) -> (i32, i32, i32) {
    %c0_i32 = arith.constant 0 : i32
    %c0_i32_0 = arith.constant 0 : i32
    %c0_i32_1 = arith.constant 0 : i32
    return %arg1, %c0_i32, %c0_i32_0 : i32, i32, i32
  }
  func.func @transform_19(%arg0: i32, %arg1: i32) -> (i32, i32, i32) {
    %c0_i32 = arith.constant 0 : i32
    %c0_i32_0 = arith.constant 0 : i32
    %c0_i32_1 = arith.constant 0 : i32
    return %arg1, %c0_i32, %c0_i32_0 : i32, i32, i32
  }
  func.func @transform_20(%arg0: i32, %arg1: i32) -> (i32, i32, i32) {
    %c0_i32 = arith.constant 0 : i32
    %c0_i32_0 = arith.constant 0 : i32
    %c0_i32_1 = arith.constant 0 : i32
    return %arg1, %c0_i32, %c0_i32_0 : i32, i32, i32
  }
  func.func @transform_21(%arg0: i32, %arg1: i32) -> (i32, i32, i32) {
    %c0_i32 = arith.constant 0 : i32
    %c0_i32_0 = arith.constant 0 : i32
    %c0_i32_1 = arith.constant 0 : i32
    return %arg1, %c0_i32, %c0_i32_0 : i32, i32, i32
  }
  func.func @transform_22(%arg0: i32, %arg1: i32) -> (i32, i32, i32) {
    %c0_i32 = arith.constant 0 : i32
    %c0_i32_0 = arith.constant 0 : i32
    %c0_i32_1 = arith.constant 0 : i32
    return %arg1, %c0_i32, %c0_i32_0 : i32, i32, i32
  }
  func.func @transform_23(%arg0: i32, %arg1: i32) -> (i32, i32, i32) {
    %c0_i32 = arith.constant 0 : i32
    %c0_i32_0 = arith.constant 0 : i32
    %c0_i32_1 = arith.constant 0 : i32
    return %arg0, %c0_i32, %c0_i32_0 : i32, i32, i32
  }
  func.func @transform_24(%arg0: i32, %arg1: i32) -> (i32, i32, i32, i32, i32) {
    %c0_i32 = arith.constant 0 : i32
    %c0_i32_0 = arith.constant 0 : i32
    %c0_i32_1 = arith.constant 0 : i32
    %c0_i32_2 = arith.constant 0 : i32
    return %arg0, %arg1, %c0_i32, %c0_i32_0, %c0_i32_1 : i32, i32, i32, i32, i32
  }
}

</mosaic_0001>

<llo_original>
// kernel: tpu_custom_call.1
$region0: #{tpu_custom_call.1}
  #allocation0 [shape = 'u32[]', space=smem, size = 0x4, offset = 0x4, fixed_abs, tag = 'smem constant byte address 0x4 - core index']
  #allocation1 [shape = 'u32[144,128]{1,0:T(1,128)}', space=vmem, size = 0x12000, scoped, tag = 'internal scratch']
  #allocation2 [shape = 'f32[8,32]{1,0:T(8,128)}', space=vmem, size = 0x1000, scoped, tag = 'scratch operand']
  #allocation3 [shape = 'f32[8,32]{1,0:T(8,128)}', space=vmem, size = 0x1000, scoped, tag = 'scratch operand']
  %s0 = inlined_call_operand.vmem [shape: f32[32,32], index: 0, kind: input, shape index: {}]
  %s1 = inlined_call_operand.vmem [shape: f32[2,8,32], index: 1, kind: input, shape index: {}]
  %s2 = inlined_call_operand.vmem [shape: f32[2,1,8], index: 2, kind: input, shape index: {}]
  %s3 = inlined_call_operand.vmem [shape: bf16[2,3,96,32], index: 3, kind: input, shape index: {}]
  %s4 = inlined_call_operand.vmem [shape: f32[2,3,1,32], index: 4, kind: input, shape index: {}]
  %s5 = inlined_call_operand.vmem [shape: f32[2,3,1,32], index: 5, kind: input, shape index: {}]
  %s6 = inlined_call_operand.vmem [shape: f32[2,3,1,32], index: 6, kind: input, shape index: {}]
  %s7 = inlined_call_operand.vmem [shape: bf16[2,32,32], index: 7, kind: input, shape index: {}]
  %s8 = inlined_call_operand.vmem [shape: bf16[2,32,32], index: 8, kind: input, shape index: {}]
  %s9 = inlined_call_operand.vmem [shape: bf16[2,32,32], index: 9, kind: input, shape index: {}]
  %s10 = inlined_call_operand.vmem [shape: bf16[2,32,32], index: 10, kind: input, shape index: {}]
  %s11 = inlined_call_operand.vmem [shape: f32[2,1,32], index: 11, kind: input, shape index: {}]
  %s12 = inlined_call_operand.vmem [shape: f32[2,1,32], index: 12, kind: input, shape index: {}]
  %s13 = inlined_call_operand.vmem [shape: f32[2,1,32], index: 13, kind: input, shape index: {}]
  %s14 = inlined_call_operand.vmem [shape: f32[2,1,32], index: 14, kind: input, shape index: {}]
  %s15 = inlined_call_operand.vmem [shape: f32[2,1,32], index: 15, kind: input, shape index: {}]
  %s16 = inlined_call_operand.vmem [shape: f32[2,1,32], index: 16, kind: input, shape index: {}]
  %s17 = inlined_call_operand.vmem [shape: bf16[2,32,64], index: 17, kind: input, shape index: {}]
  %s18 = inlined_call_operand.vmem [shape: f32[2,1,64], index: 18, kind: input, shape index: {}]
  %s19 = inlined_call_operand.vmem [shape: bf16[2,64,32], index: 19, kind: input, shape index: {}]
  %s20 = inlined_call_operand.vmem [shape: f32[2,1,32], index: 20, kind: input, shape index: {}]
  %s21 = inlined_call_operand.vmem [shape: f32[2,1,32], index: 21, kind: input, shape index: {}]
  %s22 = inlined_call_operand.vmem [shape: f32[2,1,32], index: 22, kind: input, shape index: {}]
  %s23 = inlined_call_operand.hbm [shape: f32[2,8,32], index: 23, kind: output, shape index: {0}]
  %s24 = inlined_call_operand.hbm [shape: f32[2,2,4,8,8], index: 24, kind: output, shape index: {1}]
  %25 = xla_tuple %s23, %s24
  %s26 = sld [smem:[#allocation0]]
  $region141: #{tpu_custom_call.1} parent=0
    _
  %s28 = ssub.s32 1, %s26
  %s29 = scalar_select 0, %s28, %s26
  $region1: #{tpu_custom_call.1} parent=0
    #allocation4 [shape = 'u8[8192]{0}', space=vmem, size = 0x2000, scoped, tag = 'output window, operand 0']
    #allocation5 [shape = 's32[2]{0}', space=sflag, size = 0x8, scoped, tag = 'scoped memory for tpu_custom_call.1']
    #allocation6 [shape = 'u8[32768]{0}', space=vmem, size = 0x8000, scoped, tag = 'output window, operand 1']
    #allocation7 [shape = 's32[2]{0}', space=sflag, size = 0x8, scoped, tag = 'scoped memory for tpu_custom_call.1']
    %30 = vsyncpa [#allocation5], 0
    %s31 = scalar_lea.sflag [#allocation5], 1
    %32 = vsyncpa %s31, 0
    %33 = vsyncpa [#allocation7], 0
    %s34 = scalar_lea.sflag [#allocation7], 1
    %35 = vsyncpa %s34, 0
    loop: start=0, step=1, limit=6
    $region2: #{tpu_custom_call.1} parent=1 // loop_pre_header
      _
    $region3: #{tpu_custom_call.1} parent=1 // loop_header
      %s37 = sphi 0, %s41
      %p38 = scmp.ge.s32.totalorder %s37, 6
      %s44 = sphi 0, %s56
      %s45 = sphi 0, %s52
      %s46 = sphi 0, %s44
      %s47 = sphi 0, %s45
      %s48 = sphi 0, %s46
      %s49 = sphi 0, %s47
      %s57 = sphi 0, %s57
      %s59 = sphi 0, %s57
      %s60 = sphi 0, %s59
      %s74 = sphi 0, %s60
      %s80 = sphi 0, %s82
      %s83 = sphi 0, %s80
      %s84 = sphi 0, %s83
      %s100 = sphi 0, %s84
      %s106 = sphi 0, %s108
      %s109 = sphi 0, %s106
      %s110 = sphi 0, %s109
      %s126 = sphi 0, %s110
      %s132 = sphi 0, %s134
      %s135 = sphi 0, %s132
      %s136 = sphi 0, %s135
      %s152 = sphi 0, %s136
      %s158 = sphi 0, %s160
      %s161 = sphi 0, %s158
      %s162 = sphi 0, %s161
      %s178 = sphi 0, %s162
      %s184 = sphi 0, %s186
      %s187 = sphi 0, %s184
      %s188 = sphi 0, %s187
      %s204 = sphi 0, %s188
      %s210 = sphi 0, %s212
      %s213 = sphi 0, %s210
      %s214 = sphi 0, %s213
      %s230 = sphi 0, %s214
      %s236 = sphi 0, %s238
      %s239 = sphi 0, %s236
      %s240 = sphi 0, %s239
      %s256 = sphi 0, %s240
      %s262 = sphi 0, %s264
      %s265 = sphi 0, %s262
      %s266 = sphi 0, %s265
      %s282 = sphi 0, %s266
      %s288 = sphi 0, %s290
      %s291 = sphi 0, %s288
      %s292 = sphi 0, %s291
      %s308 = sphi 0, %s292
      %s314 = sphi 0, %s316
      %s317 = sphi 0, %s314
      %s318 = sphi 0, %s317
      %s334 = sphi 0, %s318
      %s340 = sphi 0, %s342
      %s343 = sphi 0, %s340
      %s344 = sphi 0, %s343
      %s360 = sphi 0, %s344
      %s366 = sphi 0, %s368
      %s369 = sphi 0, %s366
      %s370 = sphi 0, %s369
      %s386 = sphi 0, %s370
      %s392 = sphi 0, %s394
      %s395 = sphi 0, %s392
      %s396 = sphi 0, %s395
      %s412 = sphi 0, %s396
      %s418 = sphi 0, %s420
      %s421 = sphi 0, %s418
      %s422 = sphi 0, %s421
      %s438 = sphi 0, %s422
      %s444 = sphi 0, %s446
      %s447 = sphi 0, %s444
      %s448 = sphi 0, %s447
      %s464 = sphi 0, %s448
      %s470 = sphi 0, %s472
      %s473 = sphi 0, %s470
      %s474 = sphi 0, %s473
      %s490 = sphi 0, %s474
      %s496 = sphi 0, %s498
      %s499 = sphi 0, %s496
      %s500 = sphi 0, %s499
      %s516 = sphi 0, %s500
      %s522 = sphi 0, %s524
      %s525 = sphi 0, %s522
      %s526 = sphi 0, %s525
      %s542 = sphi 0, %s526
      %s548 = sphi 0, %s550
      %s551 = sphi 0, %s548
      %s552 = sphi 0, %s551
      %s568 = sphi 0, %s552
      %s574 = sphi 0, %s576
      %s577 = sphi 0, %s574
      %s578 = sphi 0, %s577
      %s594 = sphi 0, %s578
      %s600 = sphi 0, %s602
      %s603 = sphi 0, %s600
      %s604 = sphi 0, %s603
      %s620 = sphi 0, %s604
      %s626 = sphi 0, %s628
      %s629 = sphi 0, %s626
      %s630 = sphi 0, %s629
      %s646 = sphi 0, %s630
      %s652 = sphi 0, %s654
      %s655 = sphi 0, %s652
      %s656 = sphi 0, %s655
      %s672 = sphi 0, %s656
      %s680 = sphi 0, %s682
      %s683 = sphi 0, %s680
      %s684 = sphi 0, %s683
      %s700 = sphi 0, %s684
    $region4: #{tpu_custom_call.1} parent=1 // loop_header_branch
      %40 = sbr.rel (%p38) target = $region8
    $region5: #{tpu_custom_call.1} parent=1 // loop_body
      %s42 = ssub.s32 %s37, 1
      %s43 = ssub.s32 %s37, 2
      %s50 = sadd.s32 1, %s45
      %p51 = scmp.ge.s32.totalorder %s50, 2
      %s52 = scalar_select %p51, 0, %s50
      %s53 = sadd.s32 1, %s44
      %s54 = scalar_select %p51, %s53, %s44
      %p55 = scmp.ge.s32.totalorder %s54, 2
      %s56 = scalar_select %p55, 0, %s54
      %s58 = sadd.s32 %s57, 1
      %p61 = scmp.eq.s32.totalorder %s37, 3
      %p62 = scmp.ne.s32.totalorder %s57, %s59
      %p63 = scmp.eq.s32.totalorder %s37, 0
      %p64 = por %p62, %p63
      %p65 = scmp.ne.s32.totalorder %s57, %s59
      %p66 = scmp.eq.s32.totalorder %s42, 3
      %p67 = por %p65, %p66
      %p68 = scmp.ne.s32.totalorder %s59, %s60
      %p69 = scmp.eq.s32.totalorder %s42, 0
      %p70 = por %p68, %p69
      %p71 = scmp.ne.s32.totalorder %s59, %s60
      %p72 = scmp.eq.s32.totalorder %s43, 3
      %p73 = por %p71, %p72
      %p75 = scmp.ne.s32.totalorder %s60, %s74
      %p76 = scmp.eq.s32.totalorder %s43, 0
      %p77 = por %p75, %p76
      %s78 = ssub.s32 %s44, %s56
      %p79 = scmp.eq.s32.totalorder %s78, 0
      %s81 = sadd.s32 %s80, 1
      %s82 = scalar_select %p79, %s80, %s81
      %p85 = pneg %p79
      %p86 = scmp.eq.s32.totalorder %s37, 3
      %p87 = por %p85, %p86
      %p88 = scmp.ne.s32.totalorder %s80, %s83
      %p89 = scmp.eq.s32.totalorder %s37, 0
      %p90 = por %p88, %p89
      %p91 = scmp.ne.s32.totalorder %s80, %s83
      %p92 = scmp.eq.s32.totalorder %s42, 3
      %p93 = por %p91, %p92
      %p94 = scmp.ne.s32.totalorder %s83, %s84
      %p95 = scmp.eq.s32.totalorder %s42, 0
      %p96 = por %p94, %p95
      %p97 = scmp.ne.s32.totalorder %s83, %s84
      %p98 = scmp.eq.s32.totalorder %s43, 3
      %p99 = por %p97, %p98
      %p101 = scmp.ne.s32.totalorder %s84, %s100
      %p102 = scmp.eq.s32.totalorder %s43, 0
      %p103 = por %p101, %p102
      %s104 = ssub.s32 %s44, %s56
      %p105 = scmp.eq.s32.totalorder %s104, 0
      %s107 = sadd.s32 %s106, 1
      %s108 = scalar_select %p105, %s106, %s107
      %p111 = pneg %p105
      %p112 = scmp.eq.s32.totalorder %s37, 3
      %p113 = por %p111, %p112
      %p114 = scmp.ne.s32.totalorder %s106, %s109
      %p115 = scmp.eq.s32.totalorder %s37, 0
      %p116 = por %p114, %p115
      %p117 = scmp.ne.s32.totalorder %s106, %s109
      %p118 = scmp.eq.s32.totalorder %s42, 3
      %p119 = por %p117, %p118
      %p120 = scmp.ne.s32.totalorder %s109, %s110
      %p121 = scmp.eq.s32.totalorder %s42, 0
      %p122 = por %p120, %p121
      %p123 = scmp.ne.s32.totalorder %s109, %s110
      %p124 = scmp.eq.s32.totalorder %s43, 3
      %p125 = por %p123, %p124
      %p127 = scmp.ne.s32.totalorder %s110, %s126
      %p128 = scmp.eq.s32.totalorder %s43, 0
      %p129 = por %p127, %p128
      %s130 = ssub.s32 %s45, %s52
      %p131 = scmp.eq.s32.totalorder %s130, 0
      %s133 = sadd.s32 %s132, 1
      %s134 = scalar_select %p131, %s132, %s133
      %p137 = pneg %p131
      %p138 = scmp.eq.s32.totalorder %s37, 3
      %p139 = por %p137, %p138
      %p140 = scmp.ne.s32.totalorder %s132, %s135
      %p141 = scmp.eq.s32.totalorder %s37, 0
      %p142 = por %p140, %p141
      %p143 = scmp.ne.s32.totalorder %s132, %s135
      %p144 = scmp.eq.s32.totalorder %s42, 3
      %p145 = por %p143, %p144
      %p146 = scmp.ne.s32.totalorder %s135, %s136
      %p147 = scmp.eq.s32.totalorder %s42, 0
      %p148 = por %p146, %p147
      %p149 = scmp.ne.s32.totalorder %s135, %s136
      %p150 = scmp.eq.s32.totalorder %s43, 3
      %p151 = por %p149, %p150
      %p153 = scmp.ne.s32.totalorder %s136, %s152
      %p154 = scmp.eq.s32.totalorder %s43, 0
      %p155 = por %p153, %p154
      %s156 = ssub.s32 %s45, %s52
      %p157 = scmp.eq.s32.totalorder %s156, 0
      %s159 = sadd.s32 %s158, 1
      %s160 = scalar_select %p157, %s158, %s159
      %p163 = pneg %p157
      %p164 = scmp.eq.s32.totalorder %s37, 3
      %p165 = por %p163, %p164
      %p166 = scmp.ne.s32.totalorder %s158, %s161
      %p167 = scmp.eq.s32.totalorder %s37, 0
      %p168 = por %p166, %p167
      %p169 = scmp.ne.s32.totalorder %s158, %s161
      %p170 = scmp.eq.s32.totalorder %s42, 3
      %p171 = por %p169, %p170
      %p172 = scmp.ne.s32.totalorder %s161, %s162
      %p173 = scmp.eq.s32.totalorder %s42, 0
      %p174 = por %p172, %p173
      %p175 = scmp.ne.s32.totalorder %s161, %s162
      %p176 = scmp.eq.s32.totalorder %s43, 3
      %p177 = por %p175, %p176
      %p179 = scmp.ne.s32.totalorder %s162, %s178
      %p180 = scmp.eq.s32.totalorder %s43, 0
      %p181 = por %p179, %p180
      %s182 = ssub.s32 %s45, %s52
      %p183 = scmp.eq.s32.totalorder %s182, 0
      %s185 = sadd.s32 %s184, 1
      %s186 = scalar_select %p183, %s184, %s185
      %p189 = pneg %p183
      %p190 = scmp.eq.s32.totalorder %s37, 3
      %p191 = por %p189, %p190
      %p192 = scmp.ne.s32.totalorder %s184, %s187
      %p193 = scmp.eq.s32.totalorder %s37, 0
      %p194 = por %p192, %p193
      %p195 = scmp.ne.s32.totalorder %s184, %s187
      %p196 = scmp.eq.s32.totalorder %s42, 3
      %p197 = por %p195, %p196
      %p198 = scmp.ne.s32.totalorder %s187, %s188
      %p199 = scmp.eq.s32.totalorder %s42, 0
      %p200 = por %p198, %p199
      %p201 = scmp.ne.s32.totalorder %s187, %s188
      %p202 = scmp.eq.s32.totalorder %s43, 3
      %p203 = por %p201, %p202
      %p205 = scmp.ne.s32.totalorder %s188, %s204
      %p206 = scmp.eq.s32.totalorder %s43, 0
      %p207 = por %p205, %p206
      %s208 = ssub.s32 %s45, %s52
      %p209 = scmp.eq.s32.totalorder %s208, 0
      %s211 = sadd.s32 %s210, 1
      %s212 = scalar_select %p209, %s210, %s211
      %p215 = pneg %p209
      %p216 = scmp.eq.s32.totalorder %s37, 3
      %p217 = por %p215, %p216
      %p218 = scmp.ne.s32.totalorder %s210, %s213
      %p219 = scmp.eq.s32.totalorder %s37, 0
      %p220 = por %p218, %p219
      %p221 = scmp.ne.s32.totalorder %s210, %s213
      %p222 = scmp.eq.s32.totalorder %s42, 3
      %p223 = por %p221, %p222
      %p224 = scmp.ne.s32.totalorder %s213, %s214
      %p225 = scmp.eq.s32.totalorder %s42, 0
      %p226 = por %p224, %p225
      %p227 = scmp.ne.s32.totalorder %s213, %s214
      %p228 = scmp.eq.s32.totalorder %s43, 3
      %p229 = por %p227, %p228
      %p231 = scmp.ne.s32.totalorder %s214, %s230
      %p232 = scmp.eq.s32.totalorder %s43, 0
      %p233 = por %p231, %p232
      %s234 = ssub.s32 %s45, %s52
      %p235 = scmp.eq.s32.totalorder %s234, 0
      %s237 = sadd.s32 %s236, 1
      %s238 = scalar_select %p235, %s236, %s237
      %p241 = pneg %p235
      %p242 = scmp.eq.s32.totalorder %s37, 3
      %p243 = por %p241, %p242
      %p244 = scmp.ne.s32.totalorder %s236, %s239
      %p245 = scmp.eq.s32.totalorder %s37, 0
      %p246 = por %p244, %p245
      %p247 = scmp.ne.s32.totalorder %s236, %s239
      %p248 = scmp.eq.s32.totalorder %s42, 3
      %p249 = por %p247, %p248
      %p250 = scmp.ne.s32.totalorder %s239, %s240
      %p251 = scmp.eq.s32.totalorder %s42, 0
      %p252 = por %p250, %p251
      %p253 = scmp.ne.s32.totalorder %s239, %s240
      %p254 = scmp.eq.s32.totalorder %s43, 3
      %p255 = por %p253, %p254
      %p257 = scmp.ne.s32.totalorder %s240, %s256
      %p258 = scmp.eq.s32.totalorder %s43, 0
      %p259 = por %p257, %p258
      %s260 = ssub.s32 %s45, %s52
      %p261 = scmp.eq.s32.totalorder %s260, 0
      %s263 = sadd.s32 %s262, 1
      %s264 = scalar_select %p261, %s262, %s263
      %p267 = pneg %p261
      %p268 = scmp.eq.s32.totalorder %s37, 3
      %p269 = por %p267, %p268
      %p270 = scmp.ne.s32.totalorder %s262, %s265
      %p271 = scmp.eq.s32.totalorder %s37, 0
      %p272 = por %p270, %p271
      %p273 = scmp.ne.s32.totalorder %s262, %s265
      %p274 = scmp.eq.s32.totalorder %s42, 3
      %p275 = por %p273, %p274
      %p276 = scmp.ne.s32.totalorder %s265, %s266
      %p277 = scmp.eq.s32.totalorder %s42, 0
      %p278 = por %p276, %p277
      %p279 = scmp.ne.s32.totalorder %s265, %s266
      %p280 = scmp.eq.s32.totalorder %s43, 3
      %p281 = por %p279, %p280
      %p283 = scmp.ne.s32.totalorder %s266, %s282
      %p284 = scmp.eq.s32.totalorder %s43, 0
      %p285 = por %p283, %p284
      %s286 = ssub.s32 %s45, %s52
      %p287 = scmp.eq.s32.totalorder %s286, 0
      %s289 = sadd.s32 %s288, 1
      %s290 = scalar_select %p287, %s288, %s289
      %p293 = pneg %p287
      %p294 = scmp.eq.s32.totalorder %s37, 3
      %p295 = por %p293, %p294
      %p296 = scmp.ne.s32.totalorder %s288, %s291
      %p297 = scmp.eq.s32.totalorder %s37, 0
      %p298 = por %p296, %p297
      %p299 = scmp.ne.s32.totalorder %s288, %s291
      %p300 = scmp.eq.s32.totalorder %s42, 3
      %p301 = por %p299, %p300
      %p302 = scmp.ne.s32.totalorder %s291, %s292
      %p303 = scmp.eq.s32.totalorder %s42, 0
      %p304 = por %p302, %p303
      %p305 = scmp.ne.s32.totalorder %s291, %s292
      %p306 = scmp.eq.s32.totalorder %s43, 3
      %p307 = por %p305, %p306
      %p309 = scmp.ne.s32.totalorder %s292, %s308
      %p310 = scmp.eq.s32.totalorder %s43, 0
      %p311 = por %p309, %p310
      %s312 = ssub.s32 %s45, %s52
      %p313 = scmp.eq.s32.totalorder %s312, 0
      %s315 = sadd.s32 %s314, 1
      %s316 = scalar_select %p313, %s314, %s315
      %p319 = pneg %p313
      %p320 = scmp.eq.s32.totalorder %s37, 3
      %p321 = por %p319, %p320
      %p322 = scmp.ne.s32.totalorder %s314, %s317
      %p323 = scmp.eq.s32.totalorder %s37, 0
      %p324 = por %p322, %p323
      %p325 = scmp.ne.s32.totalorder %s314, %s317
      %p326 = scmp.eq.s32.totalorder %s42, 3
      %p327 = por %p325, %p326
      %p328 = scmp.ne.s32.totalorder %s317, %s318
      %p329 = scmp.eq.s32.totalorder %s42, 0
      %p330 = por %p328, %p329
      %p331 = scmp.ne.s32.totalorder %s317, %s318
      %p332 = scmp.eq.s32.totalorder %s43, 3
      %p333 = por %p331, %p332
      %p335 = scmp.ne.s32.totalorder %s318, %s334
      %p336 = scmp.eq.s32.totalorder %s43, 0
      %p337 = por %p335, %p336
      %s338 = ssub.s32 %s45, %s52
      %p339 = scmp.eq.s32.totalorder %s338, 0
      %s341 = sadd.s32 %s340, 1
      %s342 = scalar_select %p339, %s340, %s341
      %p345 = pneg %p339
      %p346 = scmp.eq.s32.totalorder %s37, 3
      %p347 = por %p345, %p346
      %p348 = scmp.ne.s32.totalorder %s340, %s343
      %p349 = scmp.eq.s32.totalorder %s37, 0
      %p350 = por %p348, %p349
      %p351 = scmp.ne.s32.totalorder %s340, %s343
      %p352 = scmp.eq.s32.totalorder %s42, 3
      %p353 = por %p351, %p352
      %p354 = scmp.ne.s32.totalorder %s343, %s344
      %p355 = scmp.eq.s32.totalorder %s42, 0
      %p356 = por %p354, %p355
      %p357 = scmp.ne.s32.totalorder %s343, %s344
      %p358 = scmp.eq.s32.totalorder %s43, 3
      %p359 = por %p357, %p358
      %p361 = scmp.ne.s32.totalorder %s344, %s360
      %p362 = scmp.eq.s32.totalorder %s43, 0
      %p363 = por %p361, %p362
      %s364 = ssub.s32 %s45, %s52
      %p365 = scmp.eq.s32.totalorder %s364, 0
      %s367 = sadd.s32 %s366, 1
      %s368 = scalar_select %p365, %s366, %s367
      %p371 = pneg %p365
      %p372 = scmp.eq.s32.totalorder %s37, 3
      %p373 = por %p371, %p372
      %p374 = scmp.ne.s32.totalorder %s366, %s369
      %p375 = scmp.eq.s32.totalorder %s37, 0
      %p376 = por %p374, %p375
      %p377 = scmp.ne.s32.totalorder %s366, %s369
      %p378 = scmp.eq.s32.totalorder %s42, 3
      %p379 = por %p377, %p378
      %p380 = scmp.ne.s32.totalorder %s369, %s370
      %p381 = scmp.eq.s32.totalorder %s42, 0
      %p382 = por %p380, %p381
      %p383 = scmp.ne.s32.totalorder %s369, %s370
      %p384 = scmp.eq.s32.totalorder %s43, 3
      %p385 = por %p383, %p384
      %p387 = scmp.ne.s32.totalorder %s370, %s386
      %p388 = scmp.eq.s32.totalorder %s43, 0
      %p389 = por %p387, %p388
      %s390 = ssub.s32 %s45, %s52
      %p391 = scmp.eq.s32.totalorder %s390, 0
      %s393 = sadd.s32 %s392, 1
      %s394 = scalar_select %p391, %s392, %s393
      %p397 = pneg %p391
      %p398 = scmp.eq.s32.totalorder %s37, 3
      %p399 = por %p397, %p398
      %p400 = scmp.ne.s32.totalorder %s392, %s395
      %p401 = scmp.eq.s32.totalorder %s37, 0
      %p402 = por %p400, %p401
      %p403 = scmp.ne.s32.totalorder %s392, %s395
      %p404 = scmp.eq.s32.totalorder %s42, 3
      %p405 = por %p403, %p404
      %p406 = scmp.ne.s32.totalorder %s395, %s396
      %p407 = scmp.eq.s32.totalorder %s42, 0
      %p408 = por %p406, %p407
      %p409 = scmp.ne.s32.totalorder %s395, %s396
      %p410 = scmp.eq.s32.totalorder %s43, 3
      %p411 = por %p409, %p410
      %p413 = scmp.ne.s32.totalorder %s396, %s412
      %p414 = scmp.eq.s32.totalorder %s43, 0
      %p415 = por %p413, %p414
      %s416 = ssub.s32 %s45, %s52
      %p417 = scmp.eq.s32.totalorder %s416, 0
      %s419 = sadd.s32 %s418, 1
      %s420 = scalar_select %p417, %s418, %s419
      %p423 = pneg %p417
      %p424 = scmp.eq.s32.totalorder %s37, 3
      %p425 = por %p423, %p424
      %p426 = scmp.ne.s32.totalorder %s418, %s421
      %p427 = scmp.eq.s32.totalorder %s37, 0
      %p428 = por %p426, %p427
      %p429 = scmp.ne.s32.totalorder %s418, %s421
      %p430 = scmp.eq.s32.totalorder %s42, 3
      %p431 = por %p429, %p430
      %p432 = scmp.ne.s32.totalorder %s421, %s422
      %p433 = scmp.eq.s32.totalorder %s42, 0
      %p434 = por %p432, %p433
      %p435 = scmp.ne.s32.totalorder %s421, %s422
      %p436 = scmp.eq.s32.totalorder %s43, 3
      %p437 = por %p435, %p436
      %p439 = scmp.ne.s32.totalorder %s422, %s438
      %p440 = scmp.eq.s32.totalorder %s43, 0
      %p441 = por %p439, %p440
      %s442 = ssub.s32 %s45, %s52
      %p443 = scmp.eq.s32.totalorder %s442, 0
      %s445 = sadd.s32 %s444, 1
      %s446 = scalar_select %p443, %s444, %s445
      %p449 = pneg %p443
      %p450 = scmp.eq.s32.totalorder %s37, 3
      %p451 = por %p449, %p450
      %p452 = scmp.ne.s32.totalorder %s444, %s447
      %p453 = scmp.eq.s32.totalorder %s37, 0
      %p454 = por %p452, %p453
      %p455 = scmp.ne.s32.totalorder %s444, %s447
      %p456 = scmp.eq.s32.totalorder %s42, 3
      %p457 = por %p455, %p456
      %p458 = scmp.ne.s32.totalorder %s447, %s448
      %p459 = scmp.eq.s32.totalorder %s42, 0
      %p460 = por %p458, %p459
      %p461 = scmp.ne.s32.totalorder %s447, %s448
      %p462 = scmp.eq.s32.totalorder %s43, 3
      %p463 = por %p461, %p462
      %p465 = scmp.ne.s32.totalorder %s448, %s464
      %p466 = scmp.eq.s32.totalorder %s43, 0
      %p467 = por %p465, %p466
      %s468 = ssub.s32 %s45, %s52
      %p469 = scmp.eq.s32.totalorder %s468, 0
      %s471 = sadd.s32 %s470, 1
      %s472 = scalar_select %p469, %s470, %s471
      %p475 = pneg %p469
      %p476 = scmp.eq.s32.totalorder %s37, 3
      %p477 = por %p475, %p476
      %p478 = scmp.ne.s32.totalorder %s470, %s473
      %p479 = scmp.eq.s32.totalorder %s37, 0
      %p480 = por %p478, %p479
      %p481 = scmp.ne.s32.totalorder %s470, %s473
      %p482 = scmp.eq.s32.totalorder %s42, 3
      %p483 = por %p481, %p482
      %p484 = scmp.ne.s32.totalorder %s473, %s474
      %p485 = scmp.eq.s32.totalorder %s42, 0
      %p486 = por %p484, %p485
      %p487 = scmp.ne.s32.totalorder %s473, %s474
      %p488 = scmp.eq.s32.totalorder %s43, 3
      %p489 = por %p487, %p488
      %p491 = scmp.ne.s32.totalorder %s474, %s490
      %p492 = scmp.eq.s32.totalorder %s43, 0
      %p493 = por %p491, %p492
      %s494 = ssub.s32 %s45, %s52
      %p495 = scmp.eq.s32.totalorder %s494, 0
      %s497 = sadd.s32 %s496, 1
      %s498 = scalar_select %p495, %s496, %s497
      %p501 = pneg %p495
      %p502 = scmp.eq.s32.totalorder %s37, 3
      %p503 = por %p501, %p502
      %p504 = scmp.ne.s32.totalorder %s496, %s499
      %p505 = scmp.eq.s32.totalorder %s37, 0
      %p506 = por %p504, %p505
      %p507 = scmp.ne.s32.totalorder %s496, %s499
      %p508 = scmp.eq.s32.totalorder %s42, 3
      %p509 = por %p507, %p508
      %p510 = scmp.ne.s32.totalorder %s499, %s500
      %p511 = scmp.eq.s32.totalorder %s42, 0
      %p512 = por %p510, %p511
      %p513 = scmp.ne.s32.totalorder %s499, %s500
      %p514 = scmp.eq.s32.totalorder %s43, 3
      %p515 = por %p513, %p514
      %p517 = scmp.ne.s32.totalorder %s500, %s516
      %p518 = scmp.eq.s32.totalorder %s43, 0
      %p519 = por %p517, %p518
      %s520 = ssub.s32 %s45, %s52
      %p521 = scmp.eq.s32.totalorder %s520, 0
      %s523 = sadd.s32 %s522, 1
      %s524 = scalar_select %p521, %s522, %s523
      %p527 = pneg %p521
      %p528 = scmp.eq.s32.totalorder %s37, 3
      %p529 = por %p527, %p528
      %p530 = scmp.ne.s32.totalorder %s522, %s525
      %p531 = scmp.eq.s32.totalorder %s37, 0
      %p532 = por %p530, %p531
      %p533 = scmp.ne.s32.totalorder %s522, %s525
      %p534 = scmp.eq.s32.totalorder %s42, 3
      %p535 = por %p533, %p534
      %p536 = scmp.ne.s32.totalorder %s525, %s526
      %p537 = scmp.eq.s32.totalorder %s42, 0
      %p538 = por %p536, %p537
      %p539 = scmp.ne.s32.totalorder %s525, %s526
      %p540 = scmp.eq.s32.totalorder %s43, 3
      %p541 = por %p539, %p540
      %p543 = scmp.ne.s32.totalorder %s526, %s542
      %p544 = scmp.eq.s32.totalorder %s43, 0
      %p545 = por %p543, %p544
      %s546 = ssub.s32 %s45, %s52
      %p547 = scmp.eq.s32.totalorder %s546, 0
      %s549 = sadd.s32 %s548, 1
      %s550 = scalar_select %p547, %s548, %s549
      %p553 = pneg %p547
      %p554 = scmp.eq.s32.totalorder %s37, 3
      %p555 = por %p553, %p554
      %p556 = scmp.ne.s32.totalorder %s548, %s551
      %p557 = scmp.eq.s32.totalorder %s37, 0
      %p558 = por %p556, %p557
      %p559 = scmp.ne.s32.totalorder %s548, %s551
      %p560 = scmp.eq.s32.totalorder %s42, 3
      %p561 = por %p559, %p560
      %p562 = scmp.ne.s32.totalorder %s551, %s552
      %p563 = scmp.eq.s32.totalorder %s42, 0
      %p564 = por %p562, %p563
      %p565 = scmp.ne.s32.totalorder %s551, %s552
      %p566 = scmp.eq.s32.totalorder %s43, 3
      %p567 = por %p565, %p566
      %p569 = scmp.ne.s32.totalorder %s552, %s568
      %p570 = scmp.eq.s32.totalorder %s43, 0
      %p571 = por %p569, %p570
      %s572 = ssub.s32 %s45, %s52
      %p573 = scmp.eq.s32.totalorder %s572, 0
      %s575 = sadd.s32 %s574, 1
      %s576 = scalar_select %p573, %s574, %s575
      %p579 = pneg %p573
      %p580 = scmp.eq.s32.totalorder %s37, 3
      %p581 = por %p579, %p580
      %p582 = scmp.ne.s32.totalorder %s574, %s577
      %p583 = scmp.eq.s32.totalorder %s37, 0
      %p584 = por %p582, %p583
      %p585 = scmp.ne.s32.totalorder %s574, %s577
      %p586 = scmp.eq.s32.totalorder %s42, 3
      %p587 = por %p585, %p586
      %p588 = scmp.ne.s32.totalorder %s577, %s578
      %p589 = scmp.eq.s32.totalorder %s42, 0
      %p590 = por %p588, %p589
      %p591 = scmp.ne.s32.totalorder %s577, %s578
      %p592 = scmp.eq.s32.totalorder %s43, 3
      %p593 = por %p591, %p592
      %p595 = scmp.ne.s32.totalorder %s578, %s594
      %p596 = scmp.eq.s32.totalorder %s43, 0
      %p597 = por %p595, %p596
      %s598 = ssub.s32 %s45, %s52
      %p599 = scmp.eq.s32.totalorder %s598, 0
      %s601 = sadd.s32 %s600, 1
      %s602 = scalar_select %p599, %s600, %s601
      %p605 = pneg %p599
      %p606 = scmp.eq.s32.totalorder %s37, 3
      %p607 = por %p605, %p606
      %p608 = scmp.ne.s32.totalorder %s600, %s603
      %p609 = scmp.eq.s32.totalorder %s37, 0
      %p610 = por %p608, %p609
      %p611 = scmp.ne.s32.totalorder %s600, %s603
      %p612 = scmp.eq.s32.totalorder %s42, 3
      %p613 = por %p611, %p612
      %p614 = scmp.ne.s32.totalorder %s603, %s604
      %p615 = scmp.eq.s32.totalorder %s42, 0
      %p616 = por %p614, %p615
      %p617 = scmp.ne.s32.totalorder %s603, %s604
      %p618 = scmp.eq.s32.totalorder %s43, 3
      %p619 = por %p617, %p618
      %p621 = scmp.ne.s32.totalorder %s604, %s620
      %p622 = scmp.eq.s32.totalorder %s43, 0
      %p623 = por %p621, %p622
      %s624 = ssub.s32 %s45, %s52
      %p625 = scmp.eq.s32.totalorder %s624, 0
      %s627 = sadd.s32 %s626, 1
      %s628 = scalar_select %p625, %s626, %s627
      %p631 = pneg %p625
      %p632 = scmp.eq.s32.totalorder %s37, 3
      %p633 = por %p631, %p632
      %p634 = scmp.ne.s32.totalorder %s626, %s629
      %p635 = scmp.eq.s32.totalorder %s37, 0
      %p636 = por %p634, %p635
      %p637 = scmp.ne.s32.totalorder %s626, %s629
      %p638 = scmp.eq.s32.totalorder %s42, 3
      %p639 = por %p637, %p638
      %p640 = scmp.ne.s32.totalorder %s629, %s630
      %p641 = scmp.eq.s32.totalorder %s42, 0
      %p642 = por %p640, %p641
      %p643 = scmp.ne.s32.totalorder %s629, %s630
      %p644 = scmp.eq.s32.totalorder %s43, 3
      %p645 = por %p643, %p644
      %p647 = scmp.ne.s32.totalorder %s630, %s646
      %p648 = scmp.eq.s32.totalorder %s43, 0
      %p649 = por %p647, %p648
      %s650 = ssub.s32 %s44, %s56
      %p651 = scmp.eq.s32.totalorder %s650, 0
      %s653 = sadd.s32 %s652, 1
      %s654 = scalar_select %p651, %s652, %s653
      %p657 = pneg %p651
      %p658 = scmp.eq.s32.totalorder %s37, 3
      %p659 = por %p657, %p658
      %p660 = scmp.ne.s32.totalorder %s652, %s655
      %p661 = scmp.eq.s32.totalorder %s37, 0
      %p662 = por %p660, %p661
      %p663 = scmp.ne.s32.totalorder %s652, %s655
      %p664 = scmp.eq.s32.totalorder %s42, 3
      %p665 = por %p663, %p664
      %p666 = scmp.ne.s32.totalorder %s655, %s656
      %p667 = scmp.eq.s32.totalorder %s42, 0
      %p668 = por %p666, %p667
      %p669 = scmp.ne.s32.totalorder %s655, %s656
      %p670 = scmp.eq.s32.totalorder %s43, 3
      %p671 = por %p669, %p670
      %p673 = scmp.ne.s32.totalorder %s656, %s672
      %p674 = scmp.eq.s32.totalorder %s43, 0
      %p675 = por %p673, %p674
      %s676 = ssub.s32 %s44, %s56
      %s677 = ssub.s32 %s45, %s52
      %s678 = sor.u32 %s676, %s677
      %p679 = scmp.eq.s32.totalorder %s678, 0
      %s681 = sadd.s32 %s680, 1
      %s682 = scalar_select %p679, %s680, %s681
      %p685 = pneg %p679
      %p686 = scmp.eq.s32.totalorder %s37, 3
      %p687 = por %p685, %p686
      %p688 = scmp.ne.s32.totalorder %s680, %s683
      %p689 = scmp.eq.s32.totalorder %s37, 0
      %p690 = por %p688, %p689
      %p691 = scmp.ne.s32.totalorder %s680, %s683
      %p692 = scmp.eq.s32.totalorder %s42, 3
      %p693 = por %p691, %p692
      %p694 = scmp.ne.s32.totalorder %s683, %s684
      %p695 = scmp.eq.s32.totalorder %s42, 0
      %p696 = por %p694, %p695
      %p697 = scmp.ne.s32.totalorder %s683, %s684
      %p698 = scmp.eq.s32.totalorder %s43, 3
      %p699 = por %p697, %p698
      %p701 = scmp.ne.s32.totalorder %s684, %s700
      %p702 = scmp.eq.s32.totalorder %s43, 0
      %p703 = por %p701, %p702
      %p704 = scmp.le.s32.totalorder 1, %s37
      %p705 = scmp.lt.s32.totalorder %s37, 5
      %p706 = pnand %p704, %p705
      %p707 = pneg %p706
      // Predicated region
      $region9: #{tpu_custom_call.1} parent=5 // pred_check
        _
      $region10: #{tpu_custom_call.1} parent=5 // pred_check_branch
        %709 = sbr.rel (%p706) target = $region12
      $region11: #{tpu_custom_call.1} parent=5 // pred_region
        %s710 = ssub.s32 %s37, 1
        // Predicated region
        $region13: #{tpu_custom_call.1} parent=11 // pred_check
          %p711 = pneg %p70
        $region14: #{tpu_custom_call.1} parent=11 // pred_check_branch
          %713 = sbr.rel (%p711) target = $region16
        $region15: #{tpu_custom_call.1} parent=11 // pred_region
          _
        $region16: #{tpu_custom_call.1} parent=11 // pred_fallthru
          _
      $region12: #{tpu_custom_call.1} parent=5 // pred_fallthru
        _
      %p714 = scmp.lt.s32.totalorder %s37, 4
      // Predicated region
      $region17: #{tpu_custom_call.1} parent=5 // pred_check
        %p715 = pneg %p714
      $region18: #{tpu_custom_call.1} parent=5 // pred_check_branch
        %717 = sbr.rel (%p715) target = $region20
      $region19: #{tpu_custom_call.1} parent=5 // pred_region
        // Predicated region
        $region21: #{tpu_custom_call.1} parent=19 // pred_check
          %p718 = pneg %p90
        $region22: #{tpu_custom_call.1} parent=19 // pred_check_branch
          %720 = sbr.rel (%p718) target = $region24
        $region23: #{tpu_custom_call.1} parent=19 // pred_region
          %p721 = scmp.lt.s32.totalorder %s44, 1
          %s722 = scalar_select %p721, %s44, 1
          %s723 = smul.addr %s722, 8
          %s724 = scalar_lea.vmem %s1, %s723
        $region24: #{tpu_custom_call.1} parent=19 // pred_fallthru
          _
        // Predicated region
        $region25: #{tpu_custom_call.1} parent=19 // pred_check
          %p725 = pneg %p116
        $region26: #{tpu_custom_call.1} parent=19 // pred_check_branch
          %727 = sbr.rel (%p725) target = $region28
        $region27: #{tpu_custom_call.1} parent=19 // pred_region
          %p728 = scmp.lt.s32.totalorder %s44, 1
          %s729 = scalar_select %p728, %s44, 1
          %s730 = scalar_lea.vmem %s2, %s729
        $region28: #{tpu_custom_call.1} parent=19 // pred_fallthru
          _
        // Predicated region
        $region29: #{tpu_custom_call.1} parent=19 // pred_check
          %p731 = pneg %p142
        $region30: #{tpu_custom_call.1} parent=19 // pred_check_branch
          %733 = sbr.rel (%p731) target = $region32
        $region31: #{tpu_custom_call.1} parent=19 // pred_region
          %p734 = scmp.lt.s32.totalorder %s45, 1
          %s735 = scalar_select %p734, %s45, 1
          %s736 = smul.addr %s735, 36
          %s737 = smul.addr %s736, 4
          %s738 = scalar_lea.vmem %s3, %s737
        $region32: #{tpu_custom_call.1} parent=19 // pred_fallthru
          _
        // Predicated region
        $region33: #{tpu_custom_call.1} parent=19 // pred_check
          %p739 = pneg %p168
        $region34: #{tpu_custom_call.1} parent=19 // pred_check_branch
          %741 = sbr.rel (%p739) target = $region36
        $region35: #{tpu_custom_call.1} parent=19 // pred_region
          %p742 = scmp.lt.s32.totalorder %s45, 1
          %s743 = scalar_select %p742, %s45, 1
          %s744 = smul.addr %s743, 3
          %s745 = scalar_lea.vmem %s4, %s744
        $region36: #{tpu_custom_call.1} parent=19 // pred_fallthru
          _
        // Predicated region
        $region37: #{tpu_custom_call.1} parent=19 // pred_check
          %p746 = pneg %p194
        $region38: #{tpu_custom_call.1} parent=19 // pred_check_branch
          %748 = sbr.rel (%p746) target = $region40
        $region39: #{tpu_custom_call.1} parent=19 // pred_region
          %p749 = scmp.lt.s32.totalorder %s45, 1
          %s750 = scalar_select %p749, %s45, 1
          %s751 = smul.addr %s750, 3
          %s752 = scalar_lea.vmem %s5, %s751
        $region40: #{tpu_custom_call.1} parent=19 // pred_fallthru
          _
        // Predicated region
        $region41: #{tpu_custom_call.1} parent=19 // pred_check
          %p753 = pneg %p220
        $region42: #{tpu_custom_call.1} parent=19 // pred_check_branch
          %755 = sbr.rel (%p753) target = $region44
        $region43: #{tpu_custom_call.1} parent=19 // pred_region
          %p756 = scmp.lt.s32.totalorder %s45, 1
          %s757 = scalar_select %p756, %s45, 1
          %s758 = smul.addr %s757, 3
          %s759 = scalar_lea.vmem %s6, %s758
        $region44: #{tpu_custom_call.1} parent=19 // pred_fallthru
          _
        // Predicated region
        $region45: #{tpu_custom_call.1} parent=19 // pred_check
          %p760 = pneg %p246
        $region46: #{tpu_custom_call.1} parent=19 // pred_check_branch
          %762 = sbr.rel (%p760) target = $region48
        $region47: #{tpu_custom_call.1} parent=19 // pred_region
          %p763 = scmp.lt.s32.totalorder %s45, 1
          %s764 = scalar_select %p763, %s45, 1
          %s765 = smul.addr %s764, 4
          %s766 = smul.addr %s765, 4
          %s767 = scalar_lea.vmem %s7, %s766
        $region48: #{tpu_custom_call.1} parent=19 // pred_fallthru
          _
        // Predicated region
        $region49: #{tpu_custom_call.1} parent=19 // pred_check
          %p768 = pneg %p272
        $region50: #{tpu_custom_call.1} parent=19 // pred_check_branch
          %770 = sbr.rel (%p768) target = $region52
        $region51: #{tpu_custom_call.1} parent=19 // pred_region
          %p771 = scmp.lt.s32.totalorder %s45, 1
          %s772 = scalar_select %p771, %s45, 1
          %s773 = smul.addr %s772, 4
          %s774 = smul.addr %s773, 4
          %s775 = scalar_lea.vmem %s8, %s774
        $region52: #{tpu_custom_call.1} parent=19 // pred_fallthru
          _
        // Predicated region
        $region53: #{tpu_custom_call.1} parent=19 // pred_check
          %p776 = pneg %p298
        $region54: #{tpu_custom_call.1} parent=19 // pred_check_branch
          %778 = sbr.rel (%p776) target = $region56
        $region55: #{tpu_custom_call.1} parent=19 // pred_region
          %p779 = scmp.lt.s32.totalorder %s45, 1
          %s780 = scalar_select %p779, %s45, 1
          %s781 = smul.addr %s780, 4
          %s782 = smul.addr %s781, 4
          %s783 = scalar_lea.vmem %s9, %s782
        $region56: #{tpu_custom_call.1} parent=19 // pred_fallthru
          _
        // Predicated region
        $region57: #{tpu_custom_call.1} parent=19 // pred_check
          %p784 = pneg %p324
        $region58: #{tpu_custom_call.1} parent=19 // pred_check_branch
          %786 = sbr.rel (%p784) target = $region60
        $region59: #{tpu_custom_call.1} parent=19 // pred_region
          %p787 = scmp.lt.s32.totalorder %s45, 1
          %s788 = scalar_select %p787, %s45, 1
          %s789 = smul.addr %s788, 4
          %s790 = smul.addr %s789, 4
          %s791 = scalar_lea.vmem %s10, %s790
        $region60: #{tpu_custom_call.1} parent=19 // pred_fallthru
          _
        // Predicated region
        $region61: #{tpu_custom_call.1} parent=19 // pred_check
          %p792 = pneg %p350
        $region62: #{tpu_custom_call.1} parent=19 // pred_check_branch
          %794 = sbr.rel (%p792) target = $region64
        $region63: #{tpu_custom_call.1} parent=19 // pred_region
          %p795 = scmp.lt.s32.totalorder %s45, 1
          %s796 = scalar_select %p795, %s45, 1
          %s797 = scalar_lea.vmem %s11, %s796
        $region64: #{tpu_custom_call.1} parent=19 // pred_fallthru
          _
        // Predicated region
        $region65: #{tpu_custom_call.1} parent=19 // pred_check
          %p798 = pneg %p376
        $region66: #{tpu_custom_call.1} parent=19 // pred_check_branch
          %800 = sbr.rel (%p798) target = $region68
        $region67: #{tpu_custom_call.1} parent=19 // pred_region
          %p801 = scmp.lt.s32.totalorder %s45, 1
          %s802 = scalar_select %p801, %s45, 1
          %s803 = scalar_lea.vmem %s12, %s802
        $region68: #{tpu_custom_call.1} parent=19 // pred_fallthru
          _
        // Predicated region
        $region69: #{tpu_custom_call.1} parent=19 // pred_check
          %p804 = pneg %p402
        $region70: #{tpu_custom_call.1} parent=19 // pred_check_branch
          %806 = sbr.rel (%p804) target = $region72
        $region71: #{tpu_custom_call.1} parent=19 // pred_region
          %p807 = scmp.lt.s32.totalorder %s45, 1
          %s808 = scalar_select %p807, %s45, 1
          %s809 = scalar_lea.vmem %s13, %s808
        $region72: #{tpu_custom_call.1} parent=19 // pred_fallthru
          _
        // Predicated region
        $region73: #{tpu_custom_call.1} parent=19 // pred_check
          %p810 = pneg %p428
        $region74: #{tpu_custom_call.1} parent=19 // pred_check_branch
          %812 = sbr.rel (%p810) target = $region76
        $region75: #{tpu_custom_call.1} parent=19 // pred_region
          %p813 = scmp.lt.s32.totalorder %s45, 1
          %s814 = scalar_select %p813, %s45, 1
          %s815 = scalar_lea.vmem %s14, %s814
        $region76: #{tpu_custom_call.1} parent=19 // pred_fallthru
          _
        // Predicated region
        $region77: #{tpu_custom_call.1} parent=19 // pred_check
          %p816 = pneg %p454
        $region78: #{tpu_custom_call.1} parent=19 // pred_check_branch
          %818 = sbr.rel (%p816) target = $region80
        $region79: #{tpu_custom_call.1} parent=19 // pred_region
          %p819 = scmp.lt.s32.totalorder %s45, 1
          %s820 = scalar_select %p819, %s45, 1
          %s821 = scalar_lea.vmem %s15, %s820
        $region80: #{tpu_custom_call.1} parent=19 // pred_fallthru
          _
        // Predicated region
        $region81: #{tpu_custom_call.1} parent=19 // pred_check
          %p822 = pneg %p480
        $region82: #{tpu_custom_call.1} parent=19 // pred_check_branch
          %824 = sbr.rel (%p822) target = $region84
        $region83: #{tpu_custom_call.1} parent=19 // pred_region
          %p825 = scmp.lt.s32.totalorder %s45, 1
          %s826 = scalar_select %p825, %s45, 1
          %s827 = scalar_lea.vmem %s16, %s826
        $region84: #{tpu_custom_call.1} parent=19 // pred_fallthru
          _
        // Predicated region
        $region85: #{tpu_custom_call.1} parent=19 // pred_check
          %p828 = pneg %p506
        $region86: #{tpu_custom_call.1} parent=19 // pred_check_branch
          %830 = sbr.rel (%p828) target = $region88
        $region87: #{tpu_custom_call.1} parent=19 // pred_region
          %p831 = scmp.lt.s32.totalorder %s45, 1
          %s832 = scalar_select %p831, %s45, 1
          %s833 = smul.addr %s832, 4
          %s834 = smul.addr %s833, 4
          %s835 = scalar_lea.vmem %s17, %s834
        $region88: #{tpu_custom_call.1} parent=19 // pred_fallthru
          _
        // Predicated region
        $region89: #{tpu_custom_call.1} parent=19 // pred_check
          %p836 = pneg %p532
        $region90: #{tpu_custom_call.1} parent=19 // pred_check_branch
          %838 = sbr.rel (%p836) target = $region92
        $region91: #{tpu_custom_call.1} parent=19 // pred_region
          %p839 = scmp.lt.s32.totalorder %s45, 1
          %s840 = scalar_select %p839, %s45, 1
          %s841 = scalar_lea.vmem %s18, %s840
        $region92: #{tpu_custom_call.1} parent=19 // pred_fallthru
          _
        // Predicated region
        $region93: #{tpu_custom_call.1} parent=19 // pred_check
          %p842 = pneg %p558
        $region94: #{tpu_custom_call.1} parent=19 // pred_check_branch
          %844 = sbr.rel (%p842) target = $region96
        $region95: #{tpu_custom_call.1} parent=19 // pred_region
          %p845 = scmp.lt.s32.totalorder %s45, 1
          %s846 = scalar_select %p845, %s45, 1
          %s847 = smul.addr %s846, 8
          %s848 = smul.addr %s847, 4
          %s849 = scalar_lea.vmem %s19, %s848
        $region96: #{tpu_custom_call.1} parent=19 // pred_fallthru
          _
        // Predicated region
        $region97: #{tpu_custom_call.1} parent=19 // pred_check
          %p850 = pneg %p584
        $region98: #{tpu_custom_call.1} parent=19 // pred_check_branch
          %852 = sbr.rel (%p850) target = $region100
        $region99: #{tpu_custom_call.1} parent=19 // pred_region
          %p853 = scmp.lt.s32.totalorder %s45, 1
          %s854 = scalar_select %p853, %s45, 1
          %s855 = scalar_lea.vmem %s20, %s854
        $region100: #{tpu_custom_call.1} parent=19 // pred_fallthru
          _
        // Predicated region
        $region101: #{tpu_custom_call.1} parent=19 // pred_check
          %p856 = pneg %p610
        $region102: #{tpu_custom_call.1} parent=19 // pred_check_branch
          %858 = sbr.rel (%p856) target = $region104
        $region103: #{tpu_custom_call.1} parent=19 // pred_region
          %p859 = scmp.lt.s32.totalorder %s45, 1
          %s860 = scalar_select %p859, %s45, 1
          %s861 = scalar_lea.vmem %s21, %s860
        $region104: #{tpu_custom_call.1} parent=19 // pred_fallthru
          _
        // Predicated region
        $region105: #{tpu_custom_call.1} parent=19 // pred_check
          %p862 = pneg %p636
        $region106: #{tpu_custom_call.1} parent=19 // pred_check_branch
          %864 = sbr.rel (%p862) target = $region108
        $region107: #{tpu_custom_call.1} parent=19 // pred_region
          %p865 = scmp.lt.s32.totalorder %s45, 1
          %s866 = scalar_select %p865, %s45, 1
          %s867 = scalar_lea.vmem %s22, %s866
        $region108: #{tpu_custom_call.1} parent=19 // pred_fallthru
          _
      $region20: #{tpu_custom_call.1} parent=5 // pred_fallthru
        _
      %p868 = scmp.le.s32.totalorder 1, %s37
      %p869 = scmp.lt.s32.totalorder %s37, 5
      %p870 = pnand %p868, %p869
      %p871 = pneg %p870
      // Predicated region
      $region109: #{tpu_custom_call.1} parent=5 // pred_check
        _
      $region110: #{tpu_custom_call.1} parent=5 // pred_check_branch
        %873 = sbr.rel (%p870) target = $region112
      $region111: #{tpu_custom_call.1} parent=5 // pred_region
        %s874 = ssub.s32 %s37, 1
        %p875 = pneg %p70
        %p876 = pneg %p67
        %p877 = scmp.lt.s32.totalorder %s46, 1
        %s878 = scalar_select %p877, %s46, 1
        %s879 = smul.addr %s878, 8
        %s880 = scalar_lea.vmem %s1, %s879
        %p881 = pneg %p96
        %p882 = pneg %p93
        %p883 = scmp.lt.s32.totalorder %s46, 1
        %s884 = scalar_select %p883, %s46, 1
        %s885 = scalar_lea.vmem %s2, %s884
        %p886 = pneg %p122
        %p887 = pneg %p119
        %p888 = scmp.lt.s32.totalorder %s47, 1
        %s889 = scalar_select %p888, %s47, 1
        %s890 = smul.addr %s889, 36
        %s891 = smul.addr %s890, 4
        %s892 = scalar_lea.vmem %s3, %s891
        %p893 = pneg %p148
        %p894 = pneg %p145
        %p895 = scmp.lt.s32.totalorder %s47, 1
        %s896 = scalar_select %p895, %s47, 1
        %s897 = smul.addr %s896, 3
        %s898 = scalar_lea.vmem %s4, %s897
        %p899 = pneg %p174
        %p900 = pneg %p171
        %p901 = scmp.lt.s32.totalorder %s47, 1
        %s902 = scalar_select %p901, %s47, 1
        %s903 = smul.addr %s902, 3
        %s904 = scalar_lea.vmem %s5, %s903
        %p905 = pneg %p200
        %p906 = pneg %p197
        %p907 = scmp.lt.s32.totalorder %s47, 1
        %s908 = scalar_select %p907, %s47, 1
        %s909 = smul.addr %s908, 3
        %s910 = scalar_lea.vmem %s6, %s909
        %p911 = pneg %p226
        %p912 = pneg %p223
        %p913 = scmp.lt.s32.totalorder %s47, 1
        %s914 = scalar_select %p913, %s47, 1
        %s915 = smul.addr %s914, 4
        %s916 = smul.addr %s915, 4
        %s917 = scalar_lea.vmem %s7, %s916
        %p918 = pneg %p252
        %p919 = pneg %p249
        %p920 = scmp.lt.s32.totalorder %s47, 1
        %s921 = scalar_select %p920, %s47, 1
        %s922 = smul.addr %s921, 4
        %s923 = smul.addr %s922, 4
        %s924 = scalar_lea.vmem %s8, %s923
        %p925 = pneg %p278
        %p926 = pneg %p275
        %p927 = scmp.lt.s32.totalorder %s47, 1
        %s928 = scalar_select %p927, %s47, 1
        %s929 = smul.addr %s928, 4
        %s930 = smul.addr %s929, 4
        %s931 = scalar_lea.vmem %s9, %s930
        %p932 = pneg %p304
        %p933 = pneg %p301
        %p934 = scmp.lt.s32.totalorder %s47, 1
        %s935 = scalar_select %p934, %s47, 1
        %s936 = smul.addr %s935, 4
        %s937 = smul.addr %s936, 4
        %s938 = scalar_lea.vmem %s10, %s937
        %p939 = pneg %p330
        %p940 = pneg %p327
        %p941 = scmp.lt.s32.totalorder %s47, 1
        %s942 = scalar_select %p941, %s47, 1
        %s943 = scalar_lea.vmem %s11, %s942
        %p944 = pneg %p356
        %p945 = pneg %p353
        %p946 = scmp.lt.s32.totalorder %s47, 1
        %s947 = scalar_select %p946, %s47, 1
        %s948 = scalar_lea.vmem %s12, %s947
        %p949 = pneg %p382
        %p950 = pneg %p379
        %p951 = scmp.lt.s32.totalorder %s47, 1
        %s952 = scalar_select %p951, %s47, 1
        %s953 = scalar_lea.vmem %s13, %s952
        %p954 = pneg %p408
        %p955 = pneg %p405
        %p956 = scmp.lt.s32.totalorder %s47, 1
        %s957 = scalar_select %p956, %s47, 1
        %s958 = scalar_lea.vmem %s14, %s957
        %p959 = pneg %p434
        %p960 = pneg %p431
        %p961 = scmp.lt.s32.totalorder %s47, 1
        %s962 = scalar_select %p961, %s47, 1
        %s963 = scalar_lea.vmem %s15, %s962
        %p964 = pneg %p460
        %p965 = pneg %p457
        %p966 = scmp.lt.s32.totalorder %s47, 1
        %s967 = scalar_select %p966, %s47, 1
        %s968 = scalar_lea.vmem %s16, %s967
        %p969 = pneg %p486
        %p970 = pneg %p483
        %p971 = scmp.lt.s32.totalorder %s47, 1
        %s972 = scalar_select %p971, %s47, 1
        %s973 = smul.addr %s972, 4
        %s974 = smul.addr %s973, 4
        %s975 = scalar_lea.vmem %s17, %s974
        %p976 = pneg %p512
        %p977 = pneg %p509
        %p978 = scmp.lt.s32.totalorder %s47, 1
        %s979 = scalar_select %p978, %s47, 1
        %s980 = scalar_lea.vmem %s18, %s979
        %p981 = pneg %p538
        %p982 = pneg %p535
        %p983 = scmp.lt.s32.totalorder %s47, 1
        %s984 = scalar_select %p983, %s47, 1
        %s985 = smul.addr %s984, 8
        %s986 = smul.addr %s985, 4
        %s987 = scalar_lea.vmem %s19, %s986
        %p988 = pneg %p564
        %p989 = pneg %p561
        %p990 = scmp.lt.s32.totalorder %s47, 1
        %s991 = scalar_select %p990, %s47, 1
        %s992 = scalar_lea.vmem %s20, %s991
        %p993 = pneg %p590
        %p994 = pneg %p587
        %p995 = scmp.lt.s32.totalorder %s47, 1
        %s996 = scalar_select %p995, %s47, 1
        %s997 = scalar_lea.vmem %s21, %s996
        %p998 = pneg %p616
        %p999 = pneg %p613
        %p1000 = scmp.lt.s32.totalorder %s47, 1
        %s1001 = scalar_select %p1000, %s47, 1
        %s1002 = scalar_lea.vmem %s22, %s1001
        %p1003 = pneg %p642
        %p1004 = pneg %p639
        %p1005 = pneg %p668
        %p1006 = pneg %p665
        %s1007 = sand.u32 %s655, 1
        %s1008 = scalar_lea.sflag [#allocation5], %s1007
        %s1009 = sand.u32 %s655, 1
        %s1010 = smul.addr %s1009, 8
        %s1011 = scalar_lea.vmem [#allocation4], %s1010
        %p1012 = pneg %p696
        %p1013 = pneg %p693
        %s1014 = sand.u32 %s683, 1
        %s1015 = scalar_lea.sflag [#allocation7], %s1014
        %s1016 = sand.u32 %s683, 1
        %s1017 = smul.addr %s1016, 32
        %s1018 = scalar_lea.vmem [#allocation6], %s1017
        %p1019 = scmp.lt.s32.totalorder %s46, 1
        %s1020 = scalar_select %p1019, %s46, 1
        %s1021 = smul.addr %s1020, 8
        %s1022 = scalar_lea.vmem %s1, %s1021
        %p1023 = scmp.lt.s32.totalorder %s46, 1
        %s1024 = scalar_select %p1023, %s46, 1
        %s1025 = scalar_lea.vmem %s2, %s1024
        %p1026 = scmp.lt.s32.totalorder %s47, 1
        %s1027 = scalar_select %p1026, %s47, 1
        %s1028 = smul.addr %s1027, 36
        %s1029 = smul.addr %s1028, 4
        %s1030 = scalar_lea.vmem %s3, %s1029
        %p1031 = scmp.lt.s32.totalorder %s47, 1
        %s1032 = scalar_select %p1031, %s47, 1
        %s1033 = smul.addr %s1032, 3
        %s1034 = scalar_lea.vmem %s4, %s1033
        %p1035 = scmp.lt.s32.totalorder %s47, 1
        %s1036 = scalar_select %p1035, %s47, 1
        %s1037 = smul.addr %s1036, 3
        %s1038 = scalar_lea.vmem %s5, %s1037
        %p1039 = scmp.lt.s32.totalorder %s47, 1
        %s1040 = scalar_select %p1039, %s47, 1
        %s1041 = smul.addr %s1040, 3
        %s1042 = scalar_lea.vmem %s6, %s1041
        %p1043 = scmp.lt.s32.totalorder %s47, 1
        %s1044 = scalar_select %p1043, %s47, 1
        %s1045 = smul.addr %s1044, 4
        %s1046 = smul.addr %s1045, 4
        %s1047 = scalar_lea.vmem %s7, %s1046
        %p1048 = scmp.lt.s32.totalorder %s47, 1
        %s1049 = scalar_select %p1048, %s47, 1
        %s1050 = smul.addr %s1049, 4
        %s1051 = smul.addr %s1050, 4
        %s1052 = scalar_lea.vmem %s8, %s1051
        %p1053 = scmp.lt.s32.totalorder %s47, 1
        %s1054 = scalar_select %p1053, %s47, 1
        %s1055 = smul.addr %s1054, 4
        %s1056 = smul.addr %s1055, 4
        %s1057 = scalar_lea.vmem %s9, %s1056
        %p1058 = scmp.lt.s32.totalorder %s47, 1
        %s1059 = scalar_select %p1058, %s47, 1
        %s1060 = smul.addr %s1059, 4
        %s1061 = smul.addr %s1060, 4
        %s1062 = scalar_lea.vmem %s10, %s1061
        %p1063 = scmp.lt.s32.totalorder %s47, 1
        %s1064 = scalar_select %p1063, %s47, 1
        %s1065 = scalar_lea.vmem %s11, %s1064
        %p1066 = scmp.lt.s32.totalorder %s47, 1
        %s1067 = scalar_select %p1066, %s47, 1
        %s1068 = scalar_lea.vmem %s12, %s1067
        %p1069 = scmp.lt.s32.totalorder %s47, 1
        %s1070 = scalar_select %p1069, %s47, 1
        %s1071 = scalar_lea.vmem %s13, %s1070
        %p1072 = scmp.lt.s32.totalorder %s47, 1
        %s1073 = scalar_select %p1072, %s47, 1
        %s1074 = scalar_lea.vmem %s14, %s1073
        %p1075 = scmp.lt.s32.totalorder %s47, 1
        %s1076 = scalar_select %p1075, %s47, 1
        %s1077 = scalar_lea.vmem %s15, %s1076
        %p1078 = scmp.lt.s32.totalorder %s47, 1
        %s1079 = scalar_select %p1078, %s47, 1
        %s1080 = scalar_lea.vmem %s16, %s1079
        %p1081 = scmp.lt.s32.totalorder %s47, 1
        %s1082 = scalar_select %p1081, %s47, 1
        %s1083 = smul.addr %s1082, 4
        %s1084 = smul.addr %s1083, 4
        %s1085 = scalar_lea.vmem %s17, %s1084
        %p1086 = scmp.lt.s32.totalorder %s47, 1
        %s1087 = scalar_select %p1086, %s47, 1
        %s1088 = scalar_lea.vmem %s18, %s1087
        %p1089 = scmp.lt.s32.totalorder %s47, 1
        %s1090 = scalar_select %p1089, %s47, 1
        %s1091 = smul.addr %s1090, 8
        %s1092 = smul.addr %s1091, 4
        %s1093 = scalar_lea.vmem %s19, %s1092
        %p1094 = scmp.lt.s32.totalorder %s47, 1
        %s1095 = scalar_select %p1094, %s47, 1
        %s1096 = scalar_lea.vmem %s20, %s1095
        %p1097 = scmp.lt.s32.totalorder %s47, 1
        %s1098 = scalar_select %p1097, %s47, 1
        %s1099 = scalar_lea.vmem %s21, %s1098
        %p1100 = scmp.lt.s32.totalorder %s47, 1
        %s1101 = scalar_select %p1100, %s47, 1
        %s1102 = scalar_lea.vmem %s22, %s1101
        %p1104 = scmp.eq.s32.totalorder %s47, 0
        // Predicated region
        $region113: #{tpu_custom_call.1} parent=111 // pred_check
          %p1105 = pneg %p1104
        $region114: #{tpu_custom_call.1} parent=111 // pred_check_branch
          %1107 = sbr.rel (%p1105) target = $region116
        $region115: #{tpu_custom_call.1} parent=111 // pred_region
          %v1108 = vld [vmem:[%s1022] sm:$0xff]
          %vm1109 = vcmask 261120
          %1110 = vst.msk [vmem:[#allocation2] sm:$0xff] %vm1109, %v1108
          %1111 = vst.msk [vmem:[#allocation3] sm:$0xff] %vm1109, 0.0
        $region116: #{tpu_custom_call.1} parent=111 // pred_fallthru
          _
        %v1112 = vld [vmem:[#allocation2] sm:$0xff]
        %v1113 = vld [vmem:[%s1025] sm:$0x1]
        %v1114 = vld [vmem:[%s0] sm:$0xff]
        %v1115 = vld [vmem:[%s0 + $0x8] sm:$0xff]
        %v1116 = vld [vmem:[%s0 + $0x10] sm:$0xff]
        %v1117 = vld [vmem:[%s0 + $0x18] sm:$0xff]
        %v1119 = vrot.slane %v1112, 7
        %vm1121 = vcmask 1040384
        %v1122 = vsel %vm1121, 0.0, %v1119
        %v1123 = vrot.slane %v1112, 1
        %vm1125 = vcmask 1046528
        %v1126 = vsel %vm1125, %v1123, 0.0
        %1127 = vrot.lane.b32.xlu0 %v1112, 32
        %v1128 = vpop.permute.xlu0 %1127
        %1131 = vrot.lane.b32.xlu0 %v1126, 64
        %v1132 = vpop.permute.xlu0 %1131
        %vm1134 = vcmask 261120
        %v1135 = vsel %vm1134, %v1122, %v1128
        %vm1136 = vcmask 523264
        %v1137 = vsel %vm1136, %v1135, %v1132
        %v1138 = vpack.c.bf16 %v1137, %v1137
        %v1139 = vld [vmem:[%s1030] sm:$0xf]
        %v1140 = vld [vmem:[%s1030 + $0x4] sm:$0xf]
        %v1141 = vld [vmem:[%s1030 + $0x8] sm:$0xf]
        %v1142 = vld [vmem:[%s1030 + $0xc] sm:$0xf]
        %v1143 = vld [vmem:[%s1030 + $0x10] sm:$0xf]
        %v1144 = vld [vmem:[%s1030 + $0x14] sm:$0xf]
        %v1145 = vld [vmem:[%s1030 + $0x18] sm:$0xf]
        %v1146 = vld [vmem:[%s1030 + $0x1c] sm:$0xf]
        %v1147 = vld [vmem:[%s1030 + $0x20] sm:$0xf]
        %v1148 = vld [vmem:[%s1030 + $0x24] sm:$0xf]
        %v1149 = vld [vmem:[%s1030 + $0x28] sm:$0xf]
        %v1150 = vld [vmem:[%s1030 + $0x2c] sm:$0xf]
        %v1151 = vld [vmem:[%s1034] sm:$0x1]
        %v1153 = vlaneseq
        %v1154 = vshrl.u32 %v1153, 7
        %v1155 = vsub.s32 0, %v1154
        %v1156 = vrot.slane %v1151, %v1155
        %v1170 = vunpack.c.l.b16 %v1139
        %v1171 = vunpack.c.l.b16 %v1140
        %v1172 = vunpack.c.l.b16 %v1141
        %v1173 = vunpack.c.l.b16 %v1142
        %v1174 = vunpack.c.l.b16 %v1143
        %v1175 = vunpack.c.l.b16 %v1144
        %v1176 = vunpack.c.l.b16 %v1145
        %v1177 = vunpack.c.l.b16 %v1146
        %v1178 = vunpack.c.l.b16 %v1147
        %v1179 = vunpack.c.l.b16 %v1148
        %v1180 = vunpack.c.l.b16 %v1149
        %v1181 = vunpack.c.l.b16 %v1150
        %v1182 = vpack.c.b16 %v1171, %v1170
        %v1183 = vpack.c.b16 %v1173, %v1172
        %v1184 = vpack.c.b16 %v1175, %v1174
        %v1185 = vpack.c.b16 %v1177, %v1176
        %v1186 = vpack.c.b16 %v1179, %v1178
        %v1187 = vpack.c.b16 %v1181, %v1180
        %vm1194 = vcmask 785408
        %v1196 = vsel %vm1194, %v1138, 0
        %1198 = vmatprep.subr.bf16.mxu0 0
        %1199 = vmatpush1.bf16.msra.mxu0 0
        %1200 = vmatprep.subr.bf16.mxu0 0
        %1201 = vmatpush1.bf16.msra.mxu0 0
        %1202 = vmatprep.subr.bf16.mxu0 0
        %1203 = vmatpush1.bf16.msra.mxu0 %v1187
        %1204 = vmatprep.subr.bf16.mxu0 0
        %1205 = vmatpush1.bf16.msra.mxu0 %v1186
        %1206 = vmatprep.subr.bf16.mxu0 0
        %1207 = vmatpush1.bf16.msra.mxu0 %v1185
        %1208 = vmatprep.subr.bf16.mxu0 0
        %1209 = vmatpush1.bf16.msra.mxu0 %v1184
        %1210 = vmatprep.subr.bf16.mxu0 0
        %1211 = vmatpush1.bf16.msra.mxu0 %v1183
        %1212 = vmatprep.subr.bf16.mxu0 0
        %1213 = vmatpush1.bf16.msra.mxu0 %v1182
        %1214 = vmatprep.subr.bf16.mxu0 0
        %1215 = vmatpush2.bf16.msra.mxu0 0
        %1216 = vmatprep.subr.bf16.mxu0 0
        %1217 = vmatpush2.bf16.msra.mxu0 0
        %1218 = vmatprep.subr.bf16.mxu0 0
        %1219 = vmatpush2.bf16.msra.mxu0 0
        %1220 = vmatprep.subr.bf16.mxu0 0
        %1221 = vmatpush2.bf16.msra.mxu0 0
        %1222 = vmatprep.subr.bf16.mxu0 0
        %1223 = vmatpush2.bf16.msra.mxu0 0
        %1224 = vmatprep.subr.bf16.mxu0 0
        %1225 = vmatpush2.bf16.msra.mxu0 0
        %1226 = vmatprep.subr.bf16.mxu0 0
        %1227 = vmatpush2.bf16.msra.mxu0 0
        %1228 = vmatprep.subr.bf16.mxu0 0
        %1229 = vmatpush2.bf16.msra.mxu0 0
        %1230 = vmatprep.mubr.bf16.mxu0 0
        %1231 = vmatmul.mubr.bf16.gmra.mxu0 %v1196
        %v1232 = vpop.f32.mrf.mxu0
        %v1233 = vadd.f32 %v1156, %v1232
        %v1234 = vpop.f32.mrf.mxu0
        %v1235 = vpop.f32.mrf.mxu0
        %v1236 = vpop.f32.mrf.mxu0
        %1237 = vdwg.mxu0
        %v1238 = vsel %vm1134, %v1233, 0.0
        %v1239 = vrot.slane %v1238, 4
        %v1240 = vadd.f32 %v1238, %v1239
        %v1241 = vrot.slane %v1240, 2
        %v1242 = vadd.f32 %v1240, %v1241
        %v1243 = vrot.slane %v1242, 1
        %v1244 = vadd.f32 %v1242, %v1243
        %v1245 = vmul.f32 %v1233, %v1233
        %v1246 = vsel %vm1134, %v1245, 0.0
        %v1247 = vrot.slane %v1246, 4
        %v1248 = vadd.f32 %v1246, %v1247
        %v1249 = vrot.slane %v1248, 2
        %v1250 = vadd.f32 %v1248, %v1249
        %v1251 = vrot.slane %v1250, 1
        %v1252 = vadd.f32 %v1250, %v1251
        %v1253 = vsel %vm1121, %v1244, %v1252
        %v1255 = vsel %vm1134, %v1253, 0
        %1257 = vmatprep.subr.mxu0 0.0
        %1258 = vmatpush1.msra.mxu0 0.0
        %1259 = vmatprep.subr.mxu0 0.0
        %1260 = vmatpush1.msra.mxu0 0.0
        %1261 = vmatprep.subr.mxu0 0.0
        %1262 = vmatpush1.msra.mxu0 0.0
        %1263 = vmatprep.subr.mxu0 0.0
        %1264 = vmatpush1.msra.mxu0 0.0
        %1265 = vmatprep.subr.mxu0 0.0
        %1266 = vmatpush1.msra.mxu0 0.0
        %1267 = vmatprep.subr.mxu0 0.0
        %1268 = vmatpush1.msra.mxu0 0.0
        %1269 = vmatprep.subr.mxu0 0.0
        %1270 = vmatpush1.msra.mxu0 0.0
        %1271 = vmatprep.subr.mxu0 0.0
        %1272 = vmatpush1.msra.mxu0 0.0
        %1273 = vmatprep.subr.mxu0 0.0
        %1274 = vmatpush1.msra.mxu0 0.0
        %1275 = vmatprep.subr.mxu0 0.0
        %1276 = vmatpush1.msra.mxu0 0.0
        %1277 = vmatprep.subr.mxu0 0.0
        %1278 = vmatpush1.msra.mxu0 0.0
        %1279 = vmatprep.subr.mxu0 0.0
        %1280 = vmatpush1.msra.mxu0 0.0
        %1281 = vmatprep.subr.mxu0 0.0
        %1282 = vmatpush1.msra.mxu0 %v1117
        %1283 = vmatprep.subr.mxu0 0.0
        %1284 = vmatpush1.msra.mxu0 %v1116
        %1285 = vmatprep.subr.mxu0 0.0
        %1286 = vmatpush1.msra.mxu0 %v1115
        %1287 = vmatprep.subr.mxu0 0.0
        %1288 = vmatpush1.msra.mxu0 %v1114
        %1289 = vmatprep.subr.mxu0 0.0
        %1290 = vmatpush2.msra.mxu0 0.0
        %1291 = vmatprep.subr.mxu0 0.0
        %1292 = vmatpush2.msra.mxu0 0.0
        %1293 = vmatprep.subr.mxu0 0.0
        %1294 = vmatpush2.msra.mxu0 0.0
        %1295 = vmatprep.subr.mxu0 0.0
        %1296 = vmatpush2.msra.mxu0 0.0
        %1297 = vmatprep.subr.mxu0 0.0
        %1298 = vmatpush2.msra.mxu0 0.0
        %1299 = vmatprep.subr.mxu0 0.0
        %1300 = vmatpush2.msra.mxu0 0.0
        %1301 = vmatprep.subr.mxu0 0.0
        %1302 = vmatpush2.msra.mxu0 0.0
        %1303 = vmatprep.subr.mxu0 0.0
        %1304 = vmatpush2.msra.mxu0 0.0
        %1305 = vmatprep.subr.mxu0 0.0
        %1306 = vmatpush2.msra.mxu0 0.0
        %1307 = vmatprep.subr.mxu0 0.0
        %1308 = vmatpush2.msra.mxu0 0.0
        %1309 = vmatprep.subr.mxu0 0.0
        %1310 = vmatpush2.msra.mxu0 0.0
        %1311 = vmatprep.subr.mxu0 0.0
        %1312 = vmatpush2.msra.mxu0 0.0
        %1313 = vmatprep.subr.mxu0 0.0
        %1314 = vmatpush2.msra.mxu0 0.0
        %1315 = vmatprep.subr.mxu0 0.0
        %1316 = vmatpush2.msra.mxu0 0.0
        %1317 = vmatprep.subr.mxu0 0.0
        %1318 = vmatpush2.msra.mxu0 0.0
        %1319 = vmatprep.subr.mxu0 0.0
        %1320 = vmatpush2.msra.mxu0 0.0
        %1321 = vmatprep.mubr.f32.mxu0 0.0
        %1322 = vmatmul.mubr.f32.gmra.mxu0 %v1255
        %v1323 = vpop.f32.mrf.mxu0
        %v1324 = vadd.f32 0.0, %v1323
        %v1325 = vpop.f32.mrf.mxu0
        %1326 = vdwg.mxu0
        %v1327 = vmul.f32 %v1324, %v1324
        %v1329 = vrot.slane %v1327, 7
        %v1331 = vsub.f32 %v1324, %v1329
        %v1332 = vlaneseq
        %v1333 = vshrl.u32 %v1332, 7
        %v1334 = vsub.s32 0, %v1333
        %v1335 = vrot.slane %v1324, %v1334
        %v1336 = vsub.f32 %v1233, %v1335
        %v1337 = vadd.f32 %v1331, 1e-05
        %v1338 = vrsqrt.pop %v1337
        %v1339 = vlaneseq
        %v1340 = vshrl.u32 %v1339, 7
        %v1341 = vsub.s32 1, %v1340
        %v1342 = vrot.slane %v1338, %v1341
        %v1343 = vmul.f32 %v1336, %v1342
        %v1344 = vld [vmem:[%s1038] sm:$0x1]
        %v1346 = vlaneseq
        %v1347 = vshrl.u32 %v1346, 7
        %v1348 = vsub.s32 0, %v1347
        %v1349 = vrot.slane %v1344, %v1348
        %v1351 = vmul.f32 %v1343, %v1349
        %v1352 = vld [vmem:[%s1042] sm:$0x1]
        %v1354 = vlaneseq
        %v1355 = vshrl.u32 %v1354, 7
        %v1356 = vsub.s32 0, %v1355
        %v1357 = vrot.slane %v1352, %v1356
        %v1359 = vadd.f32 %v1351, %v1357
        %v1360 = vmul.f32 %v1359, 0.5
        %v1361 = vmul.f32 %v1359, 0.70710677
        %v1362 = verf.f32.pop %v1361
        %v1363 = vadd.f32 %v1362, 1.0
        %v1364 = vmul.f32 %v1360, %v1363
        %v1365 = vadd.f32 %v1112, %v1364
        %v1367 = vrot.slane %v1365, 7
        %v1369 = vsel %vm1121, 0.0, %v1367
        %v1370 = vrot.slane %v1365, 1
        %v1372 = vsel %vm1125, %v1370, 0.0
        %1373 = vrot.lane.b32.xlu0 %v1365, 32
        %v1374 = vpop.permute.xlu0 %1373
        %1377 = vrot.lane.b32.xlu0 %v1372, 64
        %v1378 = vpop.permute.xlu0 %1377
        %v1380 = vsel %vm1134, %v1369, %v1374
        %v1381 = vsel %vm1136, %v1380, %v1378
        %v1382 = vpack.c.bf16 %v1381, %v1381
        %s1383 = scalar_lea.vmem %s1030, 48
        %v1384 = vld [vmem:[%s1383] sm:$0xf]
        %v1385 = vld [vmem:[%s1383 + $0x4] sm:$0xf]
        %v1386 = vld [vmem:[%s1383 + $0x8] sm:$0xf]
        %v1387 = vld [vmem:[%s1383 + $0xc] sm:$0xf]
        %v1388 = vld [vmem:[%s1383 + $0x10] sm:$0xf]
        %v1389 = vld [vmem:[%s1383 + $0x14] sm:$0xf]
        %v1390 = vld [vmem:[%s1383 + $0x18] sm:$0xf]
        %v1391 = vld [vmem:[%s1383 + $0x1c] sm:$0xf]
        %v1392 = vld [vmem:[%s1383 + $0x20] sm:$0xf]
        %v1393 = vld [vmem:[%s1383 + $0x24] sm:$0xf]
        %v1394 = vld [vmem:[%s1383 + $0x28] sm:$0xf]
        %v1395 = vld [vmem:[%s1383 + $0x2c] sm:$0xf]
        %s1396 = scalar_lea.vmem %s1034, 1
        %v1397 = vld [vmem:[%s1396] sm:$0x1]
        %v1399 = vlaneseq
        %v1400 = vshrl.u32 %v1399, 7
        %v1401 = vsub.s32 0, %v1400
        %v1402 = vrot.slane %v1397, %v1401
        %v1416 = vunpack.c.l.b16 %v1384
        %v1417 = vunpack.c.l.b16 %v1385
        %v1418 = vunpack.c.l.b16 %v1386
        %v1419 = vunpack.c.l.b16 %v1387
        %v1420 = vunpack.c.l.b16 %v1388
        %v1421 = vunpack.c.l.b16 %v1389
        %v1422 = vunpack.c.l.b16 %v1390
        %v1423 = vunpack.c.l.b16 %v1391
        %v1424 = vunpack.c.l.b16 %v1392
        %v1425 = vunpack.c.l.b16 %v1393
        %v1426 = vunpack.c.l.b16 %v1394
        %v1427 = vunpack.c.l.b16 %v1395
        %v1428 = vpack.c.b16 %v1417, %v1416
        %v1429 = vpack.c.b16 %v1419, %v1418
        %v1430 = vpack.c.b16 %v1421, %v1420
        %v1431 = vpack.c.b16 %v1423, %v1422
        %v1432 = vpack.c.b16 %v1425, %v1424
        %v1433 = vpack.c.b16 %v1427, %v1426
        %v1441 = vsel %vm1194, %v1382, 0
        %1443 = vmatprep.subr.bf16.mxu0 0
        %1444 = vmatpush1.bf16.msra.mxu0 0
        %1445 = vmatprep.subr.bf16.mxu0 0
        %1446 = vmatpush1.bf16.msra.mxu0 0
        %1447 = vmatprep.subr.bf16.mxu0 0
        %1448 = vmatpush1.bf16.msra.mxu0 %v1433
        %1449 = vmatprep.subr.bf16.mxu0 0
        %1450 = vmatpush1.bf16.msra.mxu0 %v1432
        %1451 = vmatprep.subr.bf16.mxu0 0
        %1452 = vmatpush1.bf16.msra.mxu0 %v1431
        %1453 = vmatprep.subr.bf16.mxu0 0
        %1454 = vmatpush1.bf16.msra.mxu0 %v1430
        %1455 = vmatprep.subr.bf16.mxu0 0
        %1456 = vmatpush1.bf16.msra.mxu0 %v1429
        %1457 = vmatprep.subr.bf16.mxu0 0
        %1458 = vmatpush1.bf16.msra.mxu0 %v1428
        %1459 = vmatprep.subr.bf16.mxu0 0
        %1460 = vmatpush2.bf16.msra.mxu0 0
        %1461 = vmatprep.subr.bf16.mxu0 0
        %1462 = vmatpush2.bf16.msra.mxu0 0
        %1463 = vmatprep.subr.bf16.mxu0 0
        %1464 = vmatpush2.bf16.msra.mxu0 0
        %1465 = vmatprep.subr.bf16.mxu0 0
        %1466 = vmatpush2.bf16.msra.mxu0 0
        %1467 = vmatprep.subr.bf16.mxu0 0
        %1468 = vmatpush2.bf16.msra.mxu0 0
        %1469 = vmatprep.subr.bf16.mxu0 0
        %1470 = vmatpush2.bf16.msra.mxu0 0
        %1471 = vmatprep.subr.bf16.mxu0 0
        %1472 = vmatpush2.bf16.msra.mxu0 0
        %1473 = vmatprep.subr.bf16.mxu0 0
        %1474 = vmatpush2.bf16.msra.mxu0 0
        %1475 = vmatprep.mubr.bf16.mxu0 0
        %1476 = vmatmul.mubr.bf16.gmra.mxu0 %v1441
        %v1477 = vpop.f32.mrf.mxu0
        %v1478 = vadd.f32 %v1402, %v1477
        %v1479 = vpop.f32.mrf.mxu0
        %v1480 = vpop.f32.mrf.mxu0
        %v1481 = vpop.f32.mrf.mxu0
        %1482 = vdwg.mxu0
        %v1483 = vsel %vm1134, %v1478, 0.0
        %v1484 = vrot.slane %v1483, 4
        %v1485 = vadd.f32 %v1483, %v1484
        %v1486 = vrot.slane %v1485, 2
        %v1487 = vadd.f32 %v1485, %v1486
        %v1488 = vrot.slane %v1487, 1
        %v1489 = vadd.f32 %v1487, %v1488
        %v1490 = vmul.f32 %v1478, %v1478
        %v1491 = vsel %vm1134, %v1490, 0.0
        %v1492 = vrot.slane %v1491, 4
        %v1493 = vadd.f32 %v1491, %v1492
        %v1494 = vrot.slane %v1493, 2
        %v1495 = vadd.f32 %v1493, %v1494
        %v1496 = vrot.slane %v1495, 1
        %v1497 = vadd.f32 %v1495, %v1496
        %v1498 = vsel %vm1121, %v1489, %v1497
        %v1500 = vsel %vm1134, %v1498, 0
        %1502 = vmatprep.subr.mxu0 0.0
        %1503 = vmatpush1.msra.mxu0 0.0
        %1504 = vmatprep.subr.mxu0 0.0
        %1505 = vmatpush1.msra.mxu0 0.0
        %1506 = vmatprep.subr.mxu0 0.0
        %1507 = vmatpush1.msra.mxu0 0.0
        %1508 = vmatprep.subr.mxu0 0.0
        %1509 = vmatpush1.msra.mxu0 0.0
        %1510 = vmatprep.subr.mxu0 0.0
        %1511 = vmatpush1.msra.mxu0 0.0
        %1512 = vmatprep.subr.mxu0 0.0
        %1513 = vmatpush1.msra.mxu0 0.0
        %1514 = vmatprep.subr.mxu0 0.0
        %1515 = vmatpush1.msra.mxu0 0.0
        %1516 = vmatprep.subr.mxu0 0.0
        %1517 = vmatpush1.msra.mxu0 0.0
        %1518 = vmatprep.subr.mxu0 0.0
        %1519 = vmatpush1.msra.mxu0 0.0
        %1520 = vmatprep.subr.mxu0 0.0
        %1521 = vmatpush1.msra.mxu0 0.0
        %1522 = vmatprep.subr.mxu0 0.0
        %1523 = vmatpush1.msra.mxu0 0.0
        %1524 = vmatprep.subr.mxu0 0.0
        %1525 = vmatpush1.msra.mxu0 0.0
        %1526 = vmatprep.subr.mxu0 0.0
        %1527 = vmatpush1.msra.mxu0 %v1117
        %1528 = vmatprep.subr.mxu0 0.0
        %1529 = vmatpush1.msra.mxu0 %v1116
        %1530 = vmatprep.subr.mxu0 0.0
        %1531 = vmatpush1.msra.mxu0 %v1115
        %1532 = vmatprep.subr.mxu0 0.0
        %1533 = vmatpush1.msra.mxu0 %v1114
        %1534 = vmatprep.subr.mxu0 0.0
        %1535 = vmatpush2.msra.mxu0 0.0
        %1536 = vmatprep.subr.mxu0 0.0
        %1537 = vmatpush2.msra.mxu0 0.0
        %1538 = vmatprep.subr.mxu0 0.0
        %1539 = vmatpush2.msra.mxu0 0.0
        %1540 = vmatprep.subr.mxu0 0.0
        %1541 = vmatpush2.msra.mxu0 0.0
        %1542 = vmatprep.subr.mxu0 0.0
        %1543 = vmatpush2.msra.mxu0 0.0
        %1544 = vmatprep.subr.mxu0 0.0
        %1545 = vmatpush2.msra.mxu0 0.0
        %1546 = vmatprep.subr.mxu0 0.0
        %1547 = vmatpush2.msra.mxu0 0.0
        %1548 = vmatprep.subr.mxu0 0.0
        %1549 = vmatpush2.msra.mxu0 0.0
        %1550 = vmatprep.subr.mxu0 0.0
        %1551 = vmatpush2.msra.mxu0 0.0
        %1552 = vmatprep.subr.mxu0 0.0
        %1553 = vmatpush2.msra.mxu0 0.0
        %1554 = vmatprep.subr.mxu0 0.0
        %1555 = vmatpush2.msra.mxu0 0.0
        %1556 = vmatprep.subr.mxu0 0.0
        %1557 = vmatpush2.msra.mxu0 0.0
        %1558 = vmatprep.subr.mxu0 0.0
        %1559 = vmatpush2.msra.mxu0 0.0
        %1560 = vmatprep.subr.mxu0 0.0
        %1561 = vmatpush2.msra.mxu0 0.0
        %1562 = vmatprep.subr.mxu0 0.0
        %1563 = vmatpush2.msra.mxu0 0.0
        %1564 = vmatprep.subr.mxu0 0.0
        %1565 = vmatpush2.msra.mxu0 0.0
        %1566 = vmatprep.mubr.f32.mxu0 0.0
        %1567 = vmatmul.mubr.f32.gmra.mxu0 %v1500
        %v1568 = vpop.f32.mrf.mxu0
        %v1569 = vadd.f32 0.0, %v1568
        %v1570 = vpop.f32.mrf.mxu0
        %1571 = vdwg.mxu0
        %v1572 = vmul.f32 %v1569, %v1569
        %v1574 = vrot.slane %v1572, 7
        %v1576 = vsub.f32 %v1569, %v1574
        %v1577 = vlaneseq
        %v1578 = vshrl.u32 %v1577, 7
        %v1579 = vsub.s32 0, %v1578
        %v1580 = vrot.slane %v1569, %v1579
        %v1581 = vsub.f32 %v1478, %v1580
        %v1582 = vadd.f32 %v1576, 1e-05
        %v1583 = vrsqrt.pop %v1582
        %v1584 = vlaneseq
        %v1585 = vshrl.u32 %v1584, 7
        %v1586 = vsub.s32 1, %v1585
        %v1587 = vrot.slane %v1583, %v1586
        %v1588 = vmul.f32 %v1581, %v1587
        %s1589 = scalar_lea.vmem %s1038, 1
        %v1590 = vld [vmem:[%s1589] sm:$0x1]
        %v1592 = vlaneseq
        %v1593 = vshrl.u32 %v1592, 7
        %v1594 = vsub.s32 0, %v1593
        %v1595 = vrot.slane %v1590, %v1594
        %v1597 = vmul.f32 %v1588, %v1595
        %s1598 = scalar_lea.vmem %s1042, 1
        %v1599 = vld [vmem:[%s1598] sm:$0x1]
        %v1601 = vlaneseq
        %v1602 = vshrl.u32 %v1601, 7
        %v1603 = vsub.s32 0, %v1602
        %v1604 = vrot.slane %v1599, %v1603
        %v1606 = vadd.f32 %v1597, %v1604
        %v1607 = vmul.f32 %v1606, 0.5
        %v1608 = vmul.f32 %v1606, 0.70710677
        %v1609 = verf.f32.pop %v1608
        %v1610 = vadd.f32 %v1609, 1.0
        %v1611 = vmul.f32 %v1607, %v1610
        %v1612 = vadd.f32 %v1365, %v1611
        %v1614 = vrot.slane %v1612, 7
        %v1616 = vsel %vm1121, 0.0, %v1614
        %v1617 = vrot.slane %v1612, 1
        %v1619 = vsel %vm1125, %v1617, 0.0
        %1620 = vrot.lane.b32.xlu0 %v1612, 32
        %v1621 = vpop.permute.xlu0 %1620
        %1624 = vrot.lane.b32.xlu0 %v1619, 64
        %v1625 = vpop.permute.xlu0 %1624
        %v1627 = vsel %vm1134, %v1616, %v1621
        %v1628 = vsel %vm1136, %v1627, %v1625
        %v1629 = vpack.c.bf16 %v1628, %v1628
        %s1630 = scalar_lea.vmem %s1030, 96
        %v1631 = vld [vmem:[%s1630] sm:$0xf]
        %v1632 = vld [vmem:[%s1630 + $0x4] sm:$0xf]
        %v1633 = vld [vmem:[%s1630 + $0x8] sm:$0xf]
        %v1634 = vld [vmem:[%s1630 + $0xc] sm:$0xf]
        %v1635 = vld [vmem:[%s1630 + $0x10] sm:$0xf]
        %v1636 = vld [vmem:[%s1630 + $0x14] sm:$0xf]
        %v1637 = vld [vmem:[%s1630 + $0x18] sm:$0xf]
        %v1638 = vld [vmem:[%s1630 + $0x1c] sm:$0xf]
        %v1639 = vld [vmem:[%s1630 + $0x20] sm:$0xf]
        %v1640 = vld [vmem:[%s1630 + $0x24] sm:$0xf]
        %v1641 = vld [vmem:[%s1630 + $0x28] sm:$0xf]
        %v1642 = vld [vmem:[%s1630 + $0x2c] sm:$0xf]
        %s1643 = scalar_lea.vmem %s1034, 2
        %v1644 = vld [vmem:[%s1643] sm:$0x1]
        %v1646 = vlaneseq
        %v1647 = vshrl.u32 %v1646, 7
        %v1648 = vsub.s32 0, %v1647
        %v1649 = vrot.slane %v1644, %v1648
        %v1663 = vunpack.c.l.b16 %v1631
        %v1664 = vunpack.c.l.b16 %v1632
        %v1665 = vunpack.c.l.b16 %v1633
        %v1666 = vunpack.c.l.b16 %v1634
        %v1667 = vunpack.c.l.b16 %v1635
        %v1668 = vunpack.c.l.b16 %v1636
        %v1669 = vunpack.c.l.b16 %v1637
        %v1670 = vunpack.c.l.b16 %v1638
        %v1671 = vunpack.c.l.b16 %v1639
        %v1672 = vunpack.c.l.b16 %v1640
        %v1673 = vunpack.c.l.b16 %v1641
        %v1674 = vunpack.c.l.b16 %v1642
        %v1675 = vpack.c.b16 %v1664, %v1663
        %v1676 = vpack.c.b16 %v1666, %v1665
        %v1677 = vpack.c.b16 %v1668, %v1667
        %v1678 = vpack.c.b16 %v1670, %v1669
        %v1679 = vpack.c.b16 %v1672, %v1671
        %v1680 = vpack.c.b16 %v1674, %v1673
        %v1688 = vsel %vm1194, %v1629, 0
        %1690 = vmatprep.subr.bf16.mxu0 0
        %1691 = vmatpush1.bf16.msra.mxu0 0
        %1692 = vmatprep.subr.bf16.mxu0 0
        %1693 = vmatpush1.bf16.msra.mxu0 0
        %1694 = vmatprep.subr.bf16.mxu0 0
        %1695 = vmatpush1.bf16.msra.mxu0 %v1680
        %1696 = vmatprep.subr.bf16.mxu0 0
        %1697 = vmatpush1.bf16.msra.mxu0 %v1679
        %1698 = vmatprep.subr.bf16.mxu0 0
        %1699 = vmatpush1.bf16.msra.mxu0 %v1678
        %1700 = vmatprep.subr.bf16.mxu0 0
        %1701 = vmatpush1.bf16.msra.mxu0 %v1677
        %1702 = vmatprep.subr.bf16.mxu0 0
        %1703 = vmatpush1.bf16.msra.mxu0 %v1676
        %1704 = vmatprep.subr.bf16.mxu0 0
        %1705 = vmatpush1.bf16.msra.mxu0 %v1675
        %1706 = vmatprep.subr.bf16.mxu0 0
        %1707 = vmatpush2.bf16.msra.mxu0 0
        %1708 = vmatprep.subr.bf16.mxu0 0
        %1709 = vmatpush2.bf16.msra.mxu0 0
        %1710 = vmatprep.subr.bf16.mxu0 0
        %1711 = vmatpush2.bf16.msra.mxu0 0
        %1712 = vmatprep.subr.bf16.mxu0 0
        %1713 = vmatpush2.bf16.msra.mxu0 0
        %1714 = vmatprep.subr.bf16.mxu0 0
        %1715 = vmatpush2.bf16.msra.mxu0 0
        %1716 = vmatprep.subr.bf16.mxu0 0
        %1717 = vmatpush2.bf16.msra.mxu0 0
        %1718 = vmatprep.subr.bf16.mxu0 0
        %1719 = vmatpush2.bf16.msra.mxu0 0
        %1720 = vmatprep.subr.bf16.mxu0 0
        %1721 = vmatpush2.bf16.msra.mxu0 0
        %1722 = vmatprep.mubr.bf16.mxu0 0
        %1723 = vmatmul.mubr.bf16.gmra.mxu0 %v1688
        %v1724 = vpop.f32.mrf.mxu0
        %v1725 = vadd.f32 %v1649, %v1724
        %v1726 = vpop.f32.mrf.mxu0
        %v1727 = vpop.f32.mrf.mxu0
        %v1728 = vpop.f32.mrf.mxu0
        %1729 = vdwg.mxu0
        %v1730 = vsel %vm1134, %v1725, 0.0
        %v1731 = vrot.slane %v1730, 4
        %v1732 = vadd.f32 %v1730, %v1731
        %v1733 = vrot.slane %v1732, 2
        %v1734 = vadd.f32 %v1732, %v1733
        %v1735 = vrot.slane %v1734, 1
        %v1736 = vadd.f32 %v1734, %v1735
        %v1737 = vmul.f32 %v1725, %v1725
        %v1738 = vsel %vm1134, %v1737, 0.0
        %v1739 = vrot.slane %v1738, 4
        %v1740 = vadd.f32 %v1738, %v1739
        %v1741 = vrot.slane %v1740, 2
        %v1742 = vadd.f32 %v1740, %v1741
        %v1743 = vrot.slane %v1742, 1
        %v1744 = vadd.f32 %v1742, %v1743
        %v1745 = vsel %vm1121, %v1736, %v1744
        %v1747 = vsel %vm1134, %v1745, 0
        %1749 = vmatprep.subr.mxu0 0.0
        %1750 = vmatpush1.msra.mxu0 0.0
        %1751 = vmatprep.subr.mxu0 0.0
        %1752 = vmatpush1.msra.mxu0 0.0
        %1753 = vmatprep.subr.mxu0 0.0
        %1754 = vmatpush1.msra.mxu0 0.0
        %1755 = vmatprep.subr.mxu0 0.0
        %1756 = vmatpush1.msra.mxu0 0.0
        %1757 = vmatprep.subr.mxu0 0.0
        %1758 = vmatpush1.msra.mxu0 0.0
        %1759 = vmatprep.subr.mxu0 0.0
        %1760 = vmatpush1.msra.mxu0 0.0
        %1761 = vmatprep.subr.mxu0 0.0
        %1762 = vmatpush1.msra.mxu0 0.0
        %1763 = vmatprep.subr.mxu0 0.0
        %1764 = vmatpush1.msra.mxu0 0.0
        %1765 = vmatprep.subr.mxu0 0.0
        %1766 = vmatpush1.msra.mxu0 0.0
        %1767 = vmatprep.subr.mxu0 0.0
        %1768 = vmatpush1.msra.mxu0 0.0
        %1769 = vmatprep.subr.mxu0 0.0
        %1770 = vmatpush1.msra.mxu0 0.0
        %1771 = vmatprep.subr.mxu0 0.0
        %1772 = vmatpush1.msra.mxu0 0.0
        %1773 = vmatprep.subr.mxu0 0.0
        %1774 = vmatpush1.msra.mxu0 %v1117
        %1775 = vmatprep.subr.mxu0 0.0
        %1776 = vmatpush1.msra.mxu0 %v1116
        %1777 = vmatprep.subr.mxu0 0.0
        %1778 = vmatpush1.msra.mxu0 %v1115
        %1779 = vmatprep.subr.mxu0 0.0
        %1780 = vmatpush1.msra.mxu0 %v1114
        %1781 = vmatprep.subr.mxu0 0.0
        %1782 = vmatpush2.msra.mxu0 0.0
        %1783 = vmatprep.subr.mxu0 0.0
        %1784 = vmatpush2.msra.mxu0 0.0
        %1785 = vmatprep.subr.mxu0 0.0
        %1786 = vmatpush2.msra.mxu0 0.0
        %1787 = vmatprep.subr.mxu0 0.0
        %1788 = vmatpush2.msra.mxu0 0.0
        %1789 = vmatprep.subr.mxu0 0.0
        %1790 = vmatpush2.msra.mxu0 0.0
        %1791 = vmatprep.subr.mxu0 0.0
        %1792 = vmatpush2.msra.mxu0 0.0
        %1793 = vmatprep.subr.mxu0 0.0
        %1794 = vmatpush2.msra.mxu0 0.0
        %1795 = vmatprep.subr.mxu0 0.0
        %1796 = vmatpush2.msra.mxu0 0.0
        %1797 = vmatprep.subr.mxu0 0.0
        %1798 = vmatpush2.msra.mxu0 0.0
        %1799 = vmatprep.subr.mxu0 0.0
        %1800 = vmatpush2.msra.mxu0 0.0
        %1801 = vmatprep.subr.mxu0 0.0
        %1802 = vmatpush2.msra.mxu0 0.0
        %1803 = vmatprep.subr.mxu0 0.0
        %1804 = vmatpush2.msra.mxu0 0.0
        %1805 = vmatprep.subr.mxu0 0.0
        %1806 = vmatpush2.msra.mxu0 0.0
        %1807 = vmatprep.subr.mxu0 0.0
        %1808 = vmatpush2.msra.mxu0 0.0
        %1809 = vmatprep.subr.mxu0 0.0
        %1810 = vmatpush2.msra.mxu0 0.0
        %1811 = vmatprep.subr.mxu0 0.0
        %1812 = vmatpush2.msra.mxu0 0.0
        %1813 = vmatprep.mubr.f32.mxu0 0.0
        %1814 = vmatmul.mubr.f32.gmra.mxu0 %v1747
        %v1815 = vpop.f32.mrf.mxu0
        %v1816 = vadd.f32 0.0, %v1815
        %v1817 = vpop.f32.mrf.mxu0
        %1818 = vdwg.mxu0
        %v1819 = vmul.f32 %v1816, %v1816
        %v1821 = vrot.slane %v1819, 7
        %v1823 = vsub.f32 %v1816, %v1821
        %v1824 = vlaneseq
        %v1825 = vshrl.u32 %v1824, 7
        %v1826 = vsub.s32 0, %v1825
        %v1827 = vrot.slane %v1816, %v1826
        %v1828 = vsub.f32 %v1725, %v1827
        %v1829 = vadd.f32 %v1823, 1e-05
        %v1830 = vrsqrt.pop %v1829
        %v1831 = vlaneseq
        %v1832 = vshrl.u32 %v1831, 7
        %v1833 = vsub.s32 1, %v1832
        %v1834 = vrot.slane %v1830, %v1833
        %v1835 = vmul.f32 %v1828, %v1834
        %s1836 = scalar_lea.vmem %s1038, 2
        %v1837 = vld [vmem:[%s1836] sm:$0x1]
        %v1839 = vlaneseq
        %v1840 = vshrl.u32 %v1839, 7
        %v1841 = vsub.s32 0, %v1840
        %v1842 = vrot.slane %v1837, %v1841
        %v1844 = vmul.f32 %v1835, %v1842
        %s1845 = scalar_lea.vmem %s1042, 2
        %v1846 = vld [vmem:[%s1845] sm:$0x1]
        %v1848 = vlaneseq
        %v1849 = vshrl.u32 %v1848, 7
        %v1850 = vsub.s32 0, %v1849
        %v1851 = vrot.slane %v1846, %v1850
        %v1853 = vadd.f32 %v1844, %v1851
        %v1854 = vmul.f32 %v1853, 0.5
        %v1855 = vmul.f32 %v1853, 0.70710677
        %v1856 = verf.f32.pop %v1855
        %v1857 = vadd.f32 %v1856, 1.0
        %v1858 = vmul.f32 %v1854, %v1857
        %v1859 = vadd.f32 %v1612, %v1858
        %v1860 = vmul.f32 %v1859, 0.33333334
        %v1861 = vpack.c.bf16 %v1860, %v1860
        %v1862 = vld [vmem:[%s1047] sm:$0xf]
        %v1863 = vld [vmem:[%s1047 + $0x4] sm:$0xf]
        %v1864 = vld [vmem:[%s1047 + $0x8] sm:$0xf]
        %v1865 = vld [vmem:[%s1047 + $0xc] sm:$0xf]
        %v1866 = vld [vmem:[%s1065] sm:$0x1]
        %v1868 = vlaneseq
        %v1869 = vshrl.u32 %v1868, 7
        %v1870 = vsub.s32 0, %v1869
        %v1871 = vrot.slane %v1866, %v1870
        %v1877 = vunpack.c.l.b16 %v1862
        %v1878 = vunpack.c.l.b16 %v1863
        %v1879 = vunpack.c.l.b16 %v1864
        %v1880 = vunpack.c.l.b16 %v1865
        %v1881 = vpack.c.b16 %v1878, %v1877
        %v1882 = vpack.c.b16 %v1880, %v1879
        %v1886 = vsel %vm1134, %v1861, 0
        %1888 = vmatprep.subr.bf16.mxu0 0
        %1889 = vmatpush1.bf16.msra.mxu0 0
        %1890 = vmatprep.subr.bf16.mxu0 0
        %1891 = vmatpush1.bf16.msra.mxu0 0
        %1892 = vmatprep.subr.bf16.mxu0 0
        %1893 = vmatpush1.bf16.msra.mxu0 0
        %1894 = vmatprep.subr.bf16.mxu0 0
        %1895 = vmatpush1.bf16.msra.mxu0 0
        %1896 = vmatprep.subr.bf16.mxu0 0
        %1897 = vmatpush1.bf16.msra.mxu0 0
        %1898 = vmatprep.subr.bf16.mxu0 0
        %1899 = vmatpush1.bf16.msra.mxu0 0
        %1900 = vmatprep.subr.bf16.mxu0 0
        %1901 = vmatpush1.bf16.msra.mxu0 %v1882
        %1902 = vmatprep.subr.bf16.mxu0 0
        %1903 = vmatpush1.bf16.msra.mxu0 %v1881
        %1904 = vmatprep.subr.bf16.mxu0 0
        %1905 = vmatpush2.bf16.msra.mxu0 0
        %1906 = vmatprep.subr.bf16.mxu0 0
        %1907 = vmatpush2.bf16.msra.mxu0 0
        %1908 = vmatprep.subr.bf16.mxu0 0
        %1909 = vmatpush2.bf16.msra.mxu0 0
        %1910 = vmatprep.subr.bf16.mxu0 0
        %1911 = vmatpush2.bf16.msra.mxu0 0
        %1912 = vmatprep.subr.bf16.mxu0 0
        %1913 = vmatpush2.bf16.msra.mxu0 0
        %1914 = vmatprep.subr.bf16.mxu0 0
        %1915 = vmatpush2.bf16.msra.mxu0 0
        %1916 = vmatprep.subr.bf16.mxu0 0
        %1917 = vmatpush2.bf16.msra.mxu0 0
        %1918 = vmatprep.subr.bf16.mxu0 0
        %1919 = vmatpush2.bf16.msra.mxu0 0
        %1920 = vmatprep.mubr.bf16.mxu0 0
        %1921 = vmatmul.mubr.bf16.gmra.mxu0 %v1886
        %v1922 = vpop.f32.mrf.mxu0
        %v1923 = vadd.f32 %v1871, %v1922
        %v1924 = vpop.f32.mrf.mxu0
        %v1925 = vpop.f32.mrf.mxu0
        %v1926 = vpop.f32.mrf.mxu0
        %1927 = vdwg.mxu0
        %v1928 = vld [vmem:[%s1052] sm:$0xf]
        %v1929 = vld [vmem:[%s1052 + $0x4] sm:$0xf]
        %v1930 = vld [vmem:[%s1052 + $0x8] sm:$0xf]
        %v1931 = vld [vmem:[%s1052 + $0xc] sm:$0xf]
        %v1932 = vld [vmem:[%s1068] sm:$0x1]
        %v1934 = vlaneseq
        %v1935 = vshrl.u32 %v1934, 7
        %v1936 = vsub.s32 0, %v1935
        %v1937 = vrot.slane %v1932, %v1936
        %v1943 = vunpack.c.l.b16 %v1928
        %v1944 = vunpack.c.l.b16 %v1929
        %v1945 = vunpack.c.l.b16 %v1930
        %v1946 = vunpack.c.l.b16 %v1931
        %v1947 = vpack.c.b16 %v1944, %v1943
        %v1948 = vpack.c.b16 %v1946, %v1945
        %1951 = vmatprep.subr.bf16.mxu0 0
        %1952 = vmatpush1.bf16.msra.mxu0 0
        %1953 = vmatprep.subr.bf16.mxu0 0
        %1954 = vmatpush1.bf16.msra.mxu0 0
        %1955 = vmatprep.subr.bf16.mxu0 0
        %1956 = vmatpush1.bf16.msra.mxu0 0
        %1957 = vmatprep.subr.bf16.mxu0 0
        %1958 = vmatpush1.bf16.msra.mxu0 0
        %1959 = vmatprep.subr.bf16.mxu0 0
        %1960 = vmatpush1.bf16.msra.mxu0 0
        %1961 = vmatprep.subr.bf16.mxu0 0
        %1962 = vmatpush1.bf16.msra.mxu0 0
        %1963 = vmatprep.subr.bf16.mxu0 0
        %1964 = vmatpush1.bf16.msra.mxu0 %v1948
        %1965 = vmatprep.subr.bf16.mxu0 0
        %1966 = vmatpush1.bf16.msra.mxu0 %v1947
        %1967 = vmatprep.subr.bf16.mxu0 0
        %1968 = vmatpush2.bf16.msra.mxu0 0
        %1969 = vmatprep.subr.bf16.mxu0 0
        %1970 = vmatpush2.bf16.msra.mxu0 0
        %1971 = vmatprep.subr.bf16.mxu0 0
        %1972 = vmatpush2.bf16.msra.mxu0 0
        %1973 = vmatprep.subr.bf16.mxu0 0
        %1974 = vmatpush2.bf16.msra.mxu0 0
        %1975 = vmatprep.subr.bf16.mxu0 0
        %1976 = vmatpush2.bf16.msra.mxu0 0
        %1977 = vmatprep.subr.bf16.mxu0 0
        %1978 = vmatpush2.bf16.msra.mxu0 0
        %1979 = vmatprep.subr.bf16.mxu0 0
        %1980 = vmatpush2.bf16.msra.mxu0 0
        %1981 = vmatprep.subr.bf16.mxu0 0
        %1982 = vmatpush2.bf16.msra.mxu0 0
        %1983 = vmatprep.mubr.bf16.mxu0 0
        %1984 = vmatmul.mubr.bf16.gmra.mxu0 %v1886
        %v1985 = vpop.f32.mrf.mxu0
        %v1986 = vadd.f32 %v1937, %v1985
        %v1987 = vpop.f32.mrf.mxu0
        %v1988 = vpop.f32.mrf.mxu0
        %v1989 = vpop.f32.mrf.mxu0
        %1990 = vdwg.mxu0
        %v1991 = vld [vmem:[%s1057] sm:$0xf]
        %v1992 = vld [vmem:[%s1057 + $0x4] sm:$0xf]
        %v1993 = vld [vmem:[%s1057 + $0x8] sm:$0xf]
        %v1994 = vld [vmem:[%s1057 + $0xc] sm:$0xf]
        %v1995 = vld [vmem:[%s1071] sm:$0x1]
        %v1997 = vlaneseq
        %v1998 = vshrl.u32 %v1997, 7
        %v1999 = vsub.s32 0, %v1998
        %v2000 = vrot.slane %v1995, %v1999
        %v2006 = vunpack.c.l.b16 %v1991
        %v2007 = vunpack.c.l.b16 %v1992
        %v2008 = vunpack.c.l.b16 %v1993
        %v2009 = vunpack.c.l.b16 %v1994
        %v2010 = vpack.c.b16 %v2007, %v2006
        %v2011 = vpack.c.b16 %v2009, %v2008
        %2014 = vmatprep.subr.bf16.mxu0 0
        %2015 = vmatpush1.bf16.msra.mxu0 0
        %2016 = vmatprep.subr.bf16.mxu0 0
        %2017 = vmatpush1.bf16.msra.mxu0 0
        %2018 = vmatprep.subr.bf16.mxu0 0
        %2019 = vmatpush1.bf16.msra.mxu0 0
        %2020 = vmatprep.subr.bf16.mxu0 0
        %2021 = vmatpush1.bf16.msra.mxu0 0
        %2022 = vmatprep.subr.bf16.mxu0 0
        %2023 = vmatpush1.bf16.msra.mxu0 0
        %2024 = vmatprep.subr.bf16.mxu0 0
        %2025 = vmatpush1.bf16.msra.mxu0 0
        %2026 = vmatprep.subr.bf16.mxu0 0
        %2027 = vmatpush1.bf16.msra.mxu0 %v2011
        %2028 = vmatprep.subr.bf16.mxu0 0
        %2029 = vmatpush1.bf16.msra.mxu0 %v2010
        %2030 = vmatprep.subr.bf16.mxu0 0
        %2031 = vmatpush2.bf16.msra.mxu0 0
        %2032 = vmatprep.subr.bf16.mxu0 0
        %2033 = vmatpush2.bf16.msra.mxu0 0
        %2034 = vmatprep.subr.bf16.mxu0 0
        %2035 = vmatpush2.bf16.msra.mxu0 0
        %2036 = vmatprep.subr.bf16.mxu0 0
        %2037 = vmatpush2.bf16.msra.mxu0 0
        %2038 = vmatprep.subr.bf16.mxu0 0
        %2039 = vmatpush2.bf16.msra.mxu0 0
        %2040 = vmatprep.subr.bf16.mxu0 0
        %2041 = vmatpush2.bf16.msra.mxu0 0
        %2042 = vmatprep.subr.bf16.mxu0 0
        %2043 = vmatpush2.bf16.msra.mxu0 0
        %2044 = vmatprep.subr.bf16.mxu0 0
        %2045 = vmatpush2.bf16.msra.mxu0 0
        %2046 = vmatprep.mubr.bf16.mxu0 0
        %2047 = vmatmul.mubr.bf16.gmra.mxu0 %v1886
        %v2048 = vpop.f32.mrf.mxu0
        %v2049 = vadd.f32 %v2000, %v2048
        %v2050 = vpop.f32.mrf.mxu0
        %v2051 = vpop.f32.mrf.mxu0
        %v2052 = vpop.f32.mrf.mxu0
        %2053 = vdwg.mxu0
        %v2054 = vpack.c.bf16 %v1923, %v1923
        %2056 = vrot.lane.b32.xlu0 %v2054, 120
        %v2057 = vpop.permute.xlu0 %2056
        %2058 = vrot.lane.b32.xlu0 %v2054, 112
        %v2059 = vpop.permute.xlu0 %2058
        %2060 = vrot.lane.b32.xlu0 %v2054, 104
        %v2061 = vpop.permute.xlu0 %2060
        %v2063 = vunpack.c.l.s4 1983009808
        %v2064 = vunpack.c.0.s8 %v2063
        %v2065 = vlaneseq
        %v2066 = vshrl.u32 %v2065, 7
        %v2067 = vsub.s32 %v2064, %v2066
        %v2068 = vrot.slane %v2054, %v2067
        %v2071 = vunpack.c.l.s4 1983009808
        %v2072 = vunpack.c.0.s8 %v2071
        %v2073 = vlaneseq
        %v2074 = vshrl.u32 %v2073, 7
        %v2075 = vsub.s32 %v2072, %v2074
        %v2076 = vrot.slane %v2059, %v2075
        %v2077 = vcombine.low %v2068, %v2076
        %v2078 = vcombine.high %v2068, %v2076
        %v2080 = vunpack.c.l.s4 1934713408
        %v2081 = vunpack.c.0.s8 %v2080
        %v2082 = vlaneseq
        %v2083 = vshrl.u32 %v2082, 7
        %v2084 = vsub.s32 %v2081, %v2083
        %v2085 = vrot.slane %v2077, %v2084
        %v2087 = vunpack.c.l.s4 1934713408
        %v2088 = vunpack.c.0.s8 %v2087
        %v2089 = vlaneseq
        %v2090 = vshrl.u32 %v2089, 7
        %v2091 = vsub.s32 %v2088, %v2090
        %v2092 = vrot.slane %v2078, %v2091
        %v2093 = vcombine.high %v2085, 0
        %v2094 = vcombine.high %v2092, 0
        %v2097 = vunpack.c.l.s4 1983009808
        %v2098 = vunpack.c.0.s8 %v2097
        %v2099 = vlaneseq
        %v2100 = vshrl.u32 %v2099, 7
        %v2101 = vsub.s32 %v2098, %v2100
        %v2102 = vrot.slane %v2057, %v2101
        %v2105 = vunpack.c.l.s4 1983009808
        %v2106 = vunpack.c.0.s8 %v2105
        %v2107 = vlaneseq
        %v2108 = vshrl.u32 %v2107, 7
        %v2109 = vsub.s32 %v2106, %v2108
        %v2110 = vrot.slane %v2061, %v2109
        %v2111 = vcombine.low %v2102, %v2110
        %v2112 = vcombine.high %v2102, %v2110
        %v2114 = vunpack.c.l.s4 1934713408
        %v2115 = vunpack.c.0.s8 %v2114
        %v2116 = vlaneseq
        %v2117 = vshrl.u32 %v2116, 7
        %v2118 = vsub.s32 %v2115, %v2117
        %v2119 = vrot.slane %v2111, %v2118
        %v2121 = vunpack.c.l.s4 1934713408
        %v2122 = vunpack.c.0.s8 %v2121
        %v2123 = vlaneseq
        %v2124 = vshrl.u32 %v2123, 7
        %v2125 = vsub.s32 %v2122, %v2124
        %v2126 = vrot.slane %v2112, %v2125
        %v2127 = vcombine.high %v2119, 0
        %v2128 = vcombine.high %v2126, 0
        %v2131 = vpack.i.b16 %v2119, %v2085
        %v2133 = vshrl.u32 %v2085, 16
        %v2134 = vshrl.u32 %v2119, 16
        %v2135 = vpack.i.b16 %v2134, %v2133
        %v2139 = vpack.i.b16 %v2127, %v2093
        %v2141 = vshrl.u32 %v2093, 16
        %v2142 = vshrl.u32 %v2127, 16
        %v2143 = vpack.i.b16 %v2142, %v2141
        %v2147 = vpack.i.b16 %v2126, %v2092
        %v2149 = vshrl.u32 %v2092, 16
        %v2150 = vshrl.u32 %v2126, 16
        %v2151 = vpack.i.b16 %v2150, %v2149
        %v2155 = vpack.i.b16 %v2128, %v2094
        %v2157 = vshrl.u32 %v2094, 16
        %v2158 = vshrl.u32 %v2128, 16
        %v2159 = vpack.i.b16 %v2158, %v2157
        %v2161 = vcombine.low %v2131, %v2147
        %v2163 = vunpack.c.l.s4 1983009808
        %v2164 = vunpack.c.0.s8 %v2163
        %v2165 = vlaneseq
        %v2166 = vshrl.u32 %v2165, 7
        %v2167 = vsub.s32 %v2164, %v2166
        %v2168 = vrot.slane %v2161, %v2167
        %v2169 = vcombine.low %v2139, %v2155
        %v2171 = vunpack.c.l.s4 1983009808
        %v2172 = vunpack.c.0.s8 %v2171
        %v2173 = vlaneseq
        %v2174 = vshrl.u32 %v2173, 7
        %v2175 = vsub.s32 %v2172, %v2174
        %v2176 = vrot.slane %v2169, %v2175
        %v2177 = vcombine.low %v2168, %v2176
        %v2179 = vunpack.c.l.s4 1934713408
        %v2180 = vunpack.c.0.s8 %v2179
        %v2181 = vlaneseq
        %v2182 = vshrl.u32 %v2181, 7
        %v2183 = vsub.s32 %v2180, %v2182
        %v2184 = vrot.slane %v2177, %v2183
        %v2185 = vcombine.high %v2184, 0
        %v2186 = vcombine.low %v2135, %v2151
        %v2188 = vunpack.c.l.s4 1983009808
        %v2189 = vunpack.c.0.s8 %v2188
        %v2190 = vlaneseq
        %v2191 = vshrl.u32 %v2190, 7
        %v2192 = vsub.s32 %v2189, %v2191
        %v2193 = vrot.slane %v2186, %v2192
        %v2194 = vcombine.low %v2143, %v2159
        %v2196 = vunpack.c.l.s4 1983009808
        %v2197 = vunpack.c.0.s8 %v2196
        %v2198 = vlaneseq
        %v2199 = vshrl.u32 %v2198, 7
        %v2200 = vsub.s32 %v2197, %v2199
        %v2201 = vrot.slane %v2194, %v2200
        %v2202 = vcombine.low %v2193, %v2201
        %v2204 = vunpack.c.l.s4 1934713408
        %v2205 = vunpack.c.0.s8 %v2204
        %v2206 = vlaneseq
        %v2207 = vshrl.u32 %v2206, 7
        %v2208 = vsub.s32 %v2205, %v2207
        %v2209 = vrot.slane %v2202, %v2208
        %v2210 = vcombine.high %v2209, 0
        %v2213 = vpack.i.b16 %v2209, %v2184
        %v2214 = vshrl.u32 %v2184, 16
        %v2215 = vshrl.u32 %v2209, 16
        %v2216 = vpack.i.b16 %v2215, %v2214
        %v2219 = vpack.i.b16 %v2210, %v2185
        %v2220 = vshrl.u32 %v2185, 16
        %v2221 = vshrl.u32 %v2210, 16
        %v2222 = vpack.i.b16 %v2221, %v2220
        %v2223 = vpack.c.bf16 %v1986, %v1986
        %2225 = vrot.lane.b32.xlu0 %v2223, 120
        %v2226 = vpop.permute.xlu0 %2225
        %2227 = vrot.lane.b32.xlu0 %v2223, 112
        %v2228 = vpop.permute.xlu0 %2227
        %2229 = vrot.lane.b32.xlu0 %v2223, 104
        %v2230 = vpop.permute.xlu0 %2229
        %v2232 = vunpack.c.l.s4 1983009808
        %v2233 = vunpack.c.0.s8 %v2232
        %v2234 = vlaneseq
        %v2235 = vshrl.u32 %v2234, 7
        %v2236 = vsub.s32 %v2233, %v2235
        %v2237 = vrot.slane %v2223, %v2236
        %v2240 = vunpack.c.l.s4 1983009808
        %v2241 = vunpack.c.0.s8 %v2240
        %v2242 = vlaneseq
        %v2243 = vshrl.u32 %v2242, 7
        %v2244 = vsub.s32 %v2241, %v2243
        %v2245 = vrot.slane %v2228, %v2244
        %v2246 = vcombine.low %v2237, %v2245
        %v2247 = vcombine.high %v2237, %v2245
        %v2249 = vunpack.c.l.s4 1934713408
        %v2250 = vunpack.c.0.s8 %v2249
        %v2251 = vlaneseq
        %v2252 = vshrl.u32 %v2251, 7
        %v2253 = vsub.s32 %v2250, %v2252
        %v2254 = vrot.slane %v2246, %v2253
        %v2256 = vunpack.c.l.s4 1934713408
        %v2257 = vunpack.c.0.s8 %v2256
        %v2258 = vlaneseq
        %v2259 = vshrl.u32 %v2258, 7
        %v2260 = vsub.s32 %v2257, %v2259
        %v2261 = vrot.slane %v2247, %v2260
        %v2262 = vcombine.high %v2254, 0
        %v2263 = vcombine.high %v2261, 0
        %v2266 = vunpack.c.l.s4 1983009808
        %v2267 = vunpack.c.0.s8 %v2266
        %v2268 = vlaneseq
        %v2269 = vshrl.u32 %v2268, 7
        %v2270 = vsub.s32 %v2267, %v2269
        %v2271 = vrot.slane %v2226, %v2270
        %v2274 = vunpack.c.l.s4 1983009808
        %v2275 = vunpack.c.0.s8 %v2274
        %v2276 = vlaneseq
        %v2277 = vshrl.u32 %v2276, 7
        %v2278 = vsub.s32 %v2275, %v2277
        %v2279 = vrot.slane %v2230, %v2278
        %v2280 = vcombine.low %v2271, %v2279
        %v2281 = vcombine.high %v2271, %v2279
        %v2283 = vunpack.c.l.s4 1934713408
        %v2284 = vunpack.c.0.s8 %v2283
        %v2285 = vlaneseq
        %v2286 = vshrl.u32 %v2285, 7
        %v2287 = vsub.s32 %v2284, %v2286
        %v2288 = vrot.slane %v2280, %v2287
        %v2290 = vunpack.c.l.s4 1934713408
        %v2291 = vunpack.c.0.s8 %v2290
        %v2292 = vlaneseq
        %v2293 = vshrl.u32 %v2292, 7
        %v2294 = vsub.s32 %v2291, %v2293
        %v2295 = vrot.slane %v2281, %v2294
        %v2296 = vcombine.high %v2288, 0
        %v2297 = vcombine.high %v2295, 0
        %v2300 = vpack.i.b16 %v2288, %v2254
        %v2302 = vshrl.u32 %v2254, 16
        %v2303 = vshrl.u32 %v2288, 16
        %v2304 = vpack.i.b16 %v2303, %v2302
        %v2308 = vpack.i.b16 %v2296, %v2262
        %v2310 = vshrl.u32 %v2262, 16
        %v2311 = vshrl.u32 %v2296, 16
        %v2312 = vpack.i.b16 %v2311, %v2310
        %v2316 = vpack.i.b16 %v2295, %v2261
        %v2318 = vshrl.u32 %v2261, 16
        %v2319 = vshrl.u32 %v2295, 16
        %v2320 = vpack.i.b16 %v2319, %v2318
        %v2324 = vpack.i.b16 %v2297, %v2263
        %v2326 = vshrl.u32 %v2263, 16
        %v2327 = vshrl.u32 %v2297, 16
        %v2328 = vpack.i.b16 %v2327, %v2326
        %v2330 = vcombine.low %v2300, %v2316
        %v2332 = vunpack.c.l.s4 1983009808
        %v2333 = vunpack.c.0.s8 %v2332
        %v2334 = vlaneseq
        %v2335 = vshrl.u32 %v2334, 7
        %v2336 = vsub.s32 %v2333, %v2335
        %v2337 = vrot.slane %v2330, %v2336
        %v2338 = vcombine.low %v2308, %v2324
        %v2340 = vunpack.c.l.s4 1983009808
        %v2341 = vunpack.c.0.s8 %v2340
        %v2342 = vlaneseq
        %v2343 = vshrl.u32 %v2342, 7
        %v2344 = vsub.s32 %v2341, %v2343
        %v2345 = vrot.slane %v2338, %v2344
        %v2346 = vcombine.low %v2337, %v2345
        %v2348 = vunpack.c.l.s4 1934713408
        %v2349 = vunpack.c.0.s8 %v2348
        %v2350 = vlaneseq
        %v2351 = vshrl.u32 %v2350, 7
        %v2352 = vsub.s32 %v2349, %v2351
        %v2353 = vrot.slane %v2346, %v2352
        %v2354 = vcombine.high %v2353, 0
        %v2355 = vcombine.low %v2304, %v2320
        %v2357 = vunpack.c.l.s4 1983009808
        %v2358 = vunpack.c.0.s8 %v2357
        %v2359 = vlaneseq
        %v2360 = vshrl.u32 %v2359, 7
        %v2361 = vsub.s32 %v2358, %v2360
        %v2362 = vrot.slane %v2355, %v2361
        %v2363 = vcombine.low %v2312, %v2328
        %v2365 = vunpack.c.l.s4 1983009808
        %v2366 = vunpack.c.0.s8 %v2365
        %v2367 = vlaneseq
        %v2368 = vshrl.u32 %v2367, 7
        %v2369 = vsub.s32 %v2366, %v2368
        %v2370 = vrot.slane %v2363, %v2369
        %v2371 = vcombine.low %v2362, %v2370
        %v2373 = vunpack.c.l.s4 1934713408
        %v2374 = vunpack.c.0.s8 %v2373
        %v2375 = vlaneseq
        %v2376 = vshrl.u32 %v2375, 7
        %v2377 = vsub.s32 %v2374, %v2376
        %v2378 = vrot.slane %v2371, %v2377
        %v2379 = vcombine.high %v2378, 0
        %v2382 = vpack.i.b16 %v2378, %v2353
        %v2383 = vshrl.u32 %v2353, 16
        %v2384 = vshrl.u32 %v2378, 16
        %v2385 = vpack.i.b16 %v2384, %v2383
        %v2388 = vpack.i.b16 %v2379, %v2354
        %v2389 = vshrl.u32 %v2354, 16
        %v2390 = vshrl.u32 %v2379, 16
        %v2391 = vpack.i.b16 %v2390, %v2389
        %v2392 = vpack.c.bf16 %v2049, %v2049
        %2394 = vrot.lane.b32.xlu0 %v2392, 120
        %v2395 = vpop.permute.xlu0 %2394
        %2396 = vrot.lane.b32.xlu0 %v2392, 112
        %v2397 = vpop.permute.xlu0 %2396
        %2398 = vrot.lane.b32.xlu0 %v2392, 104
        %v2399 = vpop.permute.xlu0 %2398
        %v2401 = vunpack.c.l.s4 1983009808
        %v2402 = vunpack.c.0.s8 %v2401
        %v2403 = vlaneseq
        %v2404 = vshrl.u32 %v2403, 7
        %v2405 = vsub.s32 %v2402, %v2404
        %v2406 = vrot.slane %v2392, %v2405
        %v2409 = vunpack.c.l.s4 1983009808
        %v2410 = vunpack.c.0.s8 %v2409
        %v2411 = vlaneseq
        %v2412 = vshrl.u32 %v2411, 7
        %v2413 = vsub.s32 %v2410, %v2412
        %v2414 = vrot.slane %v2397, %v2413
        %v2415 = vcombine.low %v2406, %v2414
        %v2416 = vcombine.high %v2406, %v2414
        %v2418 = vunpack.c.l.s4 1934713408
        %v2419 = vunpack.c.0.s8 %v2418
        %v2420 = vlaneseq
        %v2421 = vshrl.u32 %v2420, 7
        %v2422 = vsub.s32 %v2419, %v2421
        %v2423 = vrot.slane %v2415, %v2422
        %v2425 = vunpack.c.l.s4 1934713408
        %v2426 = vunpack.c.0.s8 %v2425
        %v2427 = vlaneseq
        %v2428 = vshrl.u32 %v2427, 7
        %v2429 = vsub.s32 %v2426, %v2428
        %v2430 = vrot.slane %v2416, %v2429
        %v2431 = vcombine.high %v2423, 0
        %v2432 = vcombine.high %v2430, 0
        %v2435 = vunpack.c.l.s4 1983009808
        %v2436 = vunpack.c.0.s8 %v2435
        %v2437 = vlaneseq
        %v2438 = vshrl.u32 %v2437, 7
        %v2439 = vsub.s32 %v2436, %v2438
        %v2440 = vrot.slane %v2395, %v2439
        %v2443 = vunpack.c.l.s4 1983009808
        %v2444 = vunpack.c.0.s8 %v2443
        %v2445 = vlaneseq
        %v2446 = vshrl.u32 %v2445, 7
        %v2447 = vsub.s32 %v2444, %v2446
        %v2448 = vrot.slane %v2399, %v2447
        %v2449 = vcombine.low %v2440, %v2448
        %v2450 = vcombine.high %v2440, %v2448
        %v2452 = vunpack.c.l.s4 1934713408
        %v2453 = vunpack.c.0.s8 %v2452
        %v2454 = vlaneseq
        %v2455 = vshrl.u32 %v2454, 7
        %v2456 = vsub.s32 %v2453, %v2455
        %v2457 = vrot.slane %v2449, %v2456
        %v2459 = vunpack.c.l.s4 1934713408
        %v2460 = vunpack.c.0.s8 %v2459
        %v2461 = vlaneseq
        %v2462 = vshrl.u32 %v2461, 7
        %v2463 = vsub.s32 %v2460, %v2462
        %v2464 = vrot.slane %v2450, %v2463
        %v2465 = vcombine.high %v2457, 0
        %v2466 = vcombine.high %v2464, 0
        %v2469 = vpack.i.b16 %v2457, %v2423
        %v2471 = vshrl.u32 %v2423, 16
        %v2472 = vshrl.u32 %v2457, 16
        %v2473 = vpack.i.b16 %v2472, %v2471
        %v2477 = vpack.i.b16 %v2465, %v2431
        %v2479 = vshrl.u32 %v2431, 16
        %v2480 = vshrl.u32 %v2465, 16
        %v2481 = vpack.i.b16 %v2480, %v2479
        %v2485 = vpack.i.b16 %v2464, %v2430
        %v2487 = vshrl.u32 %v2430, 16
        %v2488 = vshrl.u32 %v2464, 16
        %v2489 = vpack.i.b16 %v2488, %v2487
        %v2493 = vpack.i.b16 %v2466, %v2432
        %v2495 = vshrl.u32 %v2432, 16
        %v2496 = vshrl.u32 %v2466, 16
        %v2497 = vpack.i.b16 %v2496, %v2495
        %v2499 = vcombine.low %v2469, %v2485
        %v2501 = vunpack.c.l.s4 1983009808
        %v2502 = vunpack.c.0.s8 %v2501
        %v2503 = vlaneseq
        %v2504 = vshrl.u32 %v2503, 7
        %v2505 = vsub.s32 %v2502, %v2504
        %v2506 = vrot.slane %v2499, %v2505
        %v2507 = vcombine.low %v2477, %v2493
        %v2509 = vunpack.c.l.s4 1983009808
        %v2510 = vunpack.c.0.s8 %v2509
        %v2511 = vlaneseq
        %v2512 = vshrl.u32 %v2511, 7
        %v2513 = vsub.s32 %v2510, %v2512
        %v2514 = vrot.slane %v2507, %v2513
        %v2515 = vcombine.low %v2506, %v2514
        %v2517 = vunpack.c.l.s4 1934713408
        %v2518 = vunpack.c.0.s8 %v2517
        %v2519 = vlaneseq
        %v2520 = vshrl.u32 %v2519, 7
        %v2521 = vsub.s32 %v2518, %v2520
        %v2522 = vrot.slane %v2515, %v2521
        %v2523 = vcombine.high %v2522, 0
        %v2524 = vcombine.low %v2473, %v2489
        %v2526 = vunpack.c.l.s4 1983009808
        %v2527 = vunpack.c.0.s8 %v2526
        %v2528 = vlaneseq
        %v2529 = vshrl.u32 %v2528, 7
        %v2530 = vsub.s32 %v2527, %v2529
        %v2531 = vrot.slane %v2524, %v2530
        %v2532 = vcombine.low %v2481, %v2497
        %v2534 = vunpack.c.l.s4 1983009808
        %v2535 = vunpack.c.0.s8 %v2534
        %v2536 = vlaneseq
        %v2537 = vshrl.u32 %v2536, 7
        %v2538 = vsub.s32 %v2535, %v2537
        %v2539 = vrot.slane %v2532, %v2538
        %v2540 = vcombine.low %v2531, %v2539
        %v2542 = vunpack.c.l.s4 1934713408
        %v2543 = vunpack.c.0.s8 %v2542
        %v2544 = vlaneseq
        %v2545 = vshrl.u32 %v2544, 7
        %v2546 = vsub.s32 %v2543, %v2545
        %v2547 = vrot.slane %v2540, %v2546
        %v2548 = vcombine.high %v2547, 0
        %v2551 = vpack.i.b16 %v2547, %v2522
        %v2552 = vshrl.u32 %v2522, 16
        %v2553 = vshrl.u32 %v2547, 16
        %v2554 = vpack.i.b16 %v2553, %v2552
        %v2557 = vpack.i.b16 %v2548, %v2523
        %v2558 = vshrl.u32 %v2523, 16
        %v2559 = vshrl.u32 %v2548, 16
        %v2560 = vpack.i.b16 %v2559, %v2558
        %v2562 = vlaneseq
        %v2563 = vshrl.u32 %v2562, 7
        %v2564 = vsub.s32 0, %v2563
        %v2565 = vrot.slane %v1113, %v2564
        %vm2567 = vcmask 64512
        %v2569 = vsel %vm2567, %v2213, 0
        %v2572 = vsel %vm2567, %v2382, 0
        %2574 = vmatprep.subr.bf16.mxu0 0
        %2575 = vmatpush1.bf16.xpose.msra.mxu0 0
        %2576 = vmatprep.subr.bf16.mxu0 0
        %2577 = vmatpush1.bf16.xpose.msra.mxu0 0
        %2578 = vmatprep.subr.bf16.mxu0 0
        %2579 = vmatpush1.bf16.xpose.msra.mxu0 0
        %2580 = vmatprep.subr.bf16.mxu0 0
        %2581 = vmatpush1.bf16.xpose.msra.mxu0 0
        %2582 = vmatprep.subr.bf16.mxu0 0
        %2583 = vmatpush1.bf16.xpose.msra.mxu0 0
        %2584 = vmatprep.subr.bf16.mxu0 0
        %2585 = vmatpush1.bf16.xpose.msra.mxu0 0
        %2586 = vmatprep.subr.bf16.mxu0 0
        %2587 = vmatpush1.bf16.xpose.msra.mxu0 0
        %2588 = vmatprep.subr.bf16.mxu0 0
        %2589 = vmatpush1.bf16.xpose.msra.mxu0 %v2572
        %2590 = vmatprep.subr.bf16.mxu0 0
        %2591 = vmatpush2.bf16.xpose.msra.mxu0 0
        %2592 = vmatprep.subr.bf16.mxu0 0
        %2593 = vmatpush2.bf16.xpose.msra.mxu0 0
        %2594 = vmatprep.subr.bf16.mxu0 0
        %2595 = vmatpush2.bf16.xpose.msra.mxu0 0
        %2596 = vmatprep.subr.bf16.mxu0 0
        %2597 = vmatpush2.bf16.xpose.msra.mxu0 0
        %2598 = vmatprep.subr.bf16.mxu0 0
        %2599 = vmatpush2.bf16.xpose.msra.mxu0 0
        %2600 = vmatprep.subr.bf16.mxu0 0
        %2601 = vmatpush2.bf16.xpose.msra.mxu0 0
        %2602 = vmatprep.subr.bf16.mxu0 0
        %2603 = vmatpush2.bf16.xpose.msra.mxu0 0
        %2604 = vmatprep.subr.bf16.mxu0 0
        %2605 = vmatpush2.bf16.xpose.msra.mxu0 0
        %2606 = vmatprep.mubr.bf16.mxu0 0
        %2607 = vmatmul.mubr.bf16.gmra.mxu0 %v2569
        %v2608 = vpop.f32.mrf.mxu0
        %v2609 = vadd.f32 %v2565, %v2608
        %v2610 = vpop.f32.mrf.mxu0
        %v2611 = vpop.f32.mrf.mxu0
        %v2612 = vpop.f32.mrf.mxu0
        %2613 = vdwg.mxu0
        %v2615 = vsel %vm2567, %v2216, 0
        %v2618 = vsel %vm2567, %v2385, 0
        %2620 = vmatprep.subr.bf16.mxu0 0
        %2621 = vmatpush1.bf16.xpose.msra.mxu0 0
        %2622 = vmatprep.subr.bf16.mxu0 0
        %2623 = vmatpush1.bf16.xpose.msra.mxu0 0
        %2624 = vmatprep.subr.bf16.mxu0 0
        %2625 = vmatpush1.bf16.xpose.msra.mxu0 0
        %2626 = vmatprep.subr.bf16.mxu0 0
        %2627 = vmatpush1.bf16.xpose.msra.mxu0 0
        %2628 = vmatprep.subr.bf16.mxu0 0
        %2629 = vmatpush1.bf16.xpose.msra.mxu0 0
        %2630 = vmatprep.subr.bf16.mxu0 0
        %2631 = vmatpush1.bf16.xpose.msra.mxu0 0
        %2632 = vmatprep.subr.bf16.mxu0 0
        %2633 = vmatpush1.bf16.xpose.msra.mxu0 0
        %2634 = vmatprep.subr.bf16.mxu0 0
        %2635 = vmatpush1.bf16.xpose.msra.mxu0 %v2618
        %2636 = vmatprep.subr.bf16.mxu0 0
        %2637 = vmatpush2.bf16.xpose.msra.mxu0 0
        %2638 = vmatprep.subr.bf16.mxu0 0
        %2639 = vmatpush2.bf16.xpose.msra.mxu0 0
        %2640 = vmatprep.subr.bf16.mxu0 0
        %2641 = vmatpush2.bf16.xpose.msra.mxu0 0
        %2642 = vmatprep.subr.bf16.mxu0 0
        %2643 = vmatpush2.bf16.xpose.msra.mxu0 0
        %2644 = vmatprep.subr.bf16.mxu0 0
        %2645 = vmatpush2.bf16.xpose.msra.mxu0 0
        %2646 = vmatprep.subr.bf16.mxu0 0
        %2647 = vmatpush2.bf16.xpose.msra.mxu0 0
        %2648 = vmatprep.subr.bf16.mxu0 0
        %2649 = vmatpush2.bf16.xpose.msra.mxu0 0
        %2650 = vmatprep.subr.bf16.mxu0 0
        %2651 = vmatpush2.bf16.xpose.msra.mxu0 0
        %2652 = vmatprep.mubr.bf16.mxu0 0
        %2653 = vmatmul.mubr.bf16.gmra.mxu0 %v2615
        %v2654 = vpop.f32.mrf.mxu0
        %v2655 = vadd.f32 %v2565, %v2654
        %v2656 = vpop.f32.mrf.mxu0
        %v2657 = vpop.f32.mrf.mxu0
        %v2658 = vpop.f32.mrf.mxu0
        %2659 = vdwg.mxu0
        %v2661 = vsel %vm2567, %v2219, 0
        %v2664 = vsel %vm2567, %v2388, 0
        %2666 = vmatprep.subr.bf16.mxu0 0
        %2667 = vmatpush1.bf16.xpose.msra.mxu0 0
        %2668 = vmatprep.subr.bf16.mxu0 0
        %2669 = vmatpush1.bf16.xpose.msra.mxu0 0
        %2670 = vmatprep.subr.bf16.mxu0 0
        %2671 = vmatpush1.bf16.xpose.msra.mxu0 0
        %2672 = vmatprep.subr.bf16.mxu0 0
        %2673 = vmatpush1.bf16.xpose.msra.mxu0 0
        %2674 = vmatprep.subr.bf16.mxu0 0
        %2675 = vmatpush1.bf16.xpose.msra.mxu0 0
        %2676 = vmatprep.subr.bf16.mxu0 0
        %2677 = vmatpush1.bf16.xpose.msra.mxu0 0
        %2678 = vmatprep.subr.bf16.mxu0 0
        %2679 = vmatpush1.bf16.xpose.msra.mxu0 0
        %2680 = vmatprep.subr.bf16.mxu0 0
        %2681 = vmatpush1.bf16.xpose.msra.mxu0 %v2664
        %2682 = vmatprep.subr.bf16.mxu0 0
        %2683 = vmatpush2.bf16.xpose.msra.mxu0 0
        %2684 = vmatprep.subr.bf16.mxu0 0
        %2685 = vmatpush2.bf16.xpose.msra.mxu0 0
        %2686 = vmatprep.subr.bf16.mxu0 0
        %2687 = vmatpush2.bf16.xpose.msra.mxu0 0
        %2688 = vmatprep.subr.bf16.mxu0 0
        %2689 = vmatpush2.bf16.xpose.msra.mxu0 0
        %2690 = vmatprep.subr.bf16.mxu0 0
        %2691 = vmatpush2.bf16.xpose.msra.mxu0 0
        %2692 = vmatprep.subr.bf16.mxu0 0
        %2693 = vmatpush2.bf16.xpose.msra.mxu0 0
        %2694 = vmatprep.subr.bf16.mxu0 0
        %2695 = vmatpush2.bf16.xpose.msra.mxu0 0
        %2696 = vmatprep.subr.bf16.mxu0 0
        %2697 = vmatpush2.bf16.xpose.msra.mxu0 0
        %2698 = vmatprep.mubr.bf16.mxu0 0
        %2699 = vmatmul.mubr.bf16.gmra.mxu0 %v2661
        %v2700 = vpop.f32.mrf.mxu0
        %v2701 = vadd.f32 %v2565, %v2700
        %v2702 = vpop.f32.mrf.mxu0
        %v2703 = vpop.f32.mrf.mxu0
        %v2704 = vpop.f32.mrf.mxu0
        %2705 = vdwg.mxu0
        %v2707 = vsel %vm2567, %v2222, 0
        %v2710 = vsel %vm2567, %v2391, 0
        %2712 = vmatprep.subr.bf16.mxu0 0
        %2713 = vmatpush1.bf16.xpose.msra.mxu0 0
        %2714 = vmatprep.subr.bf16.mxu0 0
        %2715 = vmatpush1.bf16.xpose.msra.mxu0 0
        %2716 = vmatprep.subr.bf16.mxu0 0
        %2717 = vmatpush1.bf16.xpose.msra.mxu0 0
        %2718 = vmatprep.subr.bf16.mxu0 0
        %2719 = vmatpush1.bf16.xpose.msra.mxu0 0
        %2720 = vmatprep.subr.bf16.mxu0 0
        %2721 = vmatpush1.bf16.xpose.msra.mxu0 0
        %2722 = vmatprep.subr.bf16.mxu0 0
        %2723 = vmatpush1.bf16.xpose.msra.mxu0 0
        %2724 = vmatprep.subr.bf16.mxu0 0
        %2725 = vmatpush1.bf16.xpose.msra.mxu0 0
        %2726 = vmatprep.subr.bf16.mxu0 0
        %2727 = vmatpush1.bf16.xpose.msra.mxu0 %v2710
        %2728 = vmatprep.subr.bf16.mxu0 0
        %2729 = vmatpush2.bf16.xpose.msra.mxu0 0
        %2730 = vmatprep.subr.bf16.mxu0 0
        %2731 = vmatpush2.bf16.xpose.msra.mxu0 0
        %2732 = vmatprep.subr.bf16.mxu0 0
        %2733 = vmatpush2.bf16.xpose.msra.mxu0 0
        %2734 = vmatprep.subr.bf16.mxu0 0
        %2735 = vmatpush2.bf16.xpose.msra.mxu0 0
        %2736 = vmatprep.subr.bf16.mxu0 0
        %2737 = vmatpush2.bf16.xpose.msra.mxu0 0
        %2738 = vmatprep.subr.bf16.mxu0 0
        %2739 = vmatpush2.bf16.xpose.msra.mxu0 0
        %2740 = vmatprep.subr.bf16.mxu0 0
        %2741 = vmatpush2.bf16.xpose.msra.mxu0 0
        %2742 = vmatprep.subr.bf16.mxu0 0
        %2743 = vmatpush2.bf16.xpose.msra.mxu0 0
        %2744 = vmatprep.mubr.bf16.mxu0 0
        %2745 = vmatmul.mubr.bf16.gmra.mxu0 %v2707
        %v2746 = vpop.f32.mrf.mxu0
        %v2747 = vadd.f32 %v2565, %v2746
        %v2748 = vpop.f32.mrf.mxu0
        %v2749 = vpop.f32.mrf.mxu0
        %v2750 = vpop.f32.mrf.mxu0
        %2751 = vdwg.mxu0
        %v2752 = vsel %vm2567, %v2609, -inf
        %2753 = vmax.xlane.f32.xlu0 %v2752
        %v2754 = vpop.xlane.xlu0 %2753
        %v2755 = vsel %vm2567, %v2655, -inf
        %2756 = vmax.xlane.f32.xlu0 %v2755
        %v2757 = vpop.xlane.xlu0 %2756
        %v2758 = vsel %vm2567, %v2701, -inf
        %2759 = vmax.xlane.f32.xlu0 %v2758
        %v2760 = vpop.xlane.xlu0 %2759
        %v2761 = vsel %vm2567, %v2747, -inf
        %2762 = vmax.xlane.f32.xlu0 %v2761
        %v2763 = vpop.xlane.xlu0 %2762
        %v2764 = vsub.f32 %v2609, %v2754
        %v2765 = vsub.f32 %v2655, %v2757
        %v2766 = vsub.f32 %v2701, %v2760
        %v2767 = vsub.f32 %v2747, %v2763
        %v2768 = vmul.f32 %v2764, 1.442695
        %v2769 = vpow.pop %v2768
        %v2770 = vmul.f32 %v2765, 1.442695
        %v2771 = vpow.pop %v2770
        %v2772 = vmul.f32 %v2766, 1.442695
        %v2773 = vpow.pop %v2772
        %v2774 = vmul.f32 %v2767, 1.442695
        %v2775 = vpow.pop %v2774
        %v2776 = vsel %vm2567, %v2769, 0.0
        %2777 = vadd.xlane.f32.xlu0 %v2776
        %v2778 = vpop.xlane.xlu0 %2777
        %v2779 = vsel %vm2567, %v2771, 0.0
        %2780 = vadd.xlane.f32.xlu0 %v2779
        %v2781 = vpop.xlane.xlu0 %2780
        %v2782 = vsel %vm2567, %v2773, 0.0
        %2783 = vadd.xlane.f32.xlu0 %v2782
        %v2784 = vpop.xlane.xlu0 %2783
        %v2785 = vsel %vm2567, %v2775, 0.0
        %2786 = vadd.xlane.f32.xlu0 %v2785
        %v2787 = vpop.xlane.xlu0 %2786
        %v2788 = vrcp.pop %v2778
        %v2789 = vmul.f32 %v2769, %v2788
        %v2790 = vrcp.pop %v2781
        %v2791 = vmul.f32 %v2771, %v2790
        %v2792 = vrcp.pop %v2784
        %v2793 = vmul.f32 %v2773, %v2792
        %v2794 = vrcp.pop %v2787
        %v2795 = vmul.f32 %v2775, %v2794
        %2796 = vst.msk [vmem:[%s1018] sm:$0xff] %vm2567, %v2789
        %2797 = vst.msk [vmem:[%s1018 + $0x8] sm:$0xff] %vm2567, %v2791
        %2798 = vst.msk [vmem:[%s1018 + $0x10] sm:$0xff] %vm2567, %v2793
        %2799 = vst.msk [vmem:[%s1018 + $0x18] sm:$0xff] %vm2567, %v2795
        %v2800 = vpack.c.bf16 %v2789, %v2789
        %v2801 = vpack.c.bf16 %v2791, %v2791
        %v2802 = vpack.c.bf16 %v2793, %v2793
        %v2803 = vpack.c.bf16 %v2795, %v2795
        %v2805 = vsel %vm2567, %v2800, 0
        %vm2807 = vcmask 1043456
        %v2809 = vsel %vm2807, %v2551, 0
        %2811 = vmatprep.subr.bf16.mxu0 0
        %2812 = vmatpush1.bf16.msra.mxu0 0
        %2813 = vmatprep.subr.bf16.mxu0 0
        %2814 = vmatpush1.bf16.msra.mxu0 0
        %2815 = vmatprep.subr.bf16.mxu0 0
        %2816 = vmatpush1.bf16.msra.mxu0 0
        %2817 = vmatprep.subr.bf16.mxu0 0
        %2818 = vmatpush1.bf16.msra.mxu0 0
        %2819 = vmatprep.subr.bf16.mxu0 0
        %2820 = vmatpush1.bf16.msra.mxu0 0
        %2821 = vmatprep.subr.bf16.mxu0 0
        %2822 = vmatpush1.bf16.msra.mxu0 0
        %2823 = vmatprep.subr.bf16.mxu0 0
        %2824 = vmatpush1.bf16.msra.mxu0 0
        %2825 = vmatprep.subr.bf16.mxu0 0
        %2826 = vmatpush1.bf16.msra.mxu0 %v2809
        %2827 = vmatprep.subr.bf16.mxu0 0
        %2828 = vmatpush2.bf16.msra.mxu0 0
        %2829 = vmatprep.subr.bf16.mxu0 0
        %2830 = vmatpush2.bf16.msra.mxu0 0
        %2831 = vmatprep.subr.bf16.mxu0 0
        %2832 = vmatpush2.bf16.msra.mxu0 0
        %2833 = vmatprep.subr.bf16.mxu0 0
        %2834 = vmatpush2.bf16.msra.mxu0 0
        %2835 = vmatprep.subr.bf16.mxu0 0
        %2836 = vmatpush2.bf16.msra.mxu0 0
        %2837 = vmatprep.subr.bf16.mxu0 0
        %2838 = vmatpush2.bf16.msra.mxu0 0
        %2839 = vmatprep.subr.bf16.mxu0 0
        %2840 = vmatpush2.bf16.msra.mxu0 0
        %2841 = vmatprep.subr.bf16.mxu0 0
        %2842 = vmatpush2.bf16.msra.mxu0 0
        %2843 = vmatprep.mubr.bf16.mxu0 0
        %2844 = vmatmul.mubr.bf16.gmra.mxu0 %v2805
        %v2845 = vpop.f32.mrf.mxu0
        %v2846 = vadd.f32 0.0, %v2845
        %v2847 = vpop.f32.mrf.mxu0
        %v2848 = vpop.f32.mrf.mxu0
        %v2849 = vpop.f32.mrf.mxu0
        %2850 = vdwg.mxu0
        %v2852 = vsel %vm2567, %v2801, 0
        %v2855 = vsel %vm2807, %v2554, 0
        %2857 = vmatprep.subr.bf16.mxu0 0
        %2858 = vmatpush1.bf16.msra.mxu0 0
        %2859 = vmatprep.subr.bf16.mxu0 0
        %2860 = vmatpush1.bf16.msra.mxu0 0
        %2861 = vmatprep.subr.bf16.mxu0 0
        %2862 = vmatpush1.bf16.msra.mxu0 0
        %2863 = vmatprep.subr.bf16.mxu0 0
        %2864 = vmatpush1.bf16.msra.mxu0 0
        %2865 = vmatprep.subr.bf16.mxu0 0
        %2866 = vmatpush1.bf16.msra.mxu0 0
        %2867 = vmatprep.subr.bf16.mxu0 0
        %2868 = vmatpush1.bf16.msra.mxu0 0
        %2869 = vmatprep.subr.bf16.mxu0 0
        %2870 = vmatpush1.bf16.msra.mxu0 0
        %2871 = vmatprep.subr.bf16.mxu0 0
        %2872 = vmatpush1.bf16.msra.mxu0 %v2855
        %2873 = vmatprep.subr.bf16.mxu0 0
        %2874 = vmatpush2.bf16.msra.mxu0 0
        %2875 = vmatprep.subr.bf16.mxu0 0
        %2876 = vmatpush2.bf16.msra.mxu0 0
        %2877 = vmatprep.subr.bf16.mxu0 0
        %2878 = vmatpush2.bf16.msra.mxu0 0
        %2879 = vmatprep.subr.bf16.mxu0 0
        %2880 = vmatpush2.bf16.msra.mxu0 0
        %2881 = vmatprep.subr.bf16.mxu0 0
        %2882 = vmatpush2.bf16.msra.mxu0 0
        %2883 = vmatprep.subr.bf16.mxu0 0
        %2884 = vmatpush2.bf16.msra.mxu0 0
        %2885 = vmatprep.subr.bf16.mxu0 0
        %2886 = vmatpush2.bf16.msra.mxu0 0
        %2887 = vmatprep.subr.bf16.mxu0 0
        %2888 = vmatpush2.bf16.msra.mxu0 0
        %2889 = vmatprep.mubr.bf16.mxu0 0
        %2890 = vmatmul.mubr.bf16.gmra.mxu0 %v2852
        %v2891 = vpop.f32.mrf.mxu0
        %v2892 = vadd.f32 0.0, %v2891
        %v2893 = vpop.f32.mrf.mxu0
        %v2894 = vpop.f32.mrf.mxu0
        %v2895 = vpop.f32.mrf.mxu0
        %2896 = vdwg.mxu0
        %v2898 = vsel %vm2567, %v2802, 0
        %v2901 = vsel %vm2807, %v2557, 0
        %2903 = vmatprep.subr.bf16.mxu0 0
        %2904 = vmatpush1.bf16.msra.mxu0 0
        %2905 = vmatprep.subr.bf16.mxu0 0
        %2906 = vmatpush1.bf16.msra.mxu0 0
        %2907 = vmatprep.subr.bf16.mxu0 0
        %2908 = vmatpush1.bf16.msra.mxu0 0
        %2909 = vmatprep.subr.bf16.mxu0 0
        %2910 = vmatpush1.bf16.msra.mxu0 0
        %2911 = vmatprep.subr.bf16.mxu0 0
        %2912 = vmatpush1.bf16.msra.mxu0 0
        %2913 = vmatprep.subr.bf16.mxu0 0
        %2914 = vmatpush1.bf16.msra.mxu0 0
        %2915 = vmatprep.subr.bf16.mxu0 0
        %2916 = vmatpush1.bf16.msra.mxu0 0
        %2917 = vmatprep.subr.bf16.mxu0 0
        %2918 = vmatpush1.bf16.msra.mxu0 %v2901
        %2919 = vmatprep.subr.bf16.mxu0 0
        %2920 = vmatpush2.bf16.msra.mxu0 0
        %2921 = vmatprep.subr.bf16.mxu0 0
        %2922 = vmatpush2.bf16.msra.mxu0 0
        %2923 = vmatprep.subr.bf16.mxu0 0
        %2924 = vmatpush2.bf16.msra.mxu0 0
        %2925 = vmatprep.subr.bf16.mxu0 0
        %2926 = vmatpush2.bf16.msra.mxu0 0
        %2927 = vmatprep.subr.bf16.mxu0 0
        %2928 = vmatpush2.bf16.msra.mxu0 0
        %2929 = vmatprep.subr.bf16.mxu0 0
        %2930 = vmatpush2.bf16.msra.mxu0 0
        %2931 = vmatprep.subr.bf16.mxu0 0
        %2932 = vmatpush2.bf16.msra.mxu0 0
        %2933 = vmatprep.subr.bf16.mxu0 0
        %2934 = vmatpush2.bf16.msra.mxu0 0
        %2935 = vmatprep.mubr.bf16.mxu0 0
        %2936 = vmatmul.mubr.bf16.gmra.mxu0 %v2898
        %v2937 = vpop.f32.mrf.mxu0
        %v2938 = vadd.f32 0.0, %v2937
        %v2939 = vpop.f32.mrf.mxu0
        %v2940 = vpop.f32.mrf.mxu0
        %v2941 = vpop.f32.mrf.mxu0
        %2942 = vdwg.mxu0
        %v2944 = vsel %vm2567, %v2803, 0
        %v2947 = vsel %vm2807, %v2560, 0
        %2949 = vmatprep.subr.bf16.mxu0 0
        %2950 = vmatpush1.bf16.msra.mxu0 0
        %2951 = vmatprep.subr.bf16.mxu0 0
        %2952 = vmatpush1.bf16.msra.mxu0 0
        %2953 = vmatprep.subr.bf16.mxu0 0
        %2954 = vmatpush1.bf16.msra.mxu0 0
        %2955 = vmatprep.subr.bf16.mxu0 0
        %2956 = vmatpush1.bf16.msra.mxu0 0
        %2957 = vmatprep.subr.bf16.mxu0 0
        %2958 = vmatpush1.bf16.msra.mxu0 0
        %2959 = vmatprep.subr.bf16.mxu0 0
        %2960 = vmatpush1.bf16.msra.mxu0 0
        %2961 = vmatprep.subr.bf16.mxu0 0
        %2962 = vmatpush1.bf16.msra.mxu0 0
        %2963 = vmatprep.subr.bf16.mxu0 0
        %2964 = vmatpush1.bf16.msra.mxu0 %v2947
        %2965 = vmatprep.subr.bf16.mxu0 0
        %2966 = vmatpush2.bf16.msra.mxu0 0
        %2967 = vmatprep.subr.bf16.mxu0 0
        %2968 = vmatpush2.bf16.msra.mxu0 0
        %2969 = vmatprep.subr.bf16.mxu0 0
        %2970 = vmatpush2.bf16.msra.mxu0 0
        %2971 = vmatprep.subr.bf16.mxu0 0
        %2972 = vmatpush2.bf16.msra.mxu0 0
        %2973 = vmatprep.subr.bf16.mxu0 0
        %2974 = vmatpush2.bf16.msra.mxu0 0
        %2975 = vmatprep.subr.bf16.mxu0 0
        %2976 = vmatpush2.bf16.msra.mxu0 0
        %2977 = vmatprep.subr.bf16.mxu0 0
        %2978 = vmatpush2.bf16.msra.mxu0 0
        %2979 = vmatprep.subr.bf16.mxu0 0
        %2980 = vmatpush2.bf16.msra.mxu0 0
        %2981 = vmatprep.mubr.bf16.mxu0 0
        %2982 = vmatmul.mubr.bf16.gmra.mxu0 %v2944
        %v2983 = vpop.f32.mrf.mxu0
        %v2984 = vadd.f32 0.0, %v2983
        %v2985 = vpop.f32.mrf.mxu0
        %v2986 = vpop.f32.mrf.mxu0
        %v2987 = vpop.f32.mrf.mxu0
        %2988 = vdwg.mxu0
        %v2989 = vcombine.low %v2846, %v2938
        %v2990 = vcombine.high %v2846, %v2938
        %v2992 = vunpack.c.l.s4 1983009808
        %v2993 = vunpack.c.0.s8 %v2992
        %v2994 = vlaneseq
        %v2995 = vshrl.u32 %v2994, 7
        %v2996 = vsub.s32 %v2993, %v2995
        %v2997 = vrot.slane %v2989, %v2996
        %v2999 = vunpack.c.l.s4 1983009808
        %v3000 = vunpack.c.0.s8 %v2999
        %v3001 = vlaneseq
        %v3002 = vshrl.u32 %v3001, 7
        %v3003 = vsub.s32 %v3000, %v3002
        %v3004 = vrot.slane %v2990, %v3003
        %v3005 = vcombine.low %v2892, %v2984
        %v3006 = vcombine.high %v2892, %v2984
        %v3008 = vunpack.c.l.s4 1983009808
        %v3009 = vunpack.c.0.s8 %v3008
        %v3010 = vlaneseq
        %v3011 = vshrl.u32 %v3010, 7
        %v3012 = vsub.s32 %v3009, %v3011
        %v3013 = vrot.slane %v3005, %v3012
        %v3015 = vunpack.c.l.s4 1983009808
        %v3016 = vunpack.c.0.s8 %v3015
        %v3017 = vlaneseq
        %v3018 = vshrl.u32 %v3017, 7
        %v3019 = vsub.s32 %v3016, %v3018
        %v3020 = vrot.slane %v3006, %v3019
        %v3021 = vcombine.low %v2997, %v3013
        %v3022 = vcombine.high %v2997, %v3013
        %v3024 = vunpack.c.l.s4 1934713408
        %v3025 = vunpack.c.0.s8 %v3024
        %v3026 = vlaneseq
        %v3027 = vshrl.u32 %v3026, 7
        %v3028 = vsub.s32 %v3025, %v3027
        %v3029 = vrot.slane %v3021, %v3028
        %v3031 = vunpack.c.l.s4 1934713408
        %v3032 = vunpack.c.0.s8 %v3031
        %v3033 = vlaneseq
        %v3034 = vshrl.u32 %v3033, 7
        %v3035 = vsub.s32 %v3032, %v3034
        %v3036 = vrot.slane %v3022, %v3035
        %v3037 = vcombine.low %v3004, %v3020
        %v3038 = vcombine.high %v3004, %v3020
        %v3040 = vunpack.c.l.s4 1934713408
        %v3041 = vunpack.c.0.s8 %v3040
        %v3042 = vlaneseq
        %v3043 = vshrl.u32 %v3042, 7
        %v3044 = vsub.s32 %v3041, %v3043
        %v3045 = vrot.slane %v3037, %v3044
        %v3047 = vunpack.c.l.s4 1934713408
        %v3048 = vunpack.c.0.s8 %v3047
        %v3049 = vlaneseq
        %v3050 = vshrl.u32 %v3049, 7
        %v3051 = vsub.s32 %v3048, %v3050
        %v3052 = vrot.slane %v3038, %v3051
        %v3053 = vcombine.high %v3029, 0.0
        %v3054 = vcombine.high %v3036, 0.0
        %v3055 = vcombine.high %v3045, 0.0
        %v3056 = vcombine.high %v3052, 0.0
        %v3057 = vcombine.low %v3029, %v3036
        %v3059 = vunpack.c.l.s4 1983009808
        %v3060 = vunpack.c.0.s8 %v3059
        %v3061 = vlaneseq
        %v3062 = vshrl.u32 %v3061, 7
        %v3063 = vsub.s32 %v3060, %v3062
        %v3064 = vrot.slane %v3057, %v3063
        %v3065 = vcombine.low %v3053, %v3054
        %v3067 = vunpack.c.l.s4 1983009808
        %v3068 = vunpack.c.0.s8 %v3067
        %v3069 = vlaneseq
        %v3070 = vshrl.u32 %v3069, 7
        %v3071 = vsub.s32 %v3068, %v3070
        %v3072 = vrot.slane %v3065, %v3071
        %v3073 = vcombine.low %v3045, %v3052
        %v3075 = vunpack.c.l.s4 1983009808
        %v3076 = vunpack.c.0.s8 %v3075
        %v3077 = vlaneseq
        %v3078 = vshrl.u32 %v3077, 7
        %v3079 = vsub.s32 %v3076, %v3078
        %v3080 = vrot.slane %v3073, %v3079
        %v3081 = vcombine.low %v3055, %v3056
        %v3083 = vunpack.c.l.s4 1983009808
        %v3084 = vunpack.c.0.s8 %v3083
        %v3085 = vlaneseq
        %v3086 = vshrl.u32 %v3085, 7
        %v3087 = vsub.s32 %v3084, %v3086
        %v3088 = vrot.slane %v3081, %v3087
        %v3089 = vcombine.low %v3064, %v3072
        %v3090 = vcombine.high %v3064, %v3072
        %v3092 = vunpack.c.l.s4 1934713408
        %v3093 = vunpack.c.0.s8 %v3092
        %v3094 = vlaneseq
        %v3095 = vshrl.u32 %v3094, 7
        %v3096 = vsub.s32 %v3093, %v3095
        %v3097 = vrot.slane %v3089, %v3096
        %v3099 = vunpack.c.l.s4 1934713408
        %v3100 = vunpack.c.0.s8 %v3099
        %v3101 = vlaneseq
        %v3102 = vshrl.u32 %v3101, 7
        %v3103 = vsub.s32 %v3100, %v3102
        %v3104 = vrot.slane %v3090, %v3103
        %v3105 = vcombine.low %v3080, %v3088
        %v3106 = vcombine.high %v3080, %v3088
        %v3108 = vunpack.c.l.s4 1934713408
        %v3109 = vunpack.c.0.s8 %v3108
        %v3110 = vlaneseq
        %v3111 = vshrl.u32 %v3110, 7
        %v3112 = vsub.s32 %v3109, %v3111
        %v3113 = vrot.slane %v3105, %v3112
        %v3115 = vunpack.c.l.s4 1934713408
        %v3116 = vunpack.c.0.s8 %v3115
        %v3117 = vlaneseq
        %v3118 = vshrl.u32 %v3117, 7
        %v3119 = vsub.s32 %v3116, %v3118
        %v3120 = vrot.slane %v3106, %v3119
        %v3121 = vcombine.low %v3097, %v3113
        %v3122 = vcombine.high %v3097, %v3113
        %v3123 = vcombine.low %v3104, %v3120
        %v3124 = vcombine.high %v3104, %v3120
        %3126 = vrot.lane.b32.xlu0 %v3122, 8
        %v3127 = vpop.permute.xlu0 %3126
        %3130 = vrot.lane.b32.xlu0 %v3123, 16
        %v3131 = vpop.permute.xlu0 %3130
        %3134 = vrot.lane.b32.xlu0 %v3124, 24
        %v3135 = vpop.permute.xlu0 %3134
        %v3137 = vsel %vm2567, %v3121, %v3127
        %vm3138 = vcmask 130048
        %v3139 = vsel %vm3138, %v3137, %v3131
        %vm3140 = vcmask 195584
        %v3141 = vsel %vm3140, %v3139, %v3135
        %v3142 = vpack.c.bf16 %v3141, %v3141
        %v3143 = vld [vmem:[%s1062] sm:$0xf]
        %v3144 = vld [vmem:[%s1062 + $0x4] sm:$0xf]
        %v3145 = vld [vmem:[%s1062 + $0x8] sm:$0xf]
        %v3146 = vld [vmem:[%s1062 + $0xc] sm:$0xf]
        %v3147 = vld [vmem:[%s1074] sm:$0x1]
        %v3149 = vlaneseq
        %v3150 = vshrl.u32 %v3149, 7
        %v3151 = vsub.s32 0, %v3150
        %v3152 = vrot.slane %v3147, %v3151
        %v3158 = vunpack.c.l.b16 %v3143
        %v3159 = vunpack.c.l.b16 %v3144
        %v3160 = vunpack.c.l.b16 %v3145
        %v3161 = vunpack.c.l.b16 %v3146
        %v3162 = vpack.c.b16 %v3159, %v3158
        %v3163 = vpack.c.b16 %v3161, %v3160
        %v3167 = vsel %vm1134, %v3142, 0
        %3169 = vmatprep.subr.bf16.mxu0 0
        %3170 = vmatpush1.bf16.msra.mxu0 0
        %3171 = vmatprep.subr.bf16.mxu0 0
        %3172 = vmatpush1.bf16.msra.mxu0 0
        %3173 = vmatprep.subr.bf16.mxu0 0
        %3174 = vmatpush1.bf16.msra.mxu0 0
        %3175 = vmatprep.subr.bf16.mxu0 0
        %3176 = vmatpush1.bf16.msra.mxu0 0
        %3177 = vmatprep.subr.bf16.mxu0 0
        %3178 = vmatpush1.bf16.msra.mxu0 0
        %3179 = vmatprep.subr.bf16.mxu0 0
        %3180 = vmatpush1.bf16.msra.mxu0 0
        %3181 = vmatprep.subr.bf16.mxu0 0
        %3182 = vmatpush1.bf16.msra.mxu0 %v3163
        %3183 = vmatprep.subr.bf16.mxu0 0
        %3184 = vmatpush1.bf16.msra.mxu0 %v3162
        %3185 = vmatprep.subr.bf16.mxu0 0
        %3186 = vmatpush2.bf16.msra.mxu0 0
        %3187 = vmatprep.subr.bf16.mxu0 0
        %3188 = vmatpush2.bf16.msra.mxu0 0
        %3189 = vmatprep.subr.bf16.mxu0 0
        %3190 = vmatpush2.bf16.msra.mxu0 0
        %3191 = vmatprep.subr.bf16.mxu0 0
        %3192 = vmatpush2.bf16.msra.mxu0 0
        %3193 = vmatprep.subr.bf16.mxu0 0
        %3194 = vmatpush2.bf16.msra.mxu0 0
        %3195 = vmatprep.subr.bf16.mxu0 0
        %3196 = vmatpush2.bf16.msra.mxu0 0
        %3197 = vmatprep.subr.bf16.mxu0 0
        %3198 = vmatpush2.bf16.msra.mxu0 0
        %3199 = vmatprep.subr.bf16.mxu0 0
        %3200 = vmatpush2.bf16.msra.mxu0 0
        %3201 = vmatprep.mubr.bf16.mxu0 0
        %3202 = vmatmul.mubr.bf16.gmra.mxu0 %v3167
        %v3203 = vpop.f32.mrf.mxu0
        %v3204 = vadd.f32 %v3152, %v3203
        %v3205 = vpop.f32.mrf.mxu0
        %v3206 = vpop.f32.mrf.mxu0
        %v3207 = vpop.f32.mrf.mxu0
        %3208 = vdwg.mxu0
        %v3209 = vadd.f32 %v1860, %v3204
        %v3210 = vld [vmem:[%s1077] sm:$0x1]
        %v3211 = vld [vmem:[%s1080] sm:$0x1]
        %v3212 = vsel %vm1134, %v3209, 0.0
        %3213 = vadd.xlane.f32.xlu0 %v3212
        %v3214 = vpop.xlane.xlu0 %3213
        %v3215 = vrcp.pop 32.0
        %v3216 = vmul.f32 %v3214, %v3215
        %v3217 = vsub.f32 %v3209, %v3216
        %v3218 = vmul.f32 %v3217, %v3217
        %v3219 = vsel %vm1134, %v3218, 0.0
        %3220 = vadd.xlane.f32.xlu0 %v3219
        %v3221 = vpop.xlane.xlu0 %3220
        %v3222 = vmul.f32 %v3221, %v3215
        %v3223 = vadd.f32 %v3222, 1e-05
        %v3224 = vrsqrt.pop %v3223
        %v3225 = vmul.f32 %v3217, %v3224
        %v3227 = vlaneseq
        %v3228 = vshrl.u32 %v3227, 7
        %v3229 = vsub.s32 0, %v3228
        %v3230 = vrot.slane %v3210, %v3229
        %v3232 = vmul.f32 %v3225, %v3230
        %v3234 = vlaneseq
        %v3235 = vshrl.u32 %v3234, 7
        %v3236 = vsub.s32 0, %v3235
        %v3237 = vrot.slane %v3211, %v3236
        %v3239 = vadd.f32 %v3232, %v3237
        %v3240 = vpack.c.bf16 %v3239, %v3239
        %v3241 = vld [vmem:[%s1085] sm:$0xf]
        %v3242 = vld [vmem:[%s1085 + $0x4] sm:$0xf]
        %v3243 = vld [vmem:[%s1085 + $0x8] sm:$0xf]
        %v3244 = vld [vmem:[%s1085 + $0xc] sm:$0xf]
        %v3245 = vld [vmem:[%s1088] sm:$0x1]
        %v3247 = vlaneseq
        %v3248 = vshrl.u32 %v3247, 7
        %v3249 = vsub.s32 0, %v3248
        %v3250 = vrot.slane %v3245, %v3249
        %v3256 = vunpack.c.l.b16 %v3241
        %v3257 = vunpack.c.l.b16 %v3242
        %v3258 = vunpack.c.l.b16 %v3243
        %v3259 = vunpack.c.l.b16 %v3244
        %v3260 = vpack.c.b16 %v3257, %v3256
        %v3261 = vpack.c.b16 %v3259, %v3258
        %v3265 = vsel %vm1134, %v3240, 0
        %3267 = vmatprep.subr.bf16.mxu0 0
        %3268 = vmatpush1.bf16.msra.mxu0 0
        %3269 = vmatprep.subr.bf16.mxu0 0
        %3270 = vmatpush1.bf16.msra.mxu0 0
        %3271 = vmatprep.subr.bf16.mxu0 0
        %3272 = vmatpush1.bf16.msra.mxu0 0
        %3273 = vmatprep.subr.bf16.mxu0 0
        %3274 = vmatpush1.bf16.msra.mxu0 0
        %3275 = vmatprep.subr.bf16.mxu0 0
        %3276 = vmatpush1.bf16.msra.mxu0 0
        %3277 = vmatprep.subr.bf16.mxu0 0
        %3278 = vmatpush1.bf16.msra.mxu0 0
        %3279 = vmatprep.subr.bf16.mxu0 0
        %3280 = vmatpush1.bf16.msra.mxu0 %v3261
        %3281 = vmatprep.subr.bf16.mxu0 0
        %3282 = vmatpush1.bf16.msra.mxu0 %v3260
        %3283 = vmatprep.subr.bf16.mxu0 0
        %3284 = vmatpush2.bf16.msra.mxu0 0
        %3285 = vmatprep.subr.bf16.mxu0 0
        %3286 = vmatpush2.bf16.msra.mxu0 0
        %3287 = vmatprep.subr.bf16.mxu0 0
        %3288 = vmatpush2.bf16.msra.mxu0 0
        %3289 = vmatprep.subr.bf16.mxu0 0
        %3290 = vmatpush2.bf16.msra.mxu0 0
        %3291 = vmatprep.subr.bf16.mxu0 0
        %3292 = vmatpush2.bf16.msra.mxu0 0
        %3293 = vmatprep.subr.bf16.mxu0 0
        %3294 = vmatpush2.bf16.msra.mxu0 0
        %3295 = vmatprep.subr.bf16.mxu0 0
        %3296 = vmatpush2.bf16.msra.mxu0 0
        %3297 = vmatprep.subr.bf16.mxu0 0
        %3298 = vmatpush2.bf16.msra.mxu0 0
        %3299 = vmatprep.mubr.bf16.mxu0 0
        %3300 = vmatmul.mubr.bf16.gmra.mxu0 %v3265
        %v3301 = vpop.f32.mrf.mxu0
        %v3302 = vadd.f32 %v3250, %v3301
        %v3303 = vpop.f32.mrf.mxu0
        %v3304 = vpop.f32.mrf.mxu0
        %v3305 = vpop.f32.mrf.mxu0
        %3306 = vdwg.mxu0
        %v3307 = vmax.f32 %v3302, 0.0
        %v3308 = vpack.c.bf16 %v3307, %v3307
        %v3309 = vld [vmem:[%s1093] sm:$0xf]
        %v3310 = vld [vmem:[%s1093 + $0x4] sm:$0xf]
        %v3311 = vld [vmem:[%s1093 + $0x8] sm:$0xf]
        %v3312 = vld [vmem:[%s1093 + $0xc] sm:$0xf]
        %v3313 = vld [vmem:[%s1093 + $0x10] sm:$0xf]
        %v3314 = vld [vmem:[%s1093 + $0x14] sm:$0xf]
        %v3315 = vld [vmem:[%s1093 + $0x18] sm:$0xf]
        %v3316 = vld [vmem:[%s1093 + $0x1c] sm:$0xf]
        %v3317 = vld [vmem:[%s1096] sm:$0x1]
        %v3319 = vlaneseq
        %v3320 = vshrl.u32 %v3319, 7
        %v3321 = vsub.s32 0, %v3320
        %v3322 = vrot.slane %v3317, %v3321
        %v3332 = vunpack.c.l.b16 %v3309
        %v3333 = vunpack.c.l.b16 %v3310
        %v3334 = vunpack.c.l.b16 %v3311
        %v3335 = vunpack.c.l.b16 %v3312
        %v3336 = vunpack.c.l.b16 %v3313
        %v3337 = vunpack.c.l.b16 %v3314
        %v3338 = vunpack.c.l.b16 %v3315
        %v3339 = vunpack.c.l.b16 %v3316
        %v3340 = vpack.c.b16 %v3333, %v3332
        %v3341 = vpack.c.b16 %v3335, %v3334
        %v3342 = vpack.c.b16 %v3337, %v3336
        %v3343 = vpack.c.b16 %v3339, %v3338
        %v3349 = vsel %vm1136, %v3308, 0
        %3351 = vmatprep.subr.bf16.mxu0 0
        %3352 = vmatpush1.bf16.msra.mxu0 0
        %3353 = vmatprep.subr.bf16.mxu0 0
        %3354 = vmatpush1.bf16.msra.mxu0 0
        %3355 = vmatprep.subr.bf16.mxu0 0
        %3356 = vmatpush1.bf16.msra.mxu0 0
        %3357 = vmatprep.subr.bf16.mxu0 0
        %3358 = vmatpush1.bf16.msra.mxu0 0
        %3359 = vmatprep.subr.bf16.mxu0 0
        %3360 = vmatpush1.bf16.msra.mxu0 %v3343
        %3361 = vmatprep.subr.bf16.mxu0 0
        %3362 = vmatpush1.bf16.msra.mxu0 %v3342
        %3363 = vmatprep.subr.bf16.mxu0 0
        %3364 = vmatpush1.bf16.msra.mxu0 %v3341
        %3365 = vmatprep.subr.bf16.mxu0 0
        %3366 = vmatpush1.bf16.msra.mxu0 %v3340
        %3367 = vmatprep.subr.bf16.mxu0 0
        %3368 = vmatpush2.bf16.msra.mxu0 0
        %3369 = vmatprep.subr.bf16.mxu0 0
        %3370 = vmatpush2.bf16.msra.mxu0 0
        %3371 = vmatprep.subr.bf16.mxu0 0
        %3372 = vmatpush2.bf16.msra.mxu0 0
        %3373 = vmatprep.subr.bf16.mxu0 0
        %3374 = vmatpush2.bf16.msra.mxu0 0
        %3375 = vmatprep.subr.bf16.mxu0 0
        %3376 = vmatpush2.bf16.msra.mxu0 0
        %3377 = vmatprep.subr.bf16.mxu0 0
        %3378 = vmatpush2.bf16.msra.mxu0 0
        %3379 = vmatprep.subr.bf16.mxu0 0
        %3380 = vmatpush2.bf16.msra.mxu0 0
        %3381 = vmatprep.subr.bf16.mxu0 0
        %3382 = vmatpush2.bf16.msra.mxu0 0
        %3383 = vmatprep.mubr.bf16.mxu0 0
        %3384 = vmatmul.mubr.bf16.gmra.mxu0 %v3349
        %v3385 = vpop.f32.mrf.mxu0
        %v3386 = vadd.f32 %v3322, %v3385
        %v3387 = vpop.f32.mrf.mxu0
        %v3388 = vpop.f32.mrf.mxu0
        %v3389 = vpop.f32.mrf.mxu0
        %3390 = vdwg.mxu0
        %v3391 = vadd.f32 %v3239, %v3386
        %v3392 = vld [vmem:[%s1099] sm:$0x1]
        %v3393 = vld [vmem:[%s1102] sm:$0x1]
        %v3394 = vsel %vm1134, %v3391, 0.0
        %3395 = vadd.xlane.f32.xlu0 %v3394
        %v3396 = vpop.xlane.xlu0 %3395
        %v3397 = vmul.f32 %v3396, %v3215
        %v3398 = vsub.f32 %v3391, %v3397
        %v3399 = vmul.f32 %v3398, %v3398
        %v3400 = vsel %vm1134, %v3399, 0.0
        %3401 = vadd.xlane.f32.xlu0 %v3400
        %v3402 = vpop.xlane.xlu0 %3401
        %v3403 = vmul.f32 %v3402, %v3215
        %v3404 = vadd.f32 %v3403, 1e-05
        %v3405 = vrsqrt.pop %v3404
        %v3406 = vmul.f32 %v3398, %v3405
        %v3408 = vlaneseq
        %v3409 = vshrl.u32 %v3408, 7
        %v3410 = vsub.s32 0, %v3409
        %v3411 = vrot.slane %v3392, %v3410
        %v3413 = vmul.f32 %v3406, %v3411
        %v3415 = vlaneseq
        %v3416 = vshrl.u32 %v3415, 7
        %v3417 = vsub.s32 0, %v3416
        %v3418 = vrot.slane %v3393, %v3417
        %v3420 = vadd.f32 %v3413, %v3418
        %3421 = vst.msk [vmem:[#allocation2] sm:$0xff] %vm1134, %v3420
        %v3422 = vld [vmem:[#allocation3] sm:$0xff]
        %v3423 = vadd.f32 %v3422, %v3420
        %3424 = vst.msk [vmem:[#allocation3] sm:$0xff] %vm1134, %v3423
        %p3425 = scmp.eq.s32.totalorder %s47, 1
        // Predicated region
        $region117: #{tpu_custom_call.1} parent=111 // pred_check
          %p3426 = pneg %p3425
        $region118: #{tpu_custom_call.1} parent=111 // pred_check_branch
          %3428 = sbr.rel (%p3426) target = $region120
        $region119: #{tpu_custom_call.1} parent=111 // pred_region
          %v3429 = vld [vmem:[#allocation3] sm:$0xff]
          %v3430 = vmul.f32 %v3429, 0.5
          %3431 = vst.msk [vmem:[%s1011] sm:$0xff] %vm1134, %v3430
        $region120: #{tpu_custom_call.1} parent=111 // pred_fallthru
          _
        %s3432 = sand.u32 %s655, 1
        %s3433 = scalar_lea.sflag [#allocation5], %s3432
        %s3434 = sand.u32 %s655, 1
        %s3435 = smul.addr %s3434, 8
        %s3436 = scalar_lea.vmem [#allocation4], %s3435
        %s3437 = sand.u32 %s683, 1
        %s3438 = scalar_lea.sflag [#allocation7], %s3437
        %s3439 = sand.u32 %s683, 1
        %s3440 = smul.addr %s3439, 32
        %s3441 = scalar_lea.vmem [#allocation6], %s3440
        // Predicated region
        $region121: #{tpu_custom_call.1} parent=111 // pred_check
          %p3442 = pneg %p665
        $region122: #{tpu_custom_call.1} parent=111 // pred_check_branch
          %3444 = sbr.rel (%p3442) target = $region124
        $region123: #{tpu_custom_call.1} parent=111 // pred_region
          %s3446 = ssub.s32 128, 128
          %3447 = vsyncadd %s3433, %s3446
          %s3448 = smul.addr %s46, 128
          %s3449 = scalar_lea.hbm %s23, %s3448
          %s3451 = sshll.u32 %s3436, 4
          %s3452 = int_to_ptr.vmem [resolvable:$true] %s3451
          %3454 = dma.vmem_to_hbm [thread:$0]  %s3452, 128, %s3449, %s3433
        $region124: #{tpu_custom_call.1} parent=111 // pred_fallthru
          _
        // Predicated region
        $region125: #{tpu_custom_call.1} parent=111 // pred_check
          %p3455 = pneg %p693
        $region126: #{tpu_custom_call.1} parent=111 // pred_check_branch
          %3457 = sbr.rel (%p3455) target = $region128
        $region127: #{tpu_custom_call.1} parent=111 // pred_region
          %s3459 = ssub.s32 512, 512
          %3460 = vsyncadd %s3438, %s3459
          %s3461 = smul.addr %s47, 4
          %s3462 = smul.addr %s46, 8
          %s3463 = sadd.s32 %s3461, %s3462
          %s3464 = smul.addr %s3463, 128
          %s3465 = scalar_lea.hbm %s24, %s3464
          %s3466 = sshll.u32 %s3441, 4
          %s3467 = int_to_ptr.vmem [resolvable:$true] %s3466
          %3472 = dma.vmem_to_hbm [thread:$0]  %s3467, 512, %s3465, %s3438, 128, 128, 8
        $region128: #{tpu_custom_call.1} parent=111 // pred_fallthru
          _
      $region112: #{tpu_custom_call.1} parent=5 // pred_fallthru
        _
      %p3473 = scmp.le.s32.totalorder 2, %s37
      // Predicated region
      $region129: #{tpu_custom_call.1} parent=5 // pred_check
        %p3474 = pneg %p3473
      $region130: #{tpu_custom_call.1} parent=5 // pred_check_branch
        %3476 = sbr.rel (%p3474) target = $region132
      $region131: #{tpu_custom_call.1} parent=5 // pred_region
        %s3477 = ssub.s32 %s37, 2
        // Predicated region
        $region133: #{tpu_custom_call.1} parent=131 // pred_check
          %p3478 = pneg %p671
        $region134: #{tpu_custom_call.1} parent=131 // pred_check_branch
          %3480 = sbr.rel (%p3478) target = $region136
        $region135: #{tpu_custom_call.1} parent=131 // pred_region
          %s3481 = sand.u32 %s656, 1
          %s3482 = scalar_lea.sflag [#allocation5], %s3481
          %s3483 = sand.u32 %s656, 1
          %s3484 = smul.addr %s3483, 8
          %s3485 = scalar_lea.vmem [#allocation4], %s3484
          %3486 = dma.done %s3482, 128
        $region136: #{tpu_custom_call.1} parent=131 // pred_fallthru
          _
        // Predicated region
        $region137: #{tpu_custom_call.1} parent=131 // pred_check
          %p3487 = pneg %p699
        $region138: #{tpu_custom_call.1} parent=131 // pred_check_branch
          %3489 = sbr.rel (%p3487) target = $region140
        $region139: #{tpu_custom_call.1} parent=131 // pred_region
          %s3490 = sand.u32 %s684, 1
          %s3491 = scalar_lea.sflag [#allocation7], %s3490
          %s3492 = sand.u32 %s684, 1
          %s3493 = smul.addr %s3492, 32
          %s3494 = scalar_lea.vmem [#allocation6], %s3493
          %3495 = dma.done %s3491, 512
        $region140: #{tpu_custom_call.1} parent=131 // pred_fallthru
          _
      $region132: #{tpu_custom_call.1} parent=5 // pred_fallthru
        _
    $region6: #{tpu_custom_call.1} parent=1 // loop_footer
      %s41 = sadd.s32 1, %s37
    $region7: #{tpu_custom_call.1} parent=1 // loop_footer_branch
      %36 = sbr.rel target = $region3
    $region8: #{tpu_custom_call.1} parent=1 // loop_exit
      _
    %3496 = vsyncpa [#allocation5], 1
    %s3497 = scalar_lea.sflag [#allocation5], 1
    %3498 = vsyncpa %s3497, 1
    %3499 = vsyncpa [#allocation7], 1
    %s3500 = scalar_lea.sflag [#allocation7], 1
    %3501 = vsyncpa %s3500, 1

</llo_original>
